<compile_context>
chip_gen: v5e
topology: v5e:2x2
jax: 0.10.0
libtpu: 0.0.40
codegen_flags: <defaults>
</compile_context>

<pallas_src>
import numpy as np

import jax
import jax.numpy as jnp
from jax.experimental import pallas as pl
from jax.experimental.pallas import tpu as pltpu

# Make the pure-JAX reference use full-precision matmuls for the comparison.
jax.config.update("jax_default_matmul_precision", "highest")


# -----------------------------------------------------------------------------
# Fused kernel: gcn1 -> gcn2 -> sum-readout -> scorer, all resident in VMEM.
# -----------------------------------------------------------------------------
def _graph_network_kernel(x_s_ref, x_d_ref,
                          a_ss_ref, a_ds_ref, a_sd_ref,
                          seg_s_ref, seg_d_ref,
                          w_s1_ref, w_d1_ref, b1_ref,
                          w_s2_ref, w_d2_ref, b2_ref,
                          w_sc_ref, b_sc_ref,
                          y_ref):
    f32 = jnp.float32
    a_ss = a_ss_ref[...]   # (N, N)  dst sent <- src sent (right-normalized)
    a_ds = a_ds_ref[...]   # (N, N)  dst sent <- src doc
    a_sd = a_sd_ref[...]   # (N, N)  dst doc  <- src sent

    def rgcn_layer(xs, xd, w_s_cat, w_d_cat, bias):
        # w_s_cat = [W_ss | W_sd | W_loop]  (Fin, 3F)   (lane-dense matmul)
        # w_d_cat = [W_ds | W_loop]         (Fin, 2F)
        fo = bias.shape[-1]
        ms = jnp.dot(xs, w_s_cat, preferred_element_type=f32)   # (N, 3F)
        md = jnp.dot(xd, w_d_cat, preferred_element_type=f32)   # (N, 2F)
        # dst = 'sent': relations ss (src sent), ds (src doc), + self-loop
        hs = (jnp.dot(a_ss, ms[:, 0:fo], preferred_element_type=f32)
              + jnp.dot(a_ds, md[:, 0:fo], preferred_element_type=f32)
              + ms[:, 2 * fo:3 * fo] + bias)
        # dst = 'doc': relation sd (src sent) + self-loop
        hd = (jnp.dot(a_sd, ms[:, fo:2 * fo], preferred_element_type=f32)
              + md[:, fo:2 * fo] + bias)
        # F.relu activation, dropout = 0
        return jnp.maximum(hs, 0.0), jnp.maximum(hd, 0.0)

    h1_s, h1_d = rgcn_layer(x_s_ref[...], x_d_ref[...],
                            w_s1_ref[...], w_d1_ref[...], b1_ref[...])
    h2_s, h2_d = rgcn_layer(h1_s, h1_d,
                            w_s2_ref[...], w_d2_ref[...], b2_ref[...])

    # readout == 'sum' over nodes of each ntype (summed across ntypes), then
    # the final Linear scorer.
    res = (jnp.dot(seg_s_ref[...], h2_s, preferred_element_type=f32)
           + jnp.dot(seg_d_ref[...], h2_d, preferred_element_type=f32))
    y = jnp.dot(res, w_sc_ref[...], preferred_element_type=f32) + b_sc_ref[...]
    y_ref[...] = y.astype(y_ref.dtype)


def graph_network_forward(packed, graph, x_sent, x_doc):
    G = graph["seg_s"].shape[0]
    inputs = (x_sent, x_doc,
              graph["A_ss"], graph["A_ds"], graph["A_sd"],
              graph["seg_s"], graph["seg_d"],
              packed["w_s1"], packed["w_d1"], packed["b1"],
              packed["w_s2"], packed["w_d2"], packed["b2"],
              packed["w_sc"], packed["b_sc"])

    def mm_flops(m, k, n):
        return 2 * m * k * n

    N, Fin = x_sent.shape
    H = packed["b1"].shape[-1]
    O = packed["b2"].shape[-1]
    flops = (mm_flops(N, Fin, 3 * H) + mm_flops(N, Fin, 2 * H)
             + 3 * mm_flops(N, N, H)
             + mm_flops(N, H, 3 * O) + mm_flops(N, H, 2 * O)
             + 3 * mm_flops(N, N, O)
             + 2 * mm_flops(G, N, O) + mm_flops(G, O, 1))
    bytes_accessed = sum(int(np.prod(a.shape)) * 4 for a in inputs) + G * 4

    return pl.pallas_call(
        _graph_network_kernel,
        out_shape=jax.ShapeDtypeStruct((G, 1), jnp.float32),
        grid=(1,),
        in_specs=[pl.BlockSpec(a.shape, lambda i: (0, 0)) for a in inputs],
        out_specs=pl.BlockSpec((G, 1), lambda i: (0, 0)),
        compiler_params=pltpu.CompilerParams(
            dimension_semantics=("arbitrary",)),
        cost_estimate=pl.CostEstimate(flops=int(flops), transcendentals=0,
                                      bytes_accessed=int(bytes_accessed)),
    )(*inputs)


# -----------------------------------------------------------------------------
# Parameter init (deterministic, mirrors the shapes in the PyTorch __init__)
# -----------------------------------------------------------------------------
def _xavier_uniform(key, shape, gain):
    fan_in, fan_out = shape[-2], shape[-1]
    bound = gain * np.sqrt(6.0 / (fan_in + fan_out))
    return jax.random.uniform(key, shape, jnp.float32, -bound, bound)


def init_rel_layer(key, in_feat, out_feat, num_rels, num_bases=2):
    gain = np.sqrt(2.0)  # nn.init.calculate_gain('relu')
    k1, k2, k3 = jax.random.split(key, 3)
    # WeightBasis: num_bases < num_rels -> basis decomposition
    basis = _xavier_uniform(k1, (num_bases, in_feat, out_feat), gain)
    comp = _xavier_uniform(k2, (num_rels, num_bases), gain)
    rel_w = jnp.einsum('rb,bio->rio', comp, basis)           # (num_rels, in, out)
    loop_w = _xavier_uniform(k3, (in_feat, out_feat), gain)  # self-loop weight
    bias = jnp.zeros((1, out_feat), jnp.float32)             # nn.init.zeros_
    return {"rel_w": rel_w, "loop_w": loop_w, "bias": bias}


def init_params(key, in_feat, hidden, out_feat, num_rels):
    k1, k2, k3, k4 = jax.random.split(key, 4)
    bound = 1.0 / np.sqrt(out_feat)
    return {
        "gcn1": init_rel_layer(k1, in_feat, hidden, num_rels),
        "gcn2": init_rel_layer(k2, hidden, out_feat, num_rels),
        "scorer_w": jax.random.uniform(k3, (out_feat, 1), jnp.float32,
                                       -bound, bound),
        "scorer_b": jax.random.uniform(k4, (1, 1), jnp.float32, -bound, bound),
    }


def pack_params(params):
    """Hoisted (one-time) weight packing: concatenate per-relation + self-loop
    weights along the output axis so the in-kernel X @ W matmuls are
    lane-dense.  rel_w order is ['ss', 'sd', 'ds']."""
    def pack_layer(p):
        W = p["rel_w"]
        w_s = jnp.concatenate([W[0], W[1], p["loop_w"]], axis=1)  # (Fin, 3F)
        w_d = jnp.concatenate([W[2], p["loop_w"]], axis=1)        # (Fin, 2F)
        return w_s, w_d, p["bias"]
    w_s1, w_d1, b1 = pack_layer(params["gcn1"])
    w_s2, w_d2, b2 = pack_layer(params["gcn2"])
    return {"w_s1": w_s1, "w_d1": w_d1, "b1": b1,
            "w_s2": w_s2, "w_d2": w_d2, "b2": b2,
            "w_sc": params["scorer_w"], "b_sc": params["scorer_b"]}


# -----------------------------------------------------------------------------
# Graph glue: dense right-normalized adjacencies for the hetero relations
#   rel_types = ['ss' (sent->sent), 'sd' (sent->doc), 'ds' (doc->sent)]
# -----------------------------------------------------------------------------
def build_graph(sent_counts, n_pad):
    n_sent = int(np.sum(sent_counts))
    n_doc = len(sent_counts)
    G = n_doc
    A_ss = np.zeros((n_pad, n_pad), np.float32)
    A_sd = np.zeros((n_pad, n_pad), np.float32)  # dst doc, src sent
    A_ds = np.zeros((n_pad, n_pad), np.float32)  # dst sent, src doc
    seg_s = np.zeros((G, n_pad), np.float32)
    seg_d = np.zeros((G, n_pad), np.float32)
    offset = 0
    for d, cnt in enumerate(sent_counts):
        sents = list(range(offset, offset + cnt))
        for i in sents:
            for j in sents:
                if i != j:
                    A_ss[i, j] = 1.0            # sent j -> sent i
            A_sd[d, i] = 1.0                    # sent i -> doc d
            A_ds[i, d] = 1.0                    # doc d  -> sent i
            seg_s[d, i] = 1.0
        seg_d[d, d] = 1.0
        offset += cnt

    def right_norm(a):
        deg = np.clip(a.sum(axis=1, keepdims=True), 1.0, None)
        return a / deg

    return {
        "A_ss": jnp.asarray(right_norm(A_ss)),
        "A_sd": jnp.asarray(right_norm(A_sd)),
        "A_ds": jnp.asarray(right_norm(A_ds)),
        "seg_s": jnp.asarray(seg_s),
        "seg_d": jnp.asarray(seg_d),
        "n_sent": n_sent,
        "n_doc": n_doc,
    }


# -----------------------------------------------------------------------------
# Pure-JAX reference for correctness check
# -----------------------------------------------------------------------------
def reference_forward(params, graph, sent_feat, doc_feat):
    def layer(p, xs, xd):
        W = p["rel_w"]          # (3, Fin, Fout), order ['ss', 'sd', 'ds']
        hs = (graph["A_ss"] @ (xs @ W[0]) + graph["A_ds"] @ (xd @ W[2])
              + xs @ p["loop_w"] + p["bias"])
        hd = graph["A_sd"] @ (xs @ W[1]) + xd @ p["loop_w"] + p["bias"]
        return jnp.maximum(hs, 0.0), jnp.maximum(hd, 0.0)
    h1s, h1d = layer(params["gcn1"], sent_feat, doc_feat)
    h2s, h2d = layer(params["gcn2"], h1s, h1d)
    res = graph["seg_s"] @ h2s + graph["seg_d"] @ h2d
    return res @ params["scorer_w"] + params["scorer_b"]


# -----------------------------------------------------------------------------
if __name__ == "__main__":
    IN_FEAT = 768          # fixed by the module (self.in_features = 768)
    HIDDEN = 32
    OUT_FEAT = 16
    NUM_RELS = 3           # ['ss', 'sd', 'ds'];  num_bases=2 < 3 -> basis used
    N_PAD = 8              # node-count padding (padded rows masked by seg/adj)

    sent_counts = [3, 5]   # 2 documents (= 2 graphs), 8 sentence nodes total
    graph = build_graph(sent_counts, N_PAD)

    key = jax.random.PRNGKey(0)
    kp, ks, kd = jax.random.split(key, 3)
    params = init_params(kp, IN_FEAT, HIDDEN, OUT_FEAT, NUM_RELS)
    packed = pack_params(params)   # one-time lane-dense weight packing

    # TODO(synk): synthetic stand-ins for the DeBERTa sentence / document
    # embeddings (encoders + tokenizer are not expressible as Pallas kernels).
    sent_feat = jax.random.normal(ks, (N_PAD, IN_FEAT), jnp.float32)
    doc_feat = jax.random.normal(kd, (N_PAD, IN_FEAT), jnp.float32)
    doc_feat = doc_feat.at[graph["n_doc"]:].set(0.0)   # only 2 real doc nodes

    y = graph_network_forward(packed, graph, sent_feat, doc_feat)
    y = jax.block_until_ready(y)

    y_ref = reference_forward(params, graph, sent_feat, doc_feat)
    np.testing.assert_allclose(np.asarray(y), np.asarray(y_ref),
                               rtol=1e-3, atol=1e-2)
    assert y.shape == (len(sent_counts), 1)
    print("KERNEL_OK")
</pallas_src>

<mosaic_0001>
module attributes {stable_mosaic.version = 11 : i64} {
  func.func @_graph_network_kernel(%arg0: i32, %arg1: memref<8x768xf32, #tpu.memory_space<vmem>>, %arg2: memref<8x768xf32, #tpu.memory_space<vmem>>, %arg3: memref<8x8xf32, #tpu.memory_space<vmem>>, %arg4: memref<8x8xf32, #tpu.memory_space<vmem>>, %arg5: memref<8x8xf32, #tpu.memory_space<vmem>>, %arg6: memref<2x8xf32, #tpu.memory_space<vmem>>, %arg7: memref<2x8xf32, #tpu.memory_space<vmem>>, %arg8: memref<768x96xf32, #tpu.memory_space<vmem>>, %arg9: memref<768x64xf32, #tpu.memory_space<vmem>>, %arg10: memref<1x32xf32, #tpu.memory_space<vmem>>, %arg11: memref<32x48xf32, #tpu.memory_space<vmem>>, %arg12: memref<32x32xf32, #tpu.memory_space<vmem>>, %arg13: memref<1x16xf32, #tpu.memory_space<vmem>>, %arg14: memref<16x1xf32, #tpu.memory_space<vmem>>, %arg15: memref<1x1xf32, #tpu.memory_space<vmem>>, %arg16: memref<2x1xf32, #tpu.memory_space<vmem>>) attributes {dimension_semantics = [#tpu.dimension_semantics<arbitrary>], iteration_bounds = array<i64: 1>, scalar_prefetch = 0 : i64, scratch_operands = 0 : i64, tpu.core_type = #tpu.core_type<tc>, window_params = [{pipeline_mode = #tpu.pipeline_mode<synchronous>, transform_indices = @transform_0, window_bounds = array<i64: 8, 768>}, {pipeline_mode = #tpu.pipeline_mode<synchronous>, transform_indices = @transform_1, window_bounds = array<i64: 8, 768>}, {pipeline_mode = #tpu.pipeline_mode<synchronous>, transform_indices = @transform_2, window_bounds = array<i64: 8, 8>}, {pipeline_mode = #tpu.pipeline_mode<synchronous>, transform_indices = @transform_3, window_bounds = array<i64: 8, 8>}, {pipeline_mode = #tpu.pipeline_mode<synchronous>, transform_indices = @transform_4, window_bounds = array<i64: 8, 8>}, {pipeline_mode = #tpu.pipeline_mode<synchronous>, transform_indices = @transform_5, window_bounds = array<i64: 2, 8>}, {pipeline_mode = #tpu.pipeline_mode<synchronous>, transform_indices = @transform_6, window_bounds = array<i64: 2, 8>}, {pipeline_mode = #tpu.pipeline_mode<synchronous>, transform_indices = @transform_7, window_bounds = array<i64: 768, 96>}, {pipeline_mode = #tpu.pipeline_mode<synchronous>, transform_indices = @transform_8, window_bounds = array<i64: 768, 64>}, {pipeline_mode = #tpu.pipeline_mode<synchronous>, transform_indices = @transform_9, window_bounds = array<i64: 1, 32>}, {pipeline_mode = #tpu.pipeline_mode<synchronous>, transform_indices = @transform_10, window_bounds = array<i64: 32, 48>}, {pipeline_mode = #tpu.pipeline_mode<synchronous>, transform_indices = @transform_11, window_bounds = array<i64: 32, 32>}, {pipeline_mode = #tpu.pipeline_mode<synchronous>, transform_indices = @transform_12, window_bounds = array<i64: 1, 16>}, {pipeline_mode = #tpu.pipeline_mode<synchronous>, transform_indices = @transform_13, window_bounds = array<i64: 16, 1>}, {pipeline_mode = #tpu.pipeline_mode<synchronous>, transform_indices = @transform_14, window_bounds = array<i64: 1, 1>}, {pipeline_mode = #tpu.pipeline_mode<synchronous>, transform_indices = @transform_15, window_bounds = array<i64: 2, 1>}]} {
    %c0 = arith.constant 0 : index
    %c0_0 = arith.constant 0 : index
    %0 = vector.load %arg3[%c0, %c0_0] : memref<8x8xf32, #tpu.memory_space<vmem>>, vector<8x8xf32>
    %c0_1 = arith.constant 0 : index
    %c0_2 = arith.constant 0 : index
    %1 = vector.load %arg4[%c0_1, %c0_2] : memref<8x8xf32, #tpu.memory_space<vmem>>, vector<8x8xf32>
    %c0_3 = arith.constant 0 : index
    %c0_4 = arith.constant 0 : index
    %2 = vector.load %arg5[%c0_3, %c0_4] : memref<8x8xf32, #tpu.memory_space<vmem>>, vector<8x8xf32>
    %c0_5 = arith.constant 0 : index
    %c0_6 = arith.constant 0 : index
    %3 = vector.load %arg1[%c0_5, %c0_6] : memref<8x768xf32, #tpu.memory_space<vmem>>, vector<8x768xf32>
    %c0_7 = arith.constant 0 : index
    %c0_8 = arith.constant 0 : index
    %4 = vector.load %arg2[%c0_7, %c0_8] : memref<8x768xf32, #tpu.memory_space<vmem>>, vector<8x768xf32>
    %c0_9 = arith.constant 0 : index
    %c0_10 = arith.constant 0 : index
    %5 = vector.load %arg8[%c0_9, %c0_10] : memref<768x96xf32, #tpu.memory_space<vmem>>, vector<768x96xf32>
    %c0_11 = arith.constant 0 : index
    %c0_12 = arith.constant 0 : index
    %6 = vector.load %arg9[%c0_11, %c0_12] : memref<768x64xf32, #tpu.memory_space<vmem>>, vector<768x64xf32>
    %c0_13 = arith.constant 0 : index
    %c0_14 = arith.constant 0 : index
    %7 = vector.load %arg10[%c0_13, %c0_14] : memref<1x32xf32, #tpu.memory_space<vmem>>, vector<1x32xf32>
    %cst = arith.constant dense<0.000000e+00> : vector<8x96xf32>
    %8 = tpu.matmul %3, %5, %cst {dimension_numbers = #tpu.dot_dimension_numbers<[1], [0], [0], [1], [0, 0, 1, 1], [], []>, precision = #tpu.contract_precision<fp32>} : vector<8x768xf32>, vector<768x96xf32>, vector<8x96xf32> -> vector<8x96xf32>
    %cst_15 = arith.constant dense<0.000000e+00> : vector<8x64xf32>
    %9 = tpu.matmul %4, %6, %cst_15 {dimension_numbers = #tpu.dot_dimension_numbers<[1], [0], [0], [1], [0, 0, 1, 1], [], []>, precision = #tpu.contract_precision<fp32>} : vector<8x768xf32>, vector<768x64xf32>, vector<8x64xf32> -> vector<8x64xf32>
    %10 = vector.extract_strided_slice %8 {offsets = [0, 0], sizes = [8, 32], strides = [1, 1]} : vector<8x96xf32> to vector<8x32xf32>
    %cst_16 = arith.constant dense<0.000000e+00> : vector<8x32xf32>
    %11 = tpu.matmul %0, %10, %cst_16 {dimension_numbers = #tpu.dot_dimension_numbers<[1], [0], [0], [1], [0, 0, 1, 1], [], []>, precision = #tpu.contract_precision<fp32>} : vector<8x8xf32>, vector<8x32xf32>, vector<8x32xf32> -> vector<8x32xf32>
    %12 = vector.extract_strided_slice %9 {offsets = [0, 0], sizes = [8, 32], strides = [1, 1]} : vector<8x64xf32> to vector<8x32xf32>
    %cst_17 = arith.constant dense<0.000000e+00> : vector<8x32xf32>
    %13 = tpu.matmul %1, %12, %cst_17 {dimension_numbers = #tpu.dot_dimension_numbers<[1], [0], [0], [1], [0, 0, 1, 1], [], []>, precision = #tpu.contract_precision<fp32>} : vector<8x8xf32>, vector<8x32xf32>, vector<8x32xf32> -> vector<8x32xf32>
    %14 = arith.addf %11, %13 : vector<8x32xf32>
    %15 = vector.extract_strided_slice %8 {offsets = [0, 64], sizes = [8, 32], strides = [1, 1]} : vector<8x96xf32> to vector<8x32xf32>
    %16 = arith.addf %14, %15 : vector<8x32xf32>
    %17 = vector.broadcast %7 : vector<1x32xf32> to vector<8x32xf32>
    %18 = arith.addf %16, %17 : vector<8x32xf32>
    %19 = vector.extract_strided_slice %8 {offsets = [0, 32], sizes = [8, 32], strides = [1, 1]} : vector<8x96xf32> to vector<8x32xf32>
    %cst_18 = arith.constant dense<0.000000e+00> : vector<8x32xf32>
    %20 = tpu.matmul %2, %19, %cst_18 {dimension_numbers = #tpu.dot_dimension_numbers<[1], [0], [0], [1], [0, 0, 1, 1], [], []>, precision = #tpu.contract_precision<fp32>} : vector<8x8xf32>, vector<8x32xf32>, vector<8x32xf32> -> vector<8x32xf32>
    %21 = vector.extract_strided_slice %9 {offsets = [0, 32], sizes = [8, 32], strides = [1, 1]} : vector<8x64xf32> to vector<8x32xf32>
    %22 = arith.addf %20, %21 : vector<8x32xf32>
    %23 = vector.broadcast %7 : vector<1x32xf32> to vector<8x32xf32>
    %24 = arith.addf %22, %23 : vector<8x32xf32>
    %cst_19 = arith.constant 0.000000e+00 : f32
    %25 = vector.broadcast %cst_19 : f32 to vector<8x32xf32>
    %26 = arith.maximumf %18, %25 : vector<8x32xf32>
    %cst_20 = arith.constant 0.000000e+00 : f32
    %27 = vector.broadcast %cst_20 : f32 to vector<8x32xf32>
    %28 = arith.maximumf %24, %27 : vector<8x32xf32>
    %c0_21 = arith.constant 0 : index
    %c0_22 = arith.constant 0 : index
    %29 = vector.load %arg11[%c0_21, %c0_22] : memref<32x48xf32, #tpu.memory_space<vmem>>, vector<32x48xf32>
    %c0_23 = arith.constant 0 : index
    %c0_24 = arith.constant 0 : index
    %30 = vector.load %arg12[%c0_23, %c0_24] : memref<32x32xf32, #tpu.memory_space<vmem>>, vector<32x32xf32>
    %c0_25 = arith.constant 0 : index
    %c0_26 = arith.constant 0 : index
    %31 = vector.load %arg13[%c0_25, %c0_26] : memref<1x16xf32, #tpu.memory_space<vmem>>, vector<1x16xf32>
    %cst_27 = arith.constant dense<0.000000e+00> : vector<8x48xf32>
    %32 = tpu.matmul %26, %29, %cst_27 {dimension_numbers = #tpu.dot_dimension_numbers<[1], [0], [0], [1], [0, 0, 1, 1], [], []>, precision = #tpu.contract_precision<fp32>} : vector<8x32xf32>, vector<32x48xf32>, vector<8x48xf32> -> vector<8x48xf32>
    %cst_28 = arith.constant dense<0.000000e+00> : vector<8x32xf32>
    %33 = tpu.matmul %28, %30, %cst_28 {dimension_numbers = #tpu.dot_dimension_numbers<[1], [0], [0], [1], [0, 0, 1, 1], [], []>, precision = #tpu.contract_precision<fp32>} : vector<8x32xf32>, vector<32x32xf32>, vector<8x32xf32> -> vector<8x32xf32>
    %34 = vector.extract_strided_slice %32 {offsets = [0, 0], sizes = [8, 16], strides = [1, 1]} : vector<8x48xf32> to vector<8x16xf32>
    %cst_29 = arith.constant dense<0.000000e+00> : vector<8x16xf32>
    %35 = tpu.matmul %0, %34, %cst_29 {dimension_numbers = #tpu.dot_dimension_numbers<[1], [0], [0], [1], [0, 0, 1, 1], [], []>, precision = #tpu.contract_precision<fp32>} : vector<8x8xf32>, vector<8x16xf32>, vector<8x16xf32> -> vector<8x16xf32>
    %36 = vector.extract_strided_slice %33 {offsets = [0, 0], sizes = [8, 16], strides = [1, 1]} : vector<8x32xf32> to vector<8x16xf32>
    %cst_30 = arith.constant dense<0.000000e+00> : vector<8x16xf32>
    %37 = tpu.matmul %1, %36, %cst_30 {dimension_numbers = #tpu.dot_dimension_numbers<[1], [0], [0], [1], [0, 0, 1, 1], [], []>, precision = #tpu.contract_precision<fp32>} : vector<8x8xf32>, vector<8x16xf32>, vector<8x16xf32> -> vector<8x16xf32>
    %38 = arith.addf %35, %37 : vector<8x16xf32>
    %39 = vector.extract_strided_slice %32 {offsets = [0, 32], sizes = [8, 16], strides = [1, 1]} : vector<8x48xf32> to vector<8x16xf32>
    %40 = arith.addf %38, %39 : vector<8x16xf32>
    %41 = vector.broadcast %31 : vector<1x16xf32> to vector<8x16xf32>
    %42 = arith.addf %40, %41 : vector<8x16xf32>
    %43 = vector.extract_strided_slice %32 {offsets = [0, 16], sizes = [8, 16], strides = [1, 1]} : vector<8x48xf32> to vector<8x16xf32>
    %cst_31 = arith.constant dense<0.000000e+00> : vector<8x16xf32>
    %44 = tpu.matmul %2, %43, %cst_31 {dimension_numbers = #tpu.dot_dimension_numbers<[1], [0], [0], [1], [0, 0, 1, 1], [], []>, precision = #tpu.contract_precision<fp32>} : vector<8x8xf32>, vector<8x16xf32>, vector<8x16xf32> -> vector<8x16xf32>
    %45 = vector.extract_strided_slice %33 {offsets = [0, 16], sizes = [8, 16], strides = [1, 1]} : vector<8x32xf32> to vector<8x16xf32>
    %46 = arith.addf %44, %45 : vector<8x16xf32>
    %47 = vector.broadcast %31 : vector<1x16xf32> to vector<8x16xf32>
    %48 = arith.addf %46, %47 : vector<8x16xf32>
    %cst_32 = arith.constant 0.000000e+00 : f32
    %49 = vector.broadcast %cst_32 : f32 to vector<8x16xf32>
    %50 = arith.maximumf %42, %49 : vector<8x16xf32>
    %cst_33 = arith.constant 0.000000e+00 : f32
    %51 = vector.broadcast %cst_33 : f32 to vector<8x16xf32>
    %52 = arith.maximumf %48, %51 : vector<8x16xf32>
    %c0_34 = arith.constant 0 : index
    %c0_35 = arith.constant 0 : index
    %53 = vector.load %arg6[%c0_34, %c0_35] : memref<2x8xf32, #tpu.memory_space<vmem>>, vector<2x8xf32>
    %cst_36 = arith.constant dense<0.000000e+00> : vector<2x16xf32>
    %54 = tpu.matmul %53, %50, %cst_36 {dimension_numbers = #tpu.dot_dimension_numbers<[1], [0], [0], [1], [0, 0, 1, 1], [], []>, precision = #tpu.contract_precision<fp32>} : vector<2x8xf32>, vector<8x16xf32>, vector<2x16xf32> -> vector<2x16xf32>
    %c0_37 = arith.constant 0 : index
    %c0_38 = arith.constant 0 : index
    %55 = vector.load %arg7[%c0_37, %c0_38] : memref<2x8xf32, #tpu.memory_space<vmem>>, vector<2x8xf32>
    %cst_39 = arith.constant dense<0.000000e+00> : vector<2x16xf32>
    %56 = tpu.matmul %55, %52, %cst_39 {dimension_numbers = #tpu.dot_dimension_numbers<[1], [0], [0], [1], [0, 0, 1, 1], [], []>, precision = #tpu.contract_precision<fp32>} : vector<2x8xf32>, vector<8x16xf32>, vector<2x16xf32> -> vector<2x16xf32>
    %57 = arith.addf %54, %56 : vector<2x16xf32>
    %c0_40 = arith.constant 0 : index
    %c0_41 = arith.constant 0 : index
    %58 = vector.load %arg14[%c0_40, %c0_41] : memref<16x1xf32, #tpu.memory_space<vmem>>, vector<16x1xf32>
    %cst_42 = arith.constant dense<0.000000e+00> : vector<2x1xf32>
    %59 = tpu.matmul %57, %58, %cst_42 {dimension_numbers = #tpu.dot_dimension_numbers<[1], [0], [0], [1], [0, 0, 1, 1], [], []>, precision = #tpu.contract_precision<fp32>} : vector<2x16xf32>, vector<16x1xf32>, vector<2x1xf32> -> vector<2x1xf32>
    %c0_43 = arith.constant 0 : index
    %c0_44 = arith.constant 0 : index
    %60 = vector.load %arg15[%c0_43, %c0_44] : memref<1x1xf32, #tpu.memory_space<vmem>>, vector<1x1xf32>
    %61 = vector.broadcast %60 : vector<1x1xf32> to vector<2x1xf32>
    %62 = arith.addf %59, %61 : vector<2x1xf32>
    %c0_45 = arith.constant 0 : index
    %c0_46 = arith.constant 0 : index
    %63 = vector.load %arg16[%c0_45, %c0_46] : memref<2x1xf32, #tpu.memory_space<vmem>>, vector<2x1xf32>
    tpu.vector_store %arg16[%c0_45, %c0_46], %62 {strides = array<i32>} : memref<2x1xf32, #tpu.memory_space<vmem>>, vector<2x1xf32>,
    return
  }
  func.func @transform_0(%arg0: i32) -> (i32, i32) {
    %c0_i32 = arith.constant 0 : i32
    %c0_i32_0 = arith.constant 0 : i32
    %c0_i32_1 = arith.constant 0 : i32
    return %c0_i32, %c0_i32_0 : i32, i32
  }
  func.func @transform_1(%arg0: i32) -> (i32, i32) {
    %c0_i32 = arith.constant 0 : i32
    %c0_i32_0 = arith.constant 0 : i32
    %c0_i32_1 = arith.constant 0 : i32
    return %c0_i32, %c0_i32_0 : i32, i32
  }
  func.func @transform_2(%arg0: i32) -> (i32, i32) {
    %c0_i32 = arith.constant 0 : i32
    %c0_i32_0 = arith.constant 0 : i32
    %c0_i32_1 = arith.constant 0 : i32
    return %c0_i32, %c0_i32_0 : i32, i32
  }
  func.func @transform_3(%arg0: i32) -> (i32, i32) {
    %c0_i32 = arith.constant 0 : i32
    %c0_i32_0 = arith.constant 0 : i32
    %c0_i32_1 = arith.constant 0 : i32
    return %c0_i32, %c0_i32_0 : i32, i32
  }
  func.func @transform_4(%arg0: i32) -> (i32, i32) {
    %c0_i32 = arith.constant 0 : i32
    %c0_i32_0 = arith.constant 0 : i32
    %c0_i32_1 = arith.constant 0 : i32
    return %c0_i32, %c0_i32_0 : i32, i32
  }
  func.func @transform_5(%arg0: i32) -> (i32, i32) {
    %c0_i32 = arith.constant 0 : i32
    %c0_i32_0 = arith.constant 0 : i32
    %c0_i32_1 = arith.constant 0 : i32
    return %c0_i32, %c0_i32_0 : i32, i32
  }
  func.func @transform_6(%arg0: i32) -> (i32, i32) {
    %c0_i32 = arith.constant 0 : i32
    %c0_i32_0 = arith.constant 0 : i32
    %c0_i32_1 = arith.constant 0 : i32
    return %c0_i32, %c0_i32_0 : i32, i32
  }
  func.func @transform_7(%arg0: i32) -> (i32, i32) {
    %c0_i32 = arith.constant 0 : i32
    %c0_i32_0 = arith.constant 0 : i32
    %c0_i32_1 = arith.constant 0 : i32
    return %c0_i32, %c0_i32_0 : i32, i32
  }
  func.func @transform_8(%arg0: i32) -> (i32, i32) {
    %c0_i32 = arith.constant 0 : i32
    %c0_i32_0 = arith.constant 0 : i32
    %c0_i32_1 = arith.constant 0 : i32
    return %c0_i32, %c0_i32_0 : i32, i32
  }
  func.func @transform_9(%arg0: i32) -> (i32, i32) {
    %c0_i32 = arith.constant 0 : i32
    %c0_i32_0 = arith.constant 0 : i32
    %c0_i32_1 = arith.constant 0 : i32
    return %c0_i32, %c0_i32_0 : i32, i32
  }
  func.func @transform_10(%arg0: i32) -> (i32, i32) {
    %c0_i32 = arith.constant 0 : i32
    %c0_i32_0 = arith.constant 0 : i32
    %c0_i32_1 = arith.constant 0 : i32
    return %c0_i32, %c0_i32_0 : i32, i32
  }
  func.func @transform_11(%arg0: i32) -> (i32, i32) {
    %c0_i32 = arith.constant 0 : i32
    %c0_i32_0 = arith.constant 0 : i32
    %c0_i32_1 = arith.constant 0 : i32
    return %c0_i32, %c0_i32_0 : i32, i32
  }
  func.func @transform_12(%arg0: i32) -> (i32, i32) {
    %c0_i32 = arith.constant 0 : i32
    %c0_i32_0 = arith.constant 0 : i32
    %c0_i32_1 = arith.constant 0 : i32
    return %c0_i32, %c0_i32_0 : i32, i32
  }
  func.func @transform_13(%arg0: i32) -> (i32, i32) {
    %c0_i32 = arith.constant 0 : i32
    %c0_i32_0 = arith.constant 0 : i32
    %c0_i32_1 = arith.constant 0 : i32
    return %c0_i32, %c0_i32_0 : i32, i32
  }
  func.func @transform_14(%arg0: i32) -> (i32, i32) {
    %c0_i32 = arith.constant 0 : i32
    %c0_i32_0 = arith.constant 0 : i32
    %c0_i32_1 = arith.constant 0 : i32
    return %c0_i32, %c0_i32_0 : i32, i32
  }
  func.func @transform_15(%arg0: i32) -> (i32, i32) {
    %c0_i32 = arith.constant 0 : i32
    %c0_i32_0 = arith.constant 0 : i32
    %c0_i32_1 = arith.constant 0 : i32
    return %c0_i32, %c0_i32_0 : i32, i32
  }
}

</mosaic_0001>

<llo_original>
// kernel: tpu_custom_call.1
$region0: #{tpu_custom_call.1}
  #allocation0 [shape = 'u32[]', space=smem, size = 0x4, offset = 0x4, fixed_abs, tag = 'smem constant byte address 0x4 - core index']
  #allocation1 [shape = 'u32[72,128]{1,0:T(1,128)}', space=vmem, size = 0x9000, scoped, tag = 'internal scratch']
  #allocation2 [shape = 'f32[1,1]{1,0:T(1,128)S(1)}', space=vmem, size = 0x200, scoped, tag = 'scoped memory for tpu_custom_call.1']
  %s0 = inlined_call_operand.vmem [shape: f32[8,768], index: 0, kind: input, shape index: {}]
  %s1 = inlined_call_operand.vmem [shape: f32[8,768], index: 1, kind: input, shape index: {}]
  %s2 = inlined_call_operand.vmem [shape: f32[8,8], index: 2, kind: input, shape index: {}]
  %s3 = inlined_call_operand.vmem [shape: f32[8,8], index: 3, kind: input, shape index: {}]
  %s4 = inlined_call_operand.vmem [shape: f32[8,8], index: 4, kind: input, shape index: {}]
  %s5 = inlined_call_operand.vmem [shape: f32[2,8], index: 5, kind: input, shape index: {}]
  %s6 = inlined_call_operand.vmem [shape: f32[2,8], index: 6, kind: input, shape index: {}]
  %s7 = inlined_call_operand.vmem [shape: f32[768,96], index: 7, kind: input, shape index: {}]
  %s8 = inlined_call_operand.vmem [shape: f32[768,64], index: 8, kind: input, shape index: {}]
  %s9 = inlined_call_operand.vmem [shape: f32[1,32], index: 9, kind: input, shape index: {}]
  %s10 = inlined_call_operand.vmem [shape: f32[32,48], index: 10, kind: input, shape index: {}]
  %s11 = inlined_call_operand.vmem [shape: f32[32,32], index: 11, kind: input, shape index: {}]
  %s12 = inlined_call_operand.vmem [shape: f32[1,16], index: 12, kind: input, shape index: {}]
  %s13 = inlined_call_operand.vmem [shape: f32[16,1], index: 13, kind: input, shape index: {}]
  %s14 = inlined_call_operand.<no memory space> [shape: f32[1,1], index: 14, kind: input, shape index: {}]
  %s15 = inlined_call_operand.vmem [shape: f32[2,1], index: 15, kind: output, shape index: {}]
  %s16 = sld [smem:[#allocation0]]
  $region70: #{tpu_custom_call.1} parent=0
    _
  %s18 = ssub.s32 1, %s16
  %s19 = scalar_select 0, %s18, %s16
  %v20 = vstv %s14
  %21 = vst [vmem:[#allocation2] sm:$0x1] %v20
  // Predicated region
  $region2: #{tpu_custom_call.1} parent=0 // pred_check
    _
  $region3: #{tpu_custom_call.1} parent=0 // pred_check_branch
    %23 = sbr.rel (0) target = $region5
  $region4: #{tpu_custom_call.1} parent=0 // pred_region
    _
  $region5: #{tpu_custom_call.1} parent=0 // pred_fallthru
    _
  // Predicated region
  $region6: #{tpu_custom_call.1} parent=0 // pred_check
    _
  $region7: #{tpu_custom_call.1} parent=0 // pred_check_branch
    %25 = sbr.rel (0) target = $region9
  $region8: #{tpu_custom_call.1} parent=0 // pred_region
    _
  $region9: #{tpu_custom_call.1} parent=0 // pred_fallthru
    _
  // Predicated region
  $region10: #{tpu_custom_call.1} parent=0 // pred_check
    _
  $region11: #{tpu_custom_call.1} parent=0 // pred_check_branch
    %27 = sbr.rel (0) target = $region13
  $region12: #{tpu_custom_call.1} parent=0 // pred_region
    _
  $region13: #{tpu_custom_call.1} parent=0 // pred_fallthru
    _
  // Predicated region
  $region14: #{tpu_custom_call.1} parent=0 // pred_check
    _
  $region15: #{tpu_custom_call.1} parent=0 // pred_check_branch
    %29 = sbr.rel (0) target = $region17
  $region16: #{tpu_custom_call.1} parent=0 // pred_region
    _
  $region17: #{tpu_custom_call.1} parent=0 // pred_fallthru
    _
  // Predicated region
  $region18: #{tpu_custom_call.1} parent=0 // pred_check
    _
  $region19: #{tpu_custom_call.1} parent=0 // pred_check_branch
    %31 = sbr.rel (0) target = $region21
  $region20: #{tpu_custom_call.1} parent=0 // pred_region
    _
  $region21: #{tpu_custom_call.1} parent=0 // pred_fallthru
    _
  // Predicated region
  $region22: #{tpu_custom_call.1} parent=0 // pred_check
    _
  $region23: #{tpu_custom_call.1} parent=0 // pred_check_branch
    %33 = sbr.rel (0) target = $region25
  $region24: #{tpu_custom_call.1} parent=0 // pred_region
    _
  $region25: #{tpu_custom_call.1} parent=0 // pred_fallthru
    _
  // Predicated region
  $region26: #{tpu_custom_call.1} parent=0 // pred_check
    _
  $region27: #{tpu_custom_call.1} parent=0 // pred_check_branch
    %35 = sbr.rel (0) target = $region29
  $region28: #{tpu_custom_call.1} parent=0 // pred_region
    _
  $region29: #{tpu_custom_call.1} parent=0 // pred_fallthru
    _
  // Predicated region
  $region30: #{tpu_custom_call.1} parent=0 // pred_check
    _
  $region31: #{tpu_custom_call.1} parent=0 // pred_check_branch
    %37 = sbr.rel (0) target = $region33
  $region32: #{tpu_custom_call.1} parent=0 // pred_region
    _
  $region33: #{tpu_custom_call.1} parent=0 // pred_fallthru
    _
  // Predicated region
  $region34: #{tpu_custom_call.1} parent=0 // pred_check
    _
  $region35: #{tpu_custom_call.1} parent=0 // pred_check_branch
    %39 = sbr.rel (0) target = $region37
  $region36: #{tpu_custom_call.1} parent=0 // pred_region
    _
  $region37: #{tpu_custom_call.1} parent=0 // pred_fallthru
    _
  // Predicated region
  $region38: #{tpu_custom_call.1} parent=0 // pred_check
    _
  $region39: #{tpu_custom_call.1} parent=0 // pred_check_branch
    %41 = sbr.rel (0) target = $region41
  $region40: #{tpu_custom_call.1} parent=0 // pred_region
    _
  $region41: #{tpu_custom_call.1} parent=0 // pred_fallthru
    _
  // Predicated region
  $region42: #{tpu_custom_call.1} parent=0 // pred_check
    _
  $region43: #{tpu_custom_call.1} parent=0 // pred_check_branch
    %43 = sbr.rel (0) target = $region45
  $region44: #{tpu_custom_call.1} parent=0 // pred_region
    _
  $region45: #{tpu_custom_call.1} parent=0 // pred_fallthru
    _
  // Predicated region
  $region46: #{tpu_custom_call.1} parent=0 // pred_check
    _
  $region47: #{tpu_custom_call.1} parent=0 // pred_check_branch
    %45 = sbr.rel (0) target = $region49
  $region48: #{tpu_custom_call.1} parent=0 // pred_region
    _
  $region49: #{tpu_custom_call.1} parent=0 // pred_fallthru
    _
  // Predicated region
  $region50: #{tpu_custom_call.1} parent=0 // pred_check
    _
  $region51: #{tpu_custom_call.1} parent=0 // pred_check_branch
    %47 = sbr.rel (0) target = $region53
  $region52: #{tpu_custom_call.1} parent=0 // pred_region
    _
  $region53: #{tpu_custom_call.1} parent=0 // pred_fallthru
    _
  // Predicated region
  $region54: #{tpu_custom_call.1} parent=0 // pred_check
    _
  $region55: #{tpu_custom_call.1} parent=0 // pred_check_branch
    %49 = sbr.rel (0) target = $region57
  $region56: #{tpu_custom_call.1} parent=0 // pred_region
    _
  $region57: #{tpu_custom_call.1} parent=0 // pred_fallthru
    _
  // Predicated region
  $region58: #{tpu_custom_call.1} parent=0 // pred_check
    _
  $region59: #{tpu_custom_call.1} parent=0 // pred_check_branch
    %51 = sbr.rel (0) target = $region61
  $region60: #{tpu_custom_call.1} parent=0 // pred_region
    _
  $region61: #{tpu_custom_call.1} parent=0 // pred_fallthru
    _
  %v52 = vld [vmem:[%s2] sm:$0xff]
  %v53 = vld [vmem:[%s3] sm:$0xff]
  %v54 = vld [vmem:[%s4] sm:$0xff]
  %v55 = vld [vmem:[%s0] sm:$0xff]
  %v56 = vld [vmem:[%s0 + $0x8] sm:$0xff]
  %v57 = vld [vmem:[%s0 + $0x10] sm:$0xff]
  %v58 = vld [vmem:[%s0 + $0x18] sm:$0xff]
  %v59 = vld [vmem:[%s0 + $0x20] sm:$0xff]
  %v60 = vld [vmem:[%s0 + $0x28] sm:$0xff]
  %v61 = vld [vmem:[%s1] sm:$0xff]
  %v62 = vld [vmem:[%s1 + $0x8] sm:$0xff]
  %v63 = vld [vmem:[%s1 + $0x10] sm:$0xff]
  %v64 = vld [vmem:[%s1 + $0x18] sm:$0xff]
  %v65 = vld [vmem:[%s1 + $0x20] sm:$0xff]
  %v66 = vld [vmem:[%s1 + $0x28] sm:$0xff]
  %v67 = vld [vmem:[%s7] sm:$0xff]
  %v68 = vld [vmem:[%s7 + $0x8] sm:$0xff]
  %v69 = vld [vmem:[%s7 + $0x10] sm:$0xff]
  %v70 = vld [vmem:[%s7 + $0x18] sm:$0xff]
  %v71 = vld [vmem:[%s7 + $0x20] sm:$0xff]
  %v72 = vld [vmem:[%s7 + $0x28] sm:$0xff]
  %v73 = vld [vmem:[%s7 + $0x30] sm:$0xff]
  %v74 = vld [vmem:[%s7 + $0x38] sm:$0xff]
  %v75 = vld [vmem:[%s7 + $0x40] sm:$0xff]
  %v76 = vld [vmem:[%s7 + $0x48] sm:$0xff]
  %v77 = vld [vmem:[%s7 + $0x50] sm:$0xff]
  %v78 = vld [vmem:[%s7 + $0x58] sm:$0xff]
  %v79 = vld [vmem:[%s7 + $0x60] sm:$0xff]
  %v80 = vld [vmem:[%s7 + $0x68] sm:$0xff]
  %v81 = vld [vmem:[%s7 + $0x70] sm:$0xff]
  %v82 = vld [vmem:[%s7 + $0x78] sm:$0xff]
  %v83 = vld [vmem:[%s7 + $0x80] sm:$0xff]
  %v84 = vld [vmem:[%s7 + $0x88] sm:$0xff]
  %v85 = vld [vmem:[%s7 + $0x90] sm:$0xff]
  %v86 = vld [vmem:[%s7 + $0x98] sm:$0xff]
  %v87 = vld [vmem:[%s7 + $0xa0] sm:$0xff]
  %v88 = vld [vmem:[%s7 + $0xa8] sm:$0xff]
  %v89 = vld [vmem:[%s7 + $0xb0] sm:$0xff]
  %v90 = vld [vmem:[%s7 + $0xb8] sm:$0xff]
  %v91 = vld [vmem:[%s7 + $0xc0] sm:$0xff]
  %v92 = vld [vmem:[%s7 + $0xc8] sm:$0xff]
  %v93 = vld [vmem:[%s7 + $0xd0] sm:$0xff]
  %v94 = vld [vmem:[%s7 + $0xd8] sm:$0xff]
  %v95 = vld [vmem:[%s7 + $0xe0] sm:$0xff]
  %v96 = vld [vmem:[%s7 + $0xe8] sm:$0xff]
  %v97 = vld [vmem:[%s7 + $0xf0] sm:$0xff]
  %v98 = vld [vmem:[%s7 + $0xf8] sm:$0xff]
  %v99 = vld [vmem:[%s7 + $0x100] sm:$0xff]
  %v100 = vld [vmem:[%s7 + $0x108] sm:$0xff]
  %v101 = vld [vmem:[%s7 + $0x110] sm:$0xff]
  %v102 = vld [vmem:[%s7 + $0x118] sm:$0xff]
  %v103 = vld [vmem:[%s7 + $0x120] sm:$0xff]
  %v104 = vld [vmem:[%s7 + $0x128] sm:$0xff]
  %v105 = vld [vmem:[%s7 + $0x130] sm:$0xff]
  %v106 = vld [vmem:[%s7 + $0x138] sm:$0xff]
  %v107 = vld [vmem:[%s7 + $0x140] sm:$0xff]
  %v108 = vld [vmem:[%s7 + $0x148] sm:$0xff]
  %v109 = vld [vmem:[%s7 + $0x150] sm:$0xff]
  %v110 = vld [vmem:[%s7 + $0x158] sm:$0xff]
  %v111 = vld [vmem:[%s7 + $0x160] sm:$0xff]
  %v112 = vld [vmem:[%s7 + $0x168] sm:$0xff]
  %v113 = vld [vmem:[%s7 + $0x170] sm:$0xff]
  %v114 = vld [vmem:[%s7 + $0x178] sm:$0xff]
  %v115 = vld [vmem:[%s7 + $0x180] sm:$0xff]
  %v116 = vld [vmem:[%s7 + $0x188] sm:$0xff]
  %v117 = vld [vmem:[%s7 + $0x190] sm:$0xff]
  %v118 = vld [vmem:[%s7 + $0x198] sm:$0xff]
  %v119 = vld [vmem:[%s7 + $0x1a0] sm:$0xff]
  %v120 = vld [vmem:[%s7 + $0x1a8] sm:$0xff]
  %v121 = vld [vmem:[%s7 + $0x1b0] sm:$0xff]
  %v122 = vld [vmem:[%s7 + $0x1b8] sm:$0xff]
  %v123 = vld [vmem:[%s7 + $0x1c0] sm:$0xff]
  %v124 = vld [vmem:[%s7 + $0x1c8] sm:$0xff]
  %v125 = vld [vmem:[%s7 + $0x1d0] sm:$0xff]
  %v126 = vld [vmem:[%s7 + $0x1d8] sm:$0xff]
  %v127 = vld [vmem:[%s7 + $0x1e0] sm:$0xff]
  %v128 = vld [vmem:[%s7 + $0x1e8] sm:$0xff]
  %v129 = vld [vmem:[%s7 + $0x1f0] sm:$0xff]
  %v130 = vld [vmem:[%s7 + $0x1f8] sm:$0xff]
  %v131 = vld [vmem:[%s7 + $0x200] sm:$0xff]
  %v132 = vld [vmem:[%s7 + $0x208] sm:$0xff]
  %v133 = vld [vmem:[%s7 + $0x210] sm:$0xff]
  %v134 = vld [vmem:[%s7 + $0x218] sm:$0xff]
  %v135 = vld [vmem:[%s7 + $0x220] sm:$0xff]
  %v136 = vld [vmem:[%s7 + $0x228] sm:$0xff]
  %v137 = vld [vmem:[%s7 + $0x230] sm:$0xff]
  %v138 = vld [vmem:[%s7 + $0x238] sm:$0xff]
  %v139 = vld [vmem:[%s7 + $0x240] sm:$0xff]
  %v140 = vld [vmem:[%s7 + $0x248] sm:$0xff]
  %v141 = vld [vmem:[%s7 + $0x250] sm:$0xff]
  %v142 = vld [vmem:[%s7 + $0x258] sm:$0xff]
  %v143 = vld [vmem:[%s7 + $0x260] sm:$0xff]
  %v144 = vld [vmem:[%s7 + $0x268] sm:$0xff]
  %v145 = vld [vmem:[%s7 + $0x270] sm:$0xff]
  %v146 = vld [vmem:[%s7 + $0x278] sm:$0xff]
  %v147 = vld [vmem:[%s7 + $0x280] sm:$0xff]
  %v148 = vld [vmem:[%s7 + $0x288] sm:$0xff]
  %v149 = vld [vmem:[%s7 + $0x290] sm:$0xff]
  %v150 = vld [vmem:[%s7 + $0x298] sm:$0xff]
  %v151 = vld [vmem:[%s7 + $0x2a0] sm:$0xff]
  %v152 = vld [vmem:[%s7 + $0x2a8] sm:$0xff]
  %v153 = vld [vmem:[%s7 + $0x2b0] sm:$0xff]
  %v154 = vld [vmem:[%s7 + $0x2b8] sm:$0xff]
  %v155 = vld [vmem:[%s7 + $0x2c0] sm:$0xff]
  %v156 = vld [vmem:[%s7 + $0x2c8] sm:$0xff]
  %v157 = vld [vmem:[%s7 + $0x2d0] sm:$0xff]
  %v158 = vld [vmem:[%s7 + $0x2d8] sm:$0xff]
  %v159 = vld [vmem:[%s7 + $0x2e0] sm:$0xff]
  %v160 = vld [vmem:[%s7 + $0x2e8] sm:$0xff]
  %v161 = vld [vmem:[%s7 + $0x2f0] sm:$0xff]
  %v162 = vld [vmem:[%s7 + $0x2f8] sm:$0xff]
  %v163 = vld [vmem:[%s8] sm:$0xff]
  %v164 = vld [vmem:[%s8 + $0x8] sm:$0xff]
  %v165 = vld [vmem:[%s8 + $0x10] sm:$0xff]
  %v166 = vld [vmem:[%s8 + $0x18] sm:$0xff]
  %v167 = vld [vmem:[%s8 + $0x20] sm:$0xff]
  %v168 = vld [vmem:[%s8 + $0x28] sm:$0xff]
  %v169 = vld [vmem:[%s8 + $0x30] sm:$0xff]
  %v170 = vld [vmem:[%s8 + $0x38] sm:$0xff]
  %v171 = vld [vmem:[%s8 + $0x40] sm:$0xff]
  %v172 = vld [vmem:[%s8 + $0x48] sm:$0xff]
  %v173 = vld [vmem:[%s8 + $0x50] sm:$0xff]
  %v174 = vld [vmem:[%s8 + $0x58] sm:$0xff]
  %v175 = vld [vmem:[%s8 + $0x60] sm:$0xff]
  %v176 = vld [vmem:[%s8 + $0x68] sm:$0xff]
  %v177 = vld [vmem:[%s8 + $0x70] sm:$0xff]
  %v178 = vld [vmem:[%s8 + $0x78] sm:$0xff]
  %v179 = vld [vmem:[%s8 + $0x80] sm:$0xff]
  %v180 = vld [vmem:[%s8 + $0x88] sm:$0xff]
  %v181 = vld [vmem:[%s8 + $0x90] sm:$0xff]
  %v182 = vld [vmem:[%s8 + $0x98] sm:$0xff]
  %v183 = vld [vmem:[%s8 + $0xa0] sm:$0xff]
  %v184 = vld [vmem:[%s8 + $0xa8] sm:$0xff]
  %v185 = vld [vmem:[%s8 + $0xb0] sm:$0xff]
  %v186 = vld [vmem:[%s8 + $0xb8] sm:$0xff]
  %v187 = vld [vmem:[%s8 + $0xc0] sm:$0xff]
  %v188 = vld [vmem:[%s8 + $0xc8] sm:$0xff]
  %v189 = vld [vmem:[%s8 + $0xd0] sm:$0xff]
  %v190 = vld [vmem:[%s8 + $0xd8] sm:$0xff]
  %v191 = vld [vmem:[%s8 + $0xe0] sm:$0xff]
  %v192 = vld [vmem:[%s8 + $0xe8] sm:$0xff]
  %v193 = vld [vmem:[%s8 + $0xf0] sm:$0xff]
  %v194 = vld [vmem:[%s8 + $0xf8] sm:$0xff]
  %v195 = vld [vmem:[%s8 + $0x100] sm:$0xff]
  %v196 = vld [vmem:[%s8 + $0x108] sm:$0xff]
  %v197 = vld [vmem:[%s8 + $0x110] sm:$0xff]
  %v198 = vld [vmem:[%s8 + $0x118] sm:$0xff]
  %v199 = vld [vmem:[%s8 + $0x120] sm:$0xff]
  %v200 = vld [vmem:[%s8 + $0x128] sm:$0xff]
  %v201 = vld [vmem:[%s8 + $0x130] sm:$0xff]
  %v202 = vld [vmem:[%s8 + $0x138] sm:$0xff]
  %v203 = vld [vmem:[%s8 + $0x140] sm:$0xff]
  %v204 = vld [vmem:[%s8 + $0x148] sm:$0xff]
  %v205 = vld [vmem:[%s8 + $0x150] sm:$0xff]
  %v206 = vld [vmem:[%s8 + $0x158] sm:$0xff]
  %v207 = vld [vmem:[%s8 + $0x160] sm:$0xff]
  %v208 = vld [vmem:[%s8 + $0x168] sm:$0xff]
  %v209 = vld [vmem:[%s8 + $0x170] sm:$0xff]
  %v210 = vld [vmem:[%s8 + $0x178] sm:$0xff]
  %v211 = vld [vmem:[%s8 + $0x180] sm:$0xff]
  %v212 = vld [vmem:[%s8 + $0x188] sm:$0xff]
  %v213 = vld [vmem:[%s8 + $0x190] sm:$0xff]
  %v214 = vld [vmem:[%s8 + $0x198] sm:$0xff]
  %v215 = vld [vmem:[%s8 + $0x1a0] sm:$0xff]
  %v216 = vld [vmem:[%s8 + $0x1a8] sm:$0xff]
  %v217 = vld [vmem:[%s8 + $0x1b0] sm:$0xff]
  %v218 = vld [vmem:[%s8 + $0x1b8] sm:$0xff]
  %v219 = vld [vmem:[%s8 + $0x1c0] sm:$0xff]
  %v220 = vld [vmem:[%s8 + $0x1c8] sm:$0xff]
  %v221 = vld [vmem:[%s8 + $0x1d0] sm:$0xff]
  %v222 = vld [vmem:[%s8 + $0x1d8] sm:$0xff]
  %v223 = vld [vmem:[%s8 + $0x1e0] sm:$0xff]
  %v224 = vld [vmem:[%s8 + $0x1e8] sm:$0xff]
  %v225 = vld [vmem:[%s8 + $0x1f0] sm:$0xff]
  %v226 = vld [vmem:[%s8 + $0x1f8] sm:$0xff]
  %v227 = vld [vmem:[%s8 + $0x200] sm:$0xff]
  %v228 = vld [vmem:[%s8 + $0x208] sm:$0xff]
  %v229 = vld [vmem:[%s8 + $0x210] sm:$0xff]
  %v230 = vld [vmem:[%s8 + $0x218] sm:$0xff]
  %v231 = vld [vmem:[%s8 + $0x220] sm:$0xff]
  %v232 = vld [vmem:[%s8 + $0x228] sm:$0xff]
  %v233 = vld [vmem:[%s8 + $0x230] sm:$0xff]
  %v234 = vld [vmem:[%s8 + $0x238] sm:$0xff]
  %v235 = vld [vmem:[%s8 + $0x240] sm:$0xff]
  %v236 = vld [vmem:[%s8 + $0x248] sm:$0xff]
  %v237 = vld [vmem:[%s8 + $0x250] sm:$0xff]
  %v238 = vld [vmem:[%s8 + $0x258] sm:$0xff]
  %v239 = vld [vmem:[%s8 + $0x260] sm:$0xff]
  %v240 = vld [vmem:[%s8 + $0x268] sm:$0xff]
  %v241 = vld [vmem:[%s8 + $0x270] sm:$0xff]
  %v242 = vld [vmem:[%s8 + $0x278] sm:$0xff]
  %v243 = vld [vmem:[%s8 + $0x280] sm:$0xff]
  %v244 = vld [vmem:[%s8 + $0x288] sm:$0xff]
  %v245 = vld [vmem:[%s8 + $0x290] sm:$0xff]
  %v246 = vld [vmem:[%s8 + $0x298] sm:$0xff]
  %v247 = vld [vmem:[%s8 + $0x2a0] sm:$0xff]
  %v248 = vld [vmem:[%s8 + $0x2a8] sm:$0xff]
  %v249 = vld [vmem:[%s8 + $0x2b0] sm:$0xff]
  %v250 = vld [vmem:[%s8 + $0x2b8] sm:$0xff]
  %v251 = vld [vmem:[%s8 + $0x2c0] sm:$0xff]
  %v252 = vld [vmem:[%s8 + $0x2c8] sm:$0xff]
  %v253 = vld [vmem:[%s8 + $0x2d0] sm:$0xff]
  %v254 = vld [vmem:[%s8 + $0x2d8] sm:$0xff]
  %v255 = vld [vmem:[%s8 + $0x2e0] sm:$0xff]
  %v256 = vld [vmem:[%s8 + $0x2e8] sm:$0xff]
  %v257 = vld [vmem:[%s8 + $0x2f0] sm:$0xff]
  %v258 = vld [vmem:[%s8 + $0x2f8] sm:$0xff]
  %v259 = vld [vmem:[%s9] sm:$0x1]
  %v260 = vand.u32 %v82, 4294901760
  %261 = vmatpush.msra.mxu0 %v260
  %v262 = vand.u32 %v81, 4294901760
  %263 = vmatpush.msra.mxu0 %v262
  %v264 = vand.u32 %v80, 4294901760
  %265 = vmatpush.msra.mxu0 %v264
  %v266 = vand.u32 %v79, 4294901760
  %267 = vmatpush.msra.mxu0 %v266
  %v268 = vand.u32 %v78, 4294901760
  %269 = vmatpush.msra.mxu0 %v268
  %v270 = vand.u32 %v77, 4294901760
  %271 = vmatpush.msra.mxu0 %v270
  %v272 = vand.u32 %v76, 4294901760
  %273 = vmatpush.msra.mxu0 %v272
  %v274 = vand.u32 %v75, 4294901760
  %275 = vmatpush.msra.mxu0 %v274
  %v276 = vand.u32 %v74, 4294901760
  %277 = vmatpush.msra.mxu0 %v276
  %v278 = vand.u32 %v73, 4294901760
  %279 = vmatpush.msra.mxu0 %v278
  %v280 = vand.u32 %v72, 4294901760
  %281 = vmatpush.msra.mxu0 %v280
  %v282 = vand.u32 %v71, 4294901760
  %283 = vmatpush.msra.mxu0 %v282
  %v284 = vand.u32 %v70, 4294901760
  %285 = vmatpush.msra.mxu0 %v284
  %v286 = vand.u32 %v69, 4294901760
  %287 = vmatpush.msra.mxu0 %v286
  %v288 = vand.u32 %v68, 4294901760
  %289 = vmatpush.msra.mxu0 %v288
  %v290 = vand.u32 %v67, 4294901760
  %291 = vmatpush.msra.mxu0 %v290
  %v292 = vand.u32 %v55, 4294901760
  %v293 = vsub.f32 %v55, %v292
  %v294 = vand.u32 %v293, 4294901760
  %v295 = vsub.f32 %v293, %v294
  %v296 = vand.u32 %v295, 4294901760
  %297 = vmatmul.f32.gmra.mxu0 %v296
  %v298 = vpop.f32.mrf.mxu0
  %v299 = vadd.f32 0.0, %v298
  %300 = vdwg.mxu0
  %v301 = vand.u32 %v82, 4294901760
  %v302 = vsub.f32 %v82, %v301
  %v303 = vand.u32 %v302, 4294901760
  %v304 = vsub.f32 %v302, %v303
  %v305 = vand.u32 %v304, 4294901760
  %306 = vmatpush.msra.mxu0 %v305
  %v307 = vand.u32 %v81, 4294901760
  %v308 = vsub.f32 %v81, %v307
  %v309 = vand.u32 %v308, 4294901760
  %v310 = vsub.f32 %v308, %v309
  %v311 = vand.u32 %v310, 4294901760
  %312 = vmatpush.msra.mxu0 %v311
  %v313 = vand.u32 %v80, 4294901760
  %v314 = vsub.f32 %v80, %v313
  %v315 = vand.u32 %v314, 4294901760
  %v316 = vsub.f32 %v314, %v315
  %v317 = vand.u32 %v316, 4294901760
  %318 = vmatpush.msra.mxu0 %v317
  %v319 = vand.u32 %v79, 4294901760
  %v320 = vsub.f32 %v79, %v319
  %v321 = vand.u32 %v320, 4294901760
  %v322 = vsub.f32 %v320, %v321
  %v323 = vand.u32 %v322, 4294901760
  %324 = vmatpush.msra.mxu0 %v323
  %v325 = vand.u32 %v78, 4294901760
  %v326 = vsub.f32 %v78, %v325
  %v327 = vand.u32 %v326, 4294901760
  %v328 = vsub.f32 %v326, %v327
  %v329 = vand.u32 %v328, 4294901760
  %330 = vmatpush.msra.mxu0 %v329
  %v331 = vand.u32 %v77, 4294901760
  %v332 = vsub.f32 %v77, %v331
  %v333 = vand.u32 %v332, 4294901760
  %v334 = vsub.f32 %v332, %v333
  %v335 = vand.u32 %v334, 4294901760
  %336 = vmatpush.msra.mxu0 %v335
  %v337 = vand.u32 %v76, 4294901760
  %v338 = vsub.f32 %v76, %v337
  %v339 = vand.u32 %v338, 4294901760
  %v340 = vsub.f32 %v338, %v339
  %v341 = vand.u32 %v340, 4294901760
  %342 = vmatpush.msra.mxu0 %v341
  %v343 = vand.u32 %v75, 4294901760
  %v344 = vsub.f32 %v75, %v343
  %v345 = vand.u32 %v344, 4294901760
  %v346 = vsub.f32 %v344, %v345
  %v347 = vand.u32 %v346, 4294901760
  %348 = vmatpush.msra.mxu0 %v347
  %v349 = vand.u32 %v74, 4294901760
  %v350 = vsub.f32 %v74, %v349
  %v351 = vand.u32 %v350, 4294901760
  %v352 = vsub.f32 %v350, %v351
  %v353 = vand.u32 %v352, 4294901760
  %354 = vmatpush.msra.mxu0 %v353
  %v355 = vand.u32 %v73, 4294901760
  %v356 = vsub.f32 %v73, %v355
  %v357 = vand.u32 %v356, 4294901760
  %v358 = vsub.f32 %v356, %v357
  %v359 = vand.u32 %v358, 4294901760
  %360 = vmatpush.msra.mxu0 %v359
  %v361 = vand.u32 %v72, 4294901760
  %v362 = vsub.f32 %v72, %v361
  %v363 = vand.u32 %v362, 4294901760
  %v364 = vsub.f32 %v362, %v363
  %v365 = vand.u32 %v364, 4294901760
  %366 = vmatpush.msra.mxu0 %v365
  %v367 = vand.u32 %v71, 4294901760
  %v368 = vsub.f32 %v71, %v367
  %v369 = vand.u32 %v368, 4294901760
  %v370 = vsub.f32 %v368, %v369
  %v371 = vand.u32 %v370, 4294901760
  %372 = vmatpush.msra.mxu0 %v371
  %v373 = vand.u32 %v70, 4294901760
  %v374 = vsub.f32 %v70, %v373
  %v375 = vand.u32 %v374, 4294901760
  %v376 = vsub.f32 %v374, %v375
  %v377 = vand.u32 %v376, 4294901760
  %378 = vmatpush.msra.mxu0 %v377
  %v379 = vand.u32 %v69, 4294901760
  %v380 = vsub.f32 %v69, %v379
  %v381 = vand.u32 %v380, 4294901760
  %v382 = vsub.f32 %v380, %v381
  %v383 = vand.u32 %v382, 4294901760
  %384 = vmatpush.msra.mxu0 %v383
  %v385 = vand.u32 %v68, 4294901760
  %v386 = vsub.f32 %v68, %v385
  %v387 = vand.u32 %v386, 4294901760
  %v388 = vsub.f32 %v386, %v387
  %v389 = vand.u32 %v388, 4294901760
  %390 = vmatpush.msra.mxu0 %v389
  %v391 = vand.u32 %v67, 4294901760
  %v392 = vsub.f32 %v67, %v391
  %v393 = vand.u32 %v392, 4294901760
  %v394 = vsub.f32 %v392, %v393
  %v395 = vand.u32 %v394, 4294901760
  %396 = vmatpush.msra.mxu0 %v395
  %v397 = vand.u32 %v55, 4294901760
  %398 = vmatmul.f32.gmra.mxu0 %v397
  %v399 = vpop.f32.mrf.mxu0
  %v400 = vadd.f32 %v299, %v399
  %401 = vdwg.mxu0
  %v402 = vand.u32 %v82, 4294901760
  %v403 = vsub.f32 %v82, %v402
  %404 = vmatpush.msra.mxu0 %v403
  %v405 = vand.u32 %v81, 4294901760
  %v406 = vsub.f32 %v81, %v405
  %407 = vmatpush.msra.mxu0 %v406
  %v408 = vand.u32 %v80, 4294901760
  %v409 = vsub.f32 %v80, %v408
  %410 = vmatpush.msra.mxu0 %v409
  %v411 = vand.u32 %v79, 4294901760
  %v412 = vsub.f32 %v79, %v411
  %413 = vmatpush.msra.mxu0 %v412
  %v414 = vand.u32 %v78, 4294901760
  %v415 = vsub.f32 %v78, %v414
  %416 = vmatpush.msra.mxu0 %v415
  %v417 = vand.u32 %v77, 4294901760
  %v418 = vsub.f32 %v77, %v417
  %419 = vmatpush.msra.mxu0 %v418
  %v420 = vand.u32 %v76, 4294901760
  %v421 = vsub.f32 %v76, %v420
  %422 = vmatpush.msra.mxu0 %v421
  %v423 = vand.u32 %v75, 4294901760
  %v424 = vsub.f32 %v75, %v423
  %425 = vmatpush.msra.mxu0 %v424
  %v426 = vand.u32 %v74, 4294901760
  %v427 = vsub.f32 %v74, %v426
  %428 = vmatpush.msra.mxu0 %v427
  %v429 = vand.u32 %v73, 4294901760
  %v430 = vsub.f32 %v73, %v429
  %431 = vmatpush.msra.mxu0 %v430
  %v432 = vand.u32 %v72, 4294901760
  %v433 = vsub.f32 %v72, %v432
  %434 = vmatpush.msra.mxu0 %v433
  %v435 = vand.u32 %v71, 4294901760
  %v436 = vsub.f32 %v71, %v435
  %437 = vmatpush.msra.mxu0 %v436
  %v438 = vand.u32 %v70, 4294901760
  %v439 = vsub.f32 %v70, %v438
  %440 = vmatpush.msra.mxu0 %v439
  %v441 = vand.u32 %v69, 4294901760
  %v442 = vsub.f32 %v69, %v441
  %443 = vmatpush.msra.mxu0 %v442
  %v444 = vand.u32 %v68, 4294901760
  %v445 = vsub.f32 %v68, %v444
  %446 = vmatpush.msra.mxu0 %v445
  %v447 = vand.u32 %v67, 4294901760
  %v448 = vsub.f32 %v67, %v447
  %449 = vmatpush.msra.mxu0 %v448
  %v450 = vand.u32 %v55, 4294901760
  %v451 = vsub.f32 %v55, %v450
  %452 = vmatmul.f32.gmra.mxu0 %v451
  %v453 = vpop.f32.mrf.mxu0
  %v454 = vadd.f32 %v400, %v453
  %455 = vdwg.mxu0
  %v456 = vand.u32 %v82, 4294901760
  %457 = vmatpush.msra.mxu0 %v456
  %v458 = vand.u32 %v81, 4294901760
  %459 = vmatpush.msra.mxu0 %v458
  %v460 = vand.u32 %v80, 4294901760
  %461 = vmatpush.msra.mxu0 %v460
  %v462 = vand.u32 %v79, 4294901760
  %463 = vmatpush.msra.mxu0 %v462
  %v464 = vand.u32 %v78, 4294901760
  %465 = vmatpush.msra.mxu0 %v464
  %v466 = vand.u32 %v77, 4294901760
  %467 = vmatpush.msra.mxu0 %v466
  %v468 = vand.u32 %v76, 4294901760
  %469 = vmatpush.msra.mxu0 %v468
  %v470 = vand.u32 %v75, 4294901760
  %471 = vmatpush.msra.mxu0 %v470
  %v472 = vand.u32 %v74, 4294901760
  %473 = vmatpush.msra.mxu0 %v472
  %v474 = vand.u32 %v73, 4294901760
  %475 = vmatpush.msra.mxu0 %v474
  %v476 = vand.u32 %v72, 4294901760
  %477 = vmatpush.msra.mxu0 %v476
  %v478 = vand.u32 %v71, 4294901760
  %479 = vmatpush.msra.mxu0 %v478
  %v480 = vand.u32 %v70, 4294901760
  %481 = vmatpush.msra.mxu0 %v480
  %v482 = vand.u32 %v69, 4294901760
  %483 = vmatpush.msra.mxu0 %v482
  %v484 = vand.u32 %v68, 4294901760
  %485 = vmatpush.msra.mxu0 %v484
  %v486 = vand.u32 %v67, 4294901760
  %487 = vmatpush.msra.mxu0 %v486
  %v488 = vand.u32 %v55, 4294901760
  %v489 = vsub.f32 %v55, %v488
  %v490 = vand.u32 %v489, 4294901760
  %491 = vmatmul.f32.gmra.mxu0 %v490
  %v492 = vpop.f32.mrf.mxu0
  %v493 = vadd.f32 %v454, %v492
  %494 = vdwg.mxu0
  %v495 = vand.u32 %v82, 4294901760
  %v496 = vsub.f32 %v82, %v495
  %v497 = vand.u32 %v496, 4294901760
  %498 = vmatpush.msra.mxu0 %v497
  %v499 = vand.u32 %v81, 4294901760
  %v500 = vsub.f32 %v81, %v499
  %v501 = vand.u32 %v500, 4294901760
  %502 = vmatpush.msra.mxu0 %v501
  %v503 = vand.u32 %v80, 4294901760
  %v504 = vsub.f32 %v80, %v503
  %v505 = vand.u32 %v504, 4294901760
  %506 = vmatpush.msra.mxu0 %v505
  %v507 = vand.u32 %v79, 4294901760
  %v508 = vsub.f32 %v79, %v507
  %v509 = vand.u32 %v508, 4294901760
  %510 = vmatpush.msra.mxu0 %v509
  %v511 = vand.u32 %v78, 4294901760
  %v512 = vsub.f32 %v78, %v511
  %v513 = vand.u32 %v512, 4294901760
  %514 = vmatpush.msra.mxu0 %v513
  %v515 = vand.u32 %v77, 4294901760
  %v516 = vsub.f32 %v77, %v515
  %v517 = vand.u32 %v516, 4294901760
  %518 = vmatpush.msra.mxu0 %v517
  %v519 = vand.u32 %v76, 4294901760
  %v520 = vsub.f32 %v76, %v519
  %v521 = vand.u32 %v520, 4294901760
  %522 = vmatpush.msra.mxu0 %v521
  %v523 = vand.u32 %v75, 4294901760
  %v524 = vsub.f32 %v75, %v523
  %v525 = vand.u32 %v524, 4294901760
  %526 = vmatpush.msra.mxu0 %v525
  %v527 = vand.u32 %v74, 4294901760
  %v528 = vsub.f32 %v74, %v527
  %v529 = vand.u32 %v528, 4294901760
  %530 = vmatpush.msra.mxu0 %v529
  %v531 = vand.u32 %v73, 4294901760
  %v532 = vsub.f32 %v73, %v531
  %v533 = vand.u32 %v532, 4294901760
  %534 = vmatpush.msra.mxu0 %v533
  %v535 = vand.u32 %v72, 4294901760
  %v536 = vsub.f32 %v72, %v535
  %v537 = vand.u32 %v536, 4294901760
  %538 = vmatpush.msra.mxu0 %v537
  %v539 = vand.u32 %v71, 4294901760
  %v540 = vsub.f32 %v71, %v539
  %v541 = vand.u32 %v540, 4294901760
  %542 = vmatpush.msra.mxu0 %v541
  %v543 = vand.u32 %v70, 4294901760
  %v544 = vsub.f32 %v70, %v543
  %v545 = vand.u32 %v544, 4294901760
  %546 = vmatpush.msra.mxu0 %v545
  %v547 = vand.u32 %v69, 4294901760
  %v548 = vsub.f32 %v69, %v547
  %v549 = vand.u32 %v548, 4294901760
  %550 = vmatpush.msra.mxu0 %v549
  %v551 = vand.u32 %v68, 4294901760
  %v552 = vsub.f32 %v68, %v551
  %v553 = vand.u32 %v552, 4294901760
  %554 = vmatpush.msra.mxu0 %v553
  %v555 = vand.u32 %v67, 4294901760
  %v556 = vsub.f32 %v67, %v555
  %v557 = vand.u32 %v556, 4294901760
  %558 = vmatpush.msra.mxu0 %v557
  %v559 = vand.u32 %v55, 4294901760
  %560 = vmatmul.f32.gmra.mxu0 %v559
  %v561 = vpop.f32.mrf.mxu0
  %v562 = vadd.f32 %v493, %v561
  %563 = vdwg.mxu0
  %v564 = vand.u32 %v82, 4294901760
  %565 = vmatpush.msra.mxu0 %v564
  %v566 = vand.u32 %v81, 4294901760
  %567 = vmatpush.msra.mxu0 %v566
  %v568 = vand.u32 %v80, 4294901760
  %569 = vmatpush.msra.mxu0 %v568
  %v570 = vand.u32 %v79, 4294901760
  %571 = vmatpush.msra.mxu0 %v570
  %v572 = vand.u32 %v78, 4294901760
  %573 = vmatpush.msra.mxu0 %v572
  %v574 = vand.u32 %v77, 4294901760
  %575 = vmatpush.msra.mxu0 %v574
  %v576 = vand.u32 %v76, 4294901760
  %577 = vmatpush.msra.mxu0 %v576
  %v578 = vand.u32 %v75, 4294901760
  %579 = vmatpush.msra.mxu0 %v578
  %v580 = vand.u32 %v74, 4294901760
  %581 = vmatpush.msra.mxu0 %v580
  %v582 = vand.u32 %v73, 4294901760
  %583 = vmatpush.msra.mxu0 %v582
  %v584 = vand.u32 %v72, 4294901760
  %585 = vmatpush.msra.mxu0 %v584
  %v586 = vand.u32 %v71, 4294901760
  %587 = vmatpush.msra.mxu0 %v586
  %v588 = vand.u32 %v70, 4294901760
  %589 = vmatpush.msra.mxu0 %v588
  %v590 = vand.u32 %v69, 4294901760
  %591 = vmatpush.msra.mxu0 %v590
  %v592 = vand.u32 %v68, 4294901760
  %593 = vmatpush.msra.mxu0 %v592
  %v594 = vand.u32 %v67, 4294901760
  %595 = vmatpush.msra.mxu0 %v594
  %v596 = vand.u32 %v55, 4294901760
  %597 = vmatmul.f32.gmra.mxu0 %v596
  %v598 = vpop.f32.mrf.mxu0
  %v599 = vadd.f32 %v562, %v598
  %600 = vdwg.mxu0
  %v601 = vand.u32 %v98, 4294901760
  %602 = vmatpush.msra.mxu0 %v601
  %v603 = vand.u32 %v97, 4294901760
  %604 = vmatpush.msra.mxu0 %v603
  %v605 = vand.u32 %v96, 4294901760
  %606 = vmatpush.msra.mxu0 %v605
  %v607 = vand.u32 %v95, 4294901760
  %608 = vmatpush.msra.mxu0 %v607
  %v609 = vand.u32 %v94, 4294901760
  %610 = vmatpush.msra.mxu0 %v609
  %v611 = vand.u32 %v93, 4294901760
  %612 = vmatpush.msra.mxu0 %v611
  %v613 = vand.u32 %v92, 4294901760
  %614 = vmatpush.msra.mxu0 %v613
  %v615 = vand.u32 %v91, 4294901760
  %616 = vmatpush.msra.mxu0 %v615
  %v617 = vand.u32 %v90, 4294901760
  %618 = vmatpush.msra.mxu0 %v617
  %v619 = vand.u32 %v89, 4294901760
  %620 = vmatpush.msra.mxu0 %v619
  %v621 = vand.u32 %v88, 4294901760
  %622 = vmatpush.msra.mxu0 %v621
  %v623 = vand.u32 %v87, 4294901760
  %624 = vmatpush.msra.mxu0 %v623
  %v625 = vand.u32 %v86, 4294901760
  %626 = vmatpush.msra.mxu0 %v625
  %v627 = vand.u32 %v85, 4294901760
  %628 = vmatpush.msra.mxu0 %v627
  %v629 = vand.u32 %v84, 4294901760
  %630 = vmatpush.msra.mxu0 %v629
  %v631 = vand.u32 %v83, 4294901760
  %632 = vmatpush.msra.mxu0 %v631
  %v633 = vand.u32 %v56, 4294901760
  %v634 = vsub.f32 %v56, %v633
  %v635 = vand.u32 %v634, 4294901760
  %v636 = vsub.f32 %v634, %v635
  %v637 = vand.u32 %v636, 4294901760
  %638 = vmatmul.f32.gmra.mxu0 %v637
  %v639 = vpop.f32.mrf.mxu0
  %v640 = vadd.f32 %v599, %v639
  %641 = vdwg.mxu0
  %v642 = vand.u32 %v98, 4294901760
  %v643 = vsub.f32 %v98, %v642
  %v644 = vand.u32 %v643, 4294901760
  %v645 = vsub.f32 %v643, %v644
  %v646 = vand.u32 %v645, 4294901760
  %647 = vmatpush.msra.mxu0 %v646
  %v648 = vand.u32 %v97, 4294901760
  %v649 = vsub.f32 %v97, %v648
  %v650 = vand.u32 %v649, 4294901760
  %v651 = vsub.f32 %v649, %v650
  %v652 = vand.u32 %v651, 4294901760
  %653 = vmatpush.msra.mxu0 %v652
  %v654 = vand.u32 %v96, 4294901760
  %v655 = vsub.f32 %v96, %v654
  %v656 = vand.u32 %v655, 4294901760
  %v657 = vsub.f32 %v655, %v656
  %v658 = vand.u32 %v657, 4294901760
  %659 = vmatpush.msra.mxu0 %v658
  %v660 = vand.u32 %v95, 4294901760
  %v661 = vsub.f32 %v95, %v660
  %v662 = vand.u32 %v661, 4294901760
  %v663 = vsub.f32 %v661, %v662
  %v664 = vand.u32 %v663, 4294901760
  %665 = vmatpush.msra.mxu0 %v664
  %v666 = vand.u32 %v94, 4294901760
  %v667 = vsub.f32 %v94, %v666
  %v668 = vand.u32 %v667, 4294901760
  %v669 = vsub.f32 %v667, %v668
  %v670 = vand.u32 %v669, 4294901760
  %671 = vmatpush.msra.mxu0 %v670
  %v672 = vand.u32 %v93, 4294901760
  %v673 = vsub.f32 %v93, %v672
  %v674 = vand.u32 %v673, 4294901760
  %v675 = vsub.f32 %v673, %v674
  %v676 = vand.u32 %v675, 4294901760
  %677 = vmatpush.msra.mxu0 %v676
  %v678 = vand.u32 %v92, 4294901760
  %v679 = vsub.f32 %v92, %v678
  %v680 = vand.u32 %v679, 4294901760
  %v681 = vsub.f32 %v679, %v680
  %v682 = vand.u32 %v681, 4294901760
  %683 = vmatpush.msra.mxu0 %v682
  %v684 = vand.u32 %v91, 4294901760
  %v685 = vsub.f32 %v91, %v684
  %v686 = vand.u32 %v685, 4294901760
  %v687 = vsub.f32 %v685, %v686
  %v688 = vand.u32 %v687, 4294901760
  %689 = vmatpush.msra.mxu0 %v688
  %v690 = vand.u32 %v90, 4294901760
  %v691 = vsub.f32 %v90, %v690
  %v692 = vand.u32 %v691, 4294901760
  %v693 = vsub.f32 %v691, %v692
  %v694 = vand.u32 %v693, 4294901760
  %695 = vmatpush.msra.mxu0 %v694
  %v696 = vand.u32 %v89, 4294901760
  %v697 = vsub.f32 %v89, %v696
  %v698 = vand.u32 %v697, 4294901760
  %v699 = vsub.f32 %v697, %v698
  %v700 = vand.u32 %v699, 4294901760
  %701 = vmatpush.msra.mxu0 %v700
  %v702 = vand.u32 %v88, 4294901760
  %v703 = vsub.f32 %v88, %v702
  %v704 = vand.u32 %v703, 4294901760
  %v705 = vsub.f32 %v703, %v704
  %v706 = vand.u32 %v705, 4294901760
  %707 = vmatpush.msra.mxu0 %v706
  %v708 = vand.u32 %v87, 4294901760
  %v709 = vsub.f32 %v87, %v708
  %v710 = vand.u32 %v709, 4294901760
  %v711 = vsub.f32 %v709, %v710
  %v712 = vand.u32 %v711, 4294901760
  %713 = vmatpush.msra.mxu0 %v712
  %v714 = vand.u32 %v86, 4294901760
  %v715 = vsub.f32 %v86, %v714
  %v716 = vand.u32 %v715, 4294901760
  %v717 = vsub.f32 %v715, %v716
  %v718 = vand.u32 %v717, 4294901760
  %719 = vmatpush.msra.mxu0 %v718
  %v720 = vand.u32 %v85, 4294901760
  %v721 = vsub.f32 %v85, %v720
  %v722 = vand.u32 %v721, 4294901760
  %v723 = vsub.f32 %v721, %v722
  %v724 = vand.u32 %v723, 4294901760
  %725 = vmatpush.msra.mxu0 %v724
  %v726 = vand.u32 %v84, 4294901760
  %v727 = vsub.f32 %v84, %v726
  %v728 = vand.u32 %v727, 4294901760
  %v729 = vsub.f32 %v727, %v728
  %v730 = vand.u32 %v729, 4294901760
  %731 = vmatpush.msra.mxu0 %v730
  %v732 = vand.u32 %v83, 4294901760
  %v733 = vsub.f32 %v83, %v732
  %v734 = vand.u32 %v733, 4294901760
  %v735 = vsub.f32 %v733, %v734
  %v736 = vand.u32 %v735, 4294901760
  %737 = vmatpush.msra.mxu0 %v736
  %v738 = vand.u32 %v56, 4294901760
  %739 = vmatmul.f32.gmra.mxu0 %v738
  %v740 = vpop.f32.mrf.mxu0
  %v741 = vadd.f32 %v640, %v740
  %742 = vdwg.mxu0
  %v743 = vand.u32 %v98, 4294901760
  %v744 = vsub.f32 %v98, %v743
  %745 = vmatpush.msra.mxu0 %v744
  %v746 = vand.u32 %v97, 4294901760
  %v747 = vsub.f32 %v97, %v746
  %748 = vmatpush.msra.mxu0 %v747
  %v749 = vand.u32 %v96, 4294901760
  %v750 = vsub.f32 %v96, %v749
  %751 = vmatpush.msra.mxu0 %v750
  %v752 = vand.u32 %v95, 4294901760
  %v753 = vsub.f32 %v95, %v752
  %754 = vmatpush.msra.mxu0 %v753
  %v755 = vand.u32 %v94, 4294901760
  %v756 = vsub.f32 %v94, %v755
  %757 = vmatpush.msra.mxu0 %v756
  %v758 = vand.u32 %v93, 4294901760
  %v759 = vsub.f32 %v93, %v758
  %760 = vmatpush.msra.mxu0 %v759
  %v761 = vand.u32 %v92, 4294901760
  %v762 = vsub.f32 %v92, %v761
  %763 = vmatpush.msra.mxu0 %v762
  %v764 = vand.u32 %v91, 4294901760
  %v765 = vsub.f32 %v91, %v764
  %766 = vmatpush.msra.mxu0 %v765
  %v767 = vand.u32 %v90, 4294901760
  %v768 = vsub.f32 %v90, %v767
  %769 = vmatpush.msra.mxu0 %v768
  %v770 = vand.u32 %v89, 4294901760
  %v771 = vsub.f32 %v89, %v770
  %772 = vmatpush.msra.mxu0 %v771
  %v773 = vand.u32 %v88, 4294901760
  %v774 = vsub.f32 %v88, %v773
  %775 = vmatpush.msra.mxu0 %v774
  %v776 = vand.u32 %v87, 4294901760
  %v777 = vsub.f32 %v87, %v776
  %778 = vmatpush.msra.mxu0 %v777
  %v779 = vand.u32 %v86, 4294901760
  %v780 = vsub.f32 %v86, %v779
  %781 = vmatpush.msra.mxu0 %v780
  %v782 = vand.u32 %v85, 4294901760
  %v783 = vsub.f32 %v85, %v782
  %784 = vmatpush.msra.mxu0 %v783
  %v785 = vand.u32 %v84, 4294901760
  %v786 = vsub.f32 %v84, %v785
  %787 = vmatpush.msra.mxu0 %v786
  %v788 = vand.u32 %v83, 4294901760
  %v789 = vsub.f32 %v83, %v788
  %790 = vmatpush.msra.mxu0 %v789
  %v791 = vand.u32 %v56, 4294901760
  %v792 = vsub.f32 %v56, %v791
  %793 = vmatmul.f32.gmra.mxu0 %v792
  %v794 = vpop.f32.mrf.mxu0
  %v795 = vadd.f32 %v741, %v794
  %796 = vdwg.mxu0
  %v797 = vand.u32 %v98, 4294901760
  %798 = vmatpush.msra.mxu0 %v797
  %v799 = vand.u32 %v97, 4294901760
  %800 = vmatpush.msra.mxu0 %v799
  %v801 = vand.u32 %v96, 4294901760
  %802 = vmatpush.msra.mxu0 %v801
  %v803 = vand.u32 %v95, 4294901760
  %804 = vmatpush.msra.mxu0 %v803
  %v805 = vand.u32 %v94, 4294901760
  %806 = vmatpush.msra.mxu0 %v805
  %v807 = vand.u32 %v93, 4294901760
  %808 = vmatpush.msra.mxu0 %v807
  %v809 = vand.u32 %v92, 4294901760
  %810 = vmatpush.msra.mxu0 %v809
  %v811 = vand.u32 %v91, 4294901760
  %812 = vmatpush.msra.mxu0 %v811
  %v813 = vand.u32 %v90, 4294901760
  %814 = vmatpush.msra.mxu0 %v813
  %v815 = vand.u32 %v89, 4294901760
  %816 = vmatpush.msra.mxu0 %v815
  %v817 = vand.u32 %v88, 4294901760
  %818 = vmatpush.msra.mxu0 %v817
  %v819 = vand.u32 %v87, 4294901760
  %820 = vmatpush.msra.mxu0 %v819
  %v821 = vand.u32 %v86, 4294901760
  %822 = vmatpush.msra.mxu0 %v821
  %v823 = vand.u32 %v85, 4294901760
  %824 = vmatpush.msra.mxu0 %v823
  %v825 = vand.u32 %v84, 4294901760
  %826 = vmatpush.msra.mxu0 %v825
  %v827 = vand.u32 %v83, 4294901760
  %828 = vmatpush.msra.mxu0 %v827
  %v829 = vand.u32 %v56, 4294901760
  %v830 = vsub.f32 %v56, %v829
  %v831 = vand.u32 %v830, 4294901760
  %832 = vmatmul.f32.gmra.mxu0 %v831
  %v833 = vpop.f32.mrf.mxu0
  %v834 = vadd.f32 %v795, %v833
  %835 = vdwg.mxu0
  %v836 = vand.u32 %v98, 4294901760
  %v837 = vsub.f32 %v98, %v836
  %v838 = vand.u32 %v837, 4294901760
  %839 = vmatpush.msra.mxu0 %v838
  %v840 = vand.u32 %v97, 4294901760
  %v841 = vsub.f32 %v97, %v840
  %v842 = vand.u32 %v841, 4294901760
  %843 = vmatpush.msra.mxu0 %v842
  %v844 = vand.u32 %v96, 4294901760
  %v845 = vsub.f32 %v96, %v844
  %v846 = vand.u32 %v845, 4294901760
  %847 = vmatpush.msra.mxu0 %v846
  %v848 = vand.u32 %v95, 4294901760
  %v849 = vsub.f32 %v95, %v848
  %v850 = vand.u32 %v849, 4294901760
  %851 = vmatpush.msra.mxu0 %v850
  %v852 = vand.u32 %v94, 4294901760
  %v853 = vsub.f32 %v94, %v852
  %v854 = vand.u32 %v853, 4294901760
  %855 = vmatpush.msra.mxu0 %v854
  %v856 = vand.u32 %v93, 4294901760
  %v857 = vsub.f32 %v93, %v856
  %v858 = vand.u32 %v857, 4294901760
  %859 = vmatpush.msra.mxu0 %v858
  %v860 = vand.u32 %v92, 4294901760
  %v861 = vsub.f32 %v92, %v860
  %v862 = vand.u32 %v861, 4294901760
  %863 = vmatpush.msra.mxu0 %v862
  %v864 = vand.u32 %v91, 4294901760
  %v865 = vsub.f32 %v91, %v864
  %v866 = vand.u32 %v865, 4294901760
  %867 = vmatpush.msra.mxu0 %v866
  %v868 = vand.u32 %v90, 4294901760
  %v869 = vsub.f32 %v90, %v868
  %v870 = vand.u32 %v869, 4294901760
  %871 = vmatpush.msra.mxu0 %v870
  %v872 = vand.u32 %v89, 4294901760
  %v873 = vsub.f32 %v89, %v872
  %v874 = vand.u32 %v873, 4294901760
  %875 = vmatpush.msra.mxu0 %v874
  %v876 = vand.u32 %v88, 4294901760
  %v877 = vsub.f32 %v88, %v876
  %v878 = vand.u32 %v877, 4294901760
  %879 = vmatpush.msra.mxu0 %v878
  %v880 = vand.u32 %v87, 4294901760
  %v881 = vsub.f32 %v87, %v880
  %v882 = vand.u32 %v881, 4294901760
  %883 = vmatpush.msra.mxu0 %v882
  %v884 = vand.u32 %v86, 4294901760
  %v885 = vsub.f32 %v86, %v884
  %v886 = vand.u32 %v885, 4294901760
  %887 = vmatpush.msra.mxu0 %v886
  %v888 = vand.u32 %v85, 4294901760
  %v889 = vsub.f32 %v85, %v888
  %v890 = vand.u32 %v889, 4294901760
  %891 = vmatpush.msra.mxu0 %v890
  %v892 = vand.u32 %v84, 4294901760
  %v893 = vsub.f32 %v84, %v892
  %v894 = vand.u32 %v893, 4294901760
  %895 = vmatpush.msra.mxu0 %v894
  %v896 = vand.u32 %v83, 4294901760
  %v897 = vsub.f32 %v83, %v896
  %v898 = vand.u32 %v897, 4294901760
  %899 = vmatpush.msra.mxu0 %v898
  %v900 = vand.u32 %v56, 4294901760
  %901 = vmatmul.f32.gmra.mxu0 %v900
  %v902 = vpop.f32.mrf.mxu0
  %v903 = vadd.f32 %v834, %v902
  %904 = vdwg.mxu0
  %v905 = vand.u32 %v98, 4294901760
  %906 = vmatpush.msra.mxu0 %v905
  %v907 = vand.u32 %v97, 4294901760
  %908 = vmatpush.msra.mxu0 %v907
  %v909 = vand.u32 %v96, 4294901760
  %910 = vmatpush.msra.mxu0 %v909
  %v911 = vand.u32 %v95, 4294901760
  %912 = vmatpush.msra.mxu0 %v911
  %v913 = vand.u32 %v94, 4294901760
  %914 = vmatpush.msra.mxu0 %v913
  %v915 = vand.u32 %v93, 4294901760
  %916 = vmatpush.msra.mxu0 %v915
  %v917 = vand.u32 %v92, 4294901760
  %918 = vmatpush.msra.mxu0 %v917
  %v919 = vand.u32 %v91, 4294901760
  %920 = vmatpush.msra.mxu0 %v919
  %v921 = vand.u32 %v90, 4294901760
  %922 = vmatpush.msra.mxu0 %v921
  %v923 = vand.u32 %v89, 4294901760
  %924 = vmatpush.msra.mxu0 %v923
  %v925 = vand.u32 %v88, 4294901760
  %926 = vmatpush.msra.mxu0 %v925
  %v927 = vand.u32 %v87, 4294901760
  %928 = vmatpush.msra.mxu0 %v927
  %v929 = vand.u32 %v86, 4294901760
  %930 = vmatpush.msra.mxu0 %v929
  %v931 = vand.u32 %v85, 4294901760
  %932 = vmatpush.msra.mxu0 %v931
  %v933 = vand.u32 %v84, 4294901760
  %934 = vmatpush.msra.mxu0 %v933
  %v935 = vand.u32 %v83, 4294901760
  %936 = vmatpush.msra.mxu0 %v935
  %v937 = vand.u32 %v56, 4294901760
  %938 = vmatmul.f32.gmra.mxu0 %v937
  %v939 = vpop.f32.mrf.mxu0
  %v940 = vadd.f32 %v903, %v939
  %941 = vdwg.mxu0
  %v942 = vand.u32 %v114, 4294901760
  %943 = vmatpush.msra.mxu0 %v942
  %v944 = vand.u32 %v113, 4294901760
  %945 = vmatpush.msra.mxu0 %v944
  %v946 = vand.u32 %v112, 4294901760
  %947 = vmatpush.msra.mxu0 %v946
  %v948 = vand.u32 %v111, 4294901760
  %949 = vmatpush.msra.mxu0 %v948
  %v950 = vand.u32 %v110, 4294901760
  %951 = vmatpush.msra.mxu0 %v950
  %v952 = vand.u32 %v109, 4294901760
  %953 = vmatpush.msra.mxu0 %v952
  %v954 = vand.u32 %v108, 4294901760
  %955 = vmatpush.msra.mxu0 %v954
  %v956 = vand.u32 %v107, 4294901760
  %957 = vmatpush.msra.mxu0 %v956
  %v958 = vand.u32 %v106, 4294901760
  %959 = vmatpush.msra.mxu0 %v958
  %v960 = vand.u32 %v105, 4294901760
  %961 = vmatpush.msra.mxu0 %v960
  %v962 = vand.u32 %v104, 4294901760
  %963 = vmatpush.msra.mxu0 %v962
  %v964 = vand.u32 %v103, 4294901760
  %965 = vmatpush.msra.mxu0 %v964
  %v966 = vand.u32 %v102, 4294901760
  %967 = vmatpush.msra.mxu0 %v966
  %v968 = vand.u32 %v101, 4294901760
  %969 = vmatpush.msra.mxu0 %v968
  %v970 = vand.u32 %v100, 4294901760
  %971 = vmatpush.msra.mxu0 %v970
  %v972 = vand.u32 %v99, 4294901760
  %973 = vmatpush.msra.mxu0 %v972
  %v974 = vand.u32 %v57, 4294901760
  %v975 = vsub.f32 %v57, %v974
  %v976 = vand.u32 %v975, 4294901760
  %v977 = vsub.f32 %v975, %v976
  %v978 = vand.u32 %v977, 4294901760
  %979 = vmatmul.f32.gmra.mxu0 %v978
  %v980 = vpop.f32.mrf.mxu0
  %v981 = vadd.f32 %v940, %v980
  %982 = vdwg.mxu0
  %v983 = vand.u32 %v114, 4294901760
  %v984 = vsub.f32 %v114, %v983
  %v985 = vand.u32 %v984, 4294901760
  %v986 = vsub.f32 %v984, %v985
  %v987 = vand.u32 %v986, 4294901760
  %988 = vmatpush.msra.mxu0 %v987
  %v989 = vand.u32 %v113, 4294901760
  %v990 = vsub.f32 %v113, %v989
  %v991 = vand.u32 %v990, 4294901760
  %v992 = vsub.f32 %v990, %v991
  %v993 = vand.u32 %v992, 4294901760
  %994 = vmatpush.msra.mxu0 %v993
  %v995 = vand.u32 %v112, 4294901760
  %v996 = vsub.f32 %v112, %v995
  %v997 = vand.u32 %v996, 4294901760
  %v998 = vsub.f32 %v996, %v997
  %v999 = vand.u32 %v998, 4294901760
  %1000 = vmatpush.msra.mxu0 %v999
  %v1001 = vand.u32 %v111, 4294901760
  %v1002 = vsub.f32 %v111, %v1001
  %v1003 = vand.u32 %v1002, 4294901760
  %v1004 = vsub.f32 %v1002, %v1003
  %v1005 = vand.u32 %v1004, 4294901760
  %1006 = vmatpush.msra.mxu0 %v1005
  %v1007 = vand.u32 %v110, 4294901760
  %v1008 = vsub.f32 %v110, %v1007
  %v1009 = vand.u32 %v1008, 4294901760
  %v1010 = vsub.f32 %v1008, %v1009
  %v1011 = vand.u32 %v1010, 4294901760
  %1012 = vmatpush.msra.mxu0 %v1011
  %v1013 = vand.u32 %v109, 4294901760
  %v1014 = vsub.f32 %v109, %v1013
  %v1015 = vand.u32 %v1014, 4294901760
  %v1016 = vsub.f32 %v1014, %v1015
  %v1017 = vand.u32 %v1016, 4294901760
  %1018 = vmatpush.msra.mxu0 %v1017
  %v1019 = vand.u32 %v108, 4294901760
  %v1020 = vsub.f32 %v108, %v1019
  %v1021 = vand.u32 %v1020, 4294901760
  %v1022 = vsub.f32 %v1020, %v1021
  %v1023 = vand.u32 %v1022, 4294901760
  %1024 = vmatpush.msra.mxu0 %v1023
  %v1025 = vand.u32 %v107, 4294901760
  %v1026 = vsub.f32 %v107, %v1025
  %v1027 = vand.u32 %v1026, 4294901760
  %v1028 = vsub.f32 %v1026, %v1027
  %v1029 = vand.u32 %v1028, 4294901760
  %1030 = vmatpush.msra.mxu0 %v1029
  %v1031 = vand.u32 %v106, 4294901760
  %v1032 = vsub.f32 %v106, %v1031
  %v1033 = vand.u32 %v1032, 4294901760
  %v1034 = vsub.f32 %v1032, %v1033
  %v1035 = vand.u32 %v1034, 4294901760
  %1036 = vmatpush.msra.mxu0 %v1035
  %v1037 = vand.u32 %v105, 4294901760
  %v1038 = vsub.f32 %v105, %v1037
  %v1039 = vand.u32 %v1038, 4294901760
  %v1040 = vsub.f32 %v1038, %v1039
  %v1041 = vand.u32 %v1040, 4294901760
  %1042 = vmatpush.msra.mxu0 %v1041
  %v1043 = vand.u32 %v104, 4294901760
  %v1044 = vsub.f32 %v104, %v1043
  %v1045 = vand.u32 %v1044, 4294901760
  %v1046 = vsub.f32 %v1044, %v1045
  %v1047 = vand.u32 %v1046, 4294901760
  %1048 = vmatpush.msra.mxu0 %v1047
  %v1049 = vand.u32 %v103, 4294901760
  %v1050 = vsub.f32 %v103, %v1049
  %v1051 = vand.u32 %v1050, 4294901760
  %v1052 = vsub.f32 %v1050, %v1051
  %v1053 = vand.u32 %v1052, 4294901760
  %1054 = vmatpush.msra.mxu0 %v1053
  %v1055 = vand.u32 %v102, 4294901760
  %v1056 = vsub.f32 %v102, %v1055
  %v1057 = vand.u32 %v1056, 4294901760
  %v1058 = vsub.f32 %v1056, %v1057
  %v1059 = vand.u32 %v1058, 4294901760
  %1060 = vmatpush.msra.mxu0 %v1059
  %v1061 = vand.u32 %v101, 4294901760
  %v1062 = vsub.f32 %v101, %v1061
  %v1063 = vand.u32 %v1062, 4294901760
  %v1064 = vsub.f32 %v1062, %v1063
  %v1065 = vand.u32 %v1064, 4294901760
  %1066 = vmatpush.msra.mxu0 %v1065
  %v1067 = vand.u32 %v100, 4294901760
  %v1068 = vsub.f32 %v100, %v1067
  %v1069 = vand.u32 %v1068, 4294901760
  %v1070 = vsub.f32 %v1068, %v1069
  %v1071 = vand.u32 %v1070, 4294901760
  %1072 = vmatpush.msra.mxu0 %v1071
  %v1073 = vand.u32 %v99, 4294901760
  %v1074 = vsub.f32 %v99, %v1073
  %v1075 = vand.u32 %v1074, 4294901760
  %v1076 = vsub.f32 %v1074, %v1075
  %v1077 = vand.u32 %v1076, 4294901760
  %1078 = vmatpush.msra.mxu0 %v1077
  %v1079 = vand.u32 %v57, 4294901760
  %1080 = vmatmul.f32.gmra.mxu0 %v1079
  %v1081 = vpop.f32.mrf.mxu0
  %v1082 = vadd.f32 %v981, %v1081
  %1083 = vdwg.mxu0
  %v1084 = vand.u32 %v114, 4294901760
  %v1085 = vsub.f32 %v114, %v1084
  %1086 = vmatpush.msra.mxu0 %v1085
  %v1087 = vand.u32 %v113, 4294901760
  %v1088 = vsub.f32 %v113, %v1087
  %1089 = vmatpush.msra.mxu0 %v1088
  %v1090 = vand.u32 %v112, 4294901760
  %v1091 = vsub.f32 %v112, %v1090
  %1092 = vmatpush.msra.mxu0 %v1091
  %v1093 = vand.u32 %v111, 4294901760
  %v1094 = vsub.f32 %v111, %v1093
  %1095 = vmatpush.msra.mxu0 %v1094
  %v1096 = vand.u32 %v110, 4294901760
  %v1097 = vsub.f32 %v110, %v1096
  %1098 = vmatpush.msra.mxu0 %v1097
  %v1099 = vand.u32 %v109, 4294901760
  %v1100 = vsub.f32 %v109, %v1099
  %1101 = vmatpush.msra.mxu0 %v1100
  %v1102 = vand.u32 %v108, 4294901760
  %v1103 = vsub.f32 %v108, %v1102
  %1104 = vmatpush.msra.mxu0 %v1103
  %v1105 = vand.u32 %v107, 4294901760
  %v1106 = vsub.f32 %v107, %v1105
  %1107 = vmatpush.msra.mxu0 %v1106
  %v1108 = vand.u32 %v106, 4294901760
  %v1109 = vsub.f32 %v106, %v1108
  %1110 = vmatpush.msra.mxu0 %v1109
  %v1111 = vand.u32 %v105, 4294901760
  %v1112 = vsub.f32 %v105, %v1111
  %1113 = vmatpush.msra.mxu0 %v1112
  %v1114 = vand.u32 %v104, 4294901760
  %v1115 = vsub.f32 %v104, %v1114
  %1116 = vmatpush.msra.mxu0 %v1115
  %v1117 = vand.u32 %v103, 4294901760
  %v1118 = vsub.f32 %v103, %v1117
  %1119 = vmatpush.msra.mxu0 %v1118
  %v1120 = vand.u32 %v102, 4294901760
  %v1121 = vsub.f32 %v102, %v1120
  %1122 = vmatpush.msra.mxu0 %v1121
  %v1123 = vand.u32 %v101, 4294901760
  %v1124 = vsub.f32 %v101, %v1123
  %1125 = vmatpush.msra.mxu0 %v1124
  %v1126 = vand.u32 %v100, 4294901760
  %v1127 = vsub.f32 %v100, %v1126
  %1128 = vmatpush.msra.mxu0 %v1127
  %v1129 = vand.u32 %v99, 4294901760
  %v1130 = vsub.f32 %v99, %v1129
  %1131 = vmatpush.msra.mxu0 %v1130
  %v1132 = vand.u32 %v57, 4294901760
  %v1133 = vsub.f32 %v57, %v1132
  %1134 = vmatmul.f32.gmra.mxu0 %v1133
  %v1135 = vpop.f32.mrf.mxu0
  %v1136 = vadd.f32 %v1082, %v1135
  %1137 = vdwg.mxu0
  %v1138 = vand.u32 %v114, 4294901760
  %1139 = vmatpush.msra.mxu0 %v1138
  %v1140 = vand.u32 %v113, 4294901760
  %1141 = vmatpush.msra.mxu0 %v1140
  %v1142 = vand.u32 %v112, 4294901760
  %1143 = vmatpush.msra.mxu0 %v1142
  %v1144 = vand.u32 %v111, 4294901760
  %1145 = vmatpush.msra.mxu0 %v1144
  %v1146 = vand.u32 %v110, 4294901760
  %1147 = vmatpush.msra.mxu0 %v1146
  %v1148 = vand.u32 %v109, 4294901760
  %1149 = vmatpush.msra.mxu0 %v1148
  %v1150 = vand.u32 %v108, 4294901760
  %1151 = vmatpush.msra.mxu0 %v1150
  %v1152 = vand.u32 %v107, 4294901760
  %1153 = vmatpush.msra.mxu0 %v1152
  %v1154 = vand.u32 %v106, 4294901760
  %1155 = vmatpush.msra.mxu0 %v1154
  %v1156 = vand.u32 %v105, 4294901760
  %1157 = vmatpush.msra.mxu0 %v1156
  %v1158 = vand.u32 %v104, 4294901760
  %1159 = vmatpush.msra.mxu0 %v1158
  %v1160 = vand.u32 %v103, 4294901760
  %1161 = vmatpush.msra.mxu0 %v1160
  %v1162 = vand.u32 %v102, 4294901760
  %1163 = vmatpush.msra.mxu0 %v1162
  %v1164 = vand.u32 %v101, 4294901760
  %1165 = vmatpush.msra.mxu0 %v1164
  %v1166 = vand.u32 %v100, 4294901760
  %1167 = vmatpush.msra.mxu0 %v1166
  %v1168 = vand.u32 %v99, 4294901760
  %1169 = vmatpush.msra.mxu0 %v1168
  %v1170 = vand.u32 %v57, 4294901760
  %v1171 = vsub.f32 %v57, %v1170
  %v1172 = vand.u32 %v1171, 4294901760
  %1173 = vmatmul.f32.gmra.mxu0 %v1172
  %v1174 = vpop.f32.mrf.mxu0
  %v1175 = vadd.f32 %v1136, %v1174
  %1176 = vdwg.mxu0
  %v1177 = vand.u32 %v114, 4294901760
  %v1178 = vsub.f32 %v114, %v1177
  %v1179 = vand.u32 %v1178, 4294901760
  %1180 = vmatpush.msra.mxu0 %v1179
  %v1181 = vand.u32 %v113, 4294901760
  %v1182 = vsub.f32 %v113, %v1181
  %v1183 = vand.u32 %v1182, 4294901760
  %1184 = vmatpush.msra.mxu0 %v1183
  %v1185 = vand.u32 %v112, 4294901760
  %v1186 = vsub.f32 %v112, %v1185
  %v1187 = vand.u32 %v1186, 4294901760
  %1188 = vmatpush.msra.mxu0 %v1187
  %v1189 = vand.u32 %v111, 4294901760
  %v1190 = vsub.f32 %v111, %v1189
  %v1191 = vand.u32 %v1190, 4294901760
  %1192 = vmatpush.msra.mxu0 %v1191
  %v1193 = vand.u32 %v110, 4294901760
  %v1194 = vsub.f32 %v110, %v1193
  %v1195 = vand.u32 %v1194, 4294901760
  %1196 = vmatpush.msra.mxu0 %v1195
  %v1197 = vand.u32 %v109, 4294901760
  %v1198 = vsub.f32 %v109, %v1197
  %v1199 = vand.u32 %v1198, 4294901760
  %1200 = vmatpush.msra.mxu0 %v1199
  %v1201 = vand.u32 %v108, 4294901760
  %v1202 = vsub.f32 %v108, %v1201
  %v1203 = vand.u32 %v1202, 4294901760
  %1204 = vmatpush.msra.mxu0 %v1203
  %v1205 = vand.u32 %v107, 4294901760
  %v1206 = vsub.f32 %v107, %v1205
  %v1207 = vand.u32 %v1206, 4294901760
  %1208 = vmatpush.msra.mxu0 %v1207
  %v1209 = vand.u32 %v106, 4294901760
  %v1210 = vsub.f32 %v106, %v1209
  %v1211 = vand.u32 %v1210, 4294901760
  %1212 = vmatpush.msra.mxu0 %v1211
  %v1213 = vand.u32 %v105, 4294901760
  %v1214 = vsub.f32 %v105, %v1213
  %v1215 = vand.u32 %v1214, 4294901760
  %1216 = vmatpush.msra.mxu0 %v1215
  %v1217 = vand.u32 %v104, 4294901760
  %v1218 = vsub.f32 %v104, %v1217
  %v1219 = vand.u32 %v1218, 4294901760
  %1220 = vmatpush.msra.mxu0 %v1219
  %v1221 = vand.u32 %v103, 4294901760
  %v1222 = vsub.f32 %v103, %v1221
  %v1223 = vand.u32 %v1222, 4294901760
  %1224 = vmatpush.msra.mxu0 %v1223
  %v1225 = vand.u32 %v102, 4294901760
  %v1226 = vsub.f32 %v102, %v1225
  %v1227 = vand.u32 %v1226, 4294901760
  %1228 = vmatpush.msra.mxu0 %v1227
  %v1229 = vand.u32 %v101, 4294901760
  %v1230 = vsub.f32 %v101, %v1229
  %v1231 = vand.u32 %v1230, 4294901760
  %1232 = vmatpush.msra.mxu0 %v1231
  %v1233 = vand.u32 %v100, 4294901760
  %v1234 = vsub.f32 %v100, %v1233
  %v1235 = vand.u32 %v1234, 4294901760
  %1236 = vmatpush.msra.mxu0 %v1235
  %v1237 = vand.u32 %v99, 4294901760
  %v1238 = vsub.f32 %v99, %v1237
  %v1239 = vand.u32 %v1238, 4294901760
  %1240 = vmatpush.msra.mxu0 %v1239
  %v1241 = vand.u32 %v57, 4294901760
  %1242 = vmatmul.f32.gmra.mxu0 %v1241
  %v1243 = vpop.f32.mrf.mxu0
  %v1244 = vadd.f32 %v1175, %v1243
  %1245 = vdwg.mxu0
  %v1246 = vand.u32 %v114, 4294901760
  %1247 = vmatpush.msra.mxu0 %v1246
  %v1248 = vand.u32 %v113, 4294901760
  %1249 = vmatpush.msra.mxu0 %v1248
  %v1250 = vand.u32 %v112, 4294901760
  %1251 = vmatpush.msra.mxu0 %v1250
  %v1252 = vand.u32 %v111, 4294901760
  %1253 = vmatpush.msra.mxu0 %v1252
  %v1254 = vand.u32 %v110, 4294901760
  %1255 = vmatpush.msra.mxu0 %v1254
  %v1256 = vand.u32 %v109, 4294901760
  %1257 = vmatpush.msra.mxu0 %v1256
  %v1258 = vand.u32 %v108, 4294901760
  %1259 = vmatpush.msra.mxu0 %v1258
  %v1260 = vand.u32 %v107, 4294901760
  %1261 = vmatpush.msra.mxu0 %v1260
  %v1262 = vand.u32 %v106, 4294901760
  %1263 = vmatpush.msra.mxu0 %v1262
  %v1264 = vand.u32 %v105, 4294901760
  %1265 = vmatpush.msra.mxu0 %v1264
  %v1266 = vand.u32 %v104, 4294901760
  %1267 = vmatpush.msra.mxu0 %v1266
  %v1268 = vand.u32 %v103, 4294901760
  %1269 = vmatpush.msra.mxu0 %v1268
  %v1270 = vand.u32 %v102, 4294901760
  %1271 = vmatpush.msra.mxu0 %v1270
  %v1272 = vand.u32 %v101, 4294901760
  %1273 = vmatpush.msra.mxu0 %v1272
  %v1274 = vand.u32 %v100, 4294901760
  %1275 = vmatpush.msra.mxu0 %v1274
  %v1276 = vand.u32 %v99, 4294901760
  %1277 = vmatpush.msra.mxu0 %v1276
  %v1278 = vand.u32 %v57, 4294901760
  %1279 = vmatmul.f32.gmra.mxu0 %v1278
  %v1280 = vpop.f32.mrf.mxu0
  %v1281 = vadd.f32 %v1244, %v1280
  %1282 = vdwg.mxu0
  %v1283 = vand.u32 %v130, 4294901760
  %1284 = vmatpush.msra.mxu0 %v1283
  %v1285 = vand.u32 %v129, 4294901760
  %1286 = vmatpush.msra.mxu0 %v1285
  %v1287 = vand.u32 %v128, 4294901760
  %1288 = vmatpush.msra.mxu0 %v1287
  %v1289 = vand.u32 %v127, 4294901760
  %1290 = vmatpush.msra.mxu0 %v1289
  %v1291 = vand.u32 %v126, 4294901760
  %1292 = vmatpush.msra.mxu0 %v1291
  %v1293 = vand.u32 %v125, 4294901760
  %1294 = vmatpush.msra.mxu0 %v1293
  %v1295 = vand.u32 %v124, 4294901760
  %1296 = vmatpush.msra.mxu0 %v1295
  %v1297 = vand.u32 %v123, 4294901760
  %1298 = vmatpush.msra.mxu0 %v1297
  %v1299 = vand.u32 %v122, 4294901760
  %1300 = vmatpush.msra.mxu0 %v1299
  %v1301 = vand.u32 %v121, 4294901760
  %1302 = vmatpush.msra.mxu0 %v1301
  %v1303 = vand.u32 %v120, 4294901760
  %1304 = vmatpush.msra.mxu0 %v1303
  %v1305 = vand.u32 %v119, 4294901760
  %1306 = vmatpush.msra.mxu0 %v1305
  %v1307 = vand.u32 %v118, 4294901760
  %1308 = vmatpush.msra.mxu0 %v1307
  %v1309 = vand.u32 %v117, 4294901760
  %1310 = vmatpush.msra.mxu0 %v1309
  %v1311 = vand.u32 %v116, 4294901760
  %1312 = vmatpush.msra.mxu0 %v1311
  %v1313 = vand.u32 %v115, 4294901760
  %1314 = vmatpush.msra.mxu0 %v1313
  %v1315 = vand.u32 %v58, 4294901760
  %v1316 = vsub.f32 %v58, %v1315
  %v1317 = vand.u32 %v1316, 4294901760
  %v1318 = vsub.f32 %v1316, %v1317
  %v1319 = vand.u32 %v1318, 4294901760
  %1320 = vmatmul.f32.gmra.mxu0 %v1319
  %v1321 = vpop.f32.mrf.mxu0
  %v1322 = vadd.f32 %v1281, %v1321
  %1323 = vdwg.mxu0
  %v1324 = vand.u32 %v130, 4294901760
  %v1325 = vsub.f32 %v130, %v1324
  %v1326 = vand.u32 %v1325, 4294901760
  %v1327 = vsub.f32 %v1325, %v1326
  %v1328 = vand.u32 %v1327, 4294901760
  %1329 = vmatpush.msra.mxu0 %v1328
  %v1330 = vand.u32 %v129, 4294901760
  %v1331 = vsub.f32 %v129, %v1330
  %v1332 = vand.u32 %v1331, 4294901760
  %v1333 = vsub.f32 %v1331, %v1332
  %v1334 = vand.u32 %v1333, 4294901760
  %1335 = vmatpush.msra.mxu0 %v1334
  %v1336 = vand.u32 %v128, 4294901760
  %v1337 = vsub.f32 %v128, %v1336
  %v1338 = vand.u32 %v1337, 4294901760
  %v1339 = vsub.f32 %v1337, %v1338
  %v1340 = vand.u32 %v1339, 4294901760
  %1341 = vmatpush.msra.mxu0 %v1340
  %v1342 = vand.u32 %v127, 4294901760
  %v1343 = vsub.f32 %v127, %v1342
  %v1344 = vand.u32 %v1343, 4294901760
  %v1345 = vsub.f32 %v1343, %v1344
  %v1346 = vand.u32 %v1345, 4294901760
  %1347 = vmatpush.msra.mxu0 %v1346
  %v1348 = vand.u32 %v126, 4294901760
  %v1349 = vsub.f32 %v126, %v1348
  %v1350 = vand.u32 %v1349, 4294901760
  %v1351 = vsub.f32 %v1349, %v1350
  %v1352 = vand.u32 %v1351, 4294901760
  %1353 = vmatpush.msra.mxu0 %v1352
  %v1354 = vand.u32 %v125, 4294901760
  %v1355 = vsub.f32 %v125, %v1354
  %v1356 = vand.u32 %v1355, 4294901760
  %v1357 = vsub.f32 %v1355, %v1356
  %v1358 = vand.u32 %v1357, 4294901760
  %1359 = vmatpush.msra.mxu0 %v1358
  %v1360 = vand.u32 %v124, 4294901760
  %v1361 = vsub.f32 %v124, %v1360
  %v1362 = vand.u32 %v1361, 4294901760
  %v1363 = vsub.f32 %v1361, %v1362
  %v1364 = vand.u32 %v1363, 4294901760
  %1365 = vmatpush.msra.mxu0 %v1364
  %v1366 = vand.u32 %v123, 4294901760
  %v1367 = vsub.f32 %v123, %v1366
  %v1368 = vand.u32 %v1367, 4294901760
  %v1369 = vsub.f32 %v1367, %v1368
  %v1370 = vand.u32 %v1369, 4294901760
  %1371 = vmatpush.msra.mxu0 %v1370
  %v1372 = vand.u32 %v122, 4294901760
  %v1373 = vsub.f32 %v122, %v1372
  %v1374 = vand.u32 %v1373, 4294901760
  %v1375 = vsub.f32 %v1373, %v1374
  %v1376 = vand.u32 %v1375, 4294901760
  %1377 = vmatpush.msra.mxu0 %v1376
  %v1378 = vand.u32 %v121, 4294901760
  %v1379 = vsub.f32 %v121, %v1378
  %v1380 = vand.u32 %v1379, 4294901760
  %v1381 = vsub.f32 %v1379, %v1380
  %v1382 = vand.u32 %v1381, 4294901760
  %1383 = vmatpush.msra.mxu0 %v1382
  %v1384 = vand.u32 %v120, 4294901760
  %v1385 = vsub.f32 %v120, %v1384
  %v1386 = vand.u32 %v1385, 4294901760
  %v1387 = vsub.f32 %v1385, %v1386
  %v1388 = vand.u32 %v1387, 4294901760
  %1389 = vmatpush.msra.mxu0 %v1388
  %v1390 = vand.u32 %v119, 4294901760
  %v1391 = vsub.f32 %v119, %v1390
  %v1392 = vand.u32 %v1391, 4294901760
  %v1393 = vsub.f32 %v1391, %v1392
  %v1394 = vand.u32 %v1393, 4294901760
  %1395 = vmatpush.msra.mxu0 %v1394
  %v1396 = vand.u32 %v118, 4294901760
  %v1397 = vsub.f32 %v118, %v1396
  %v1398 = vand.u32 %v1397, 4294901760
  %v1399 = vsub.f32 %v1397, %v1398
  %v1400 = vand.u32 %v1399, 4294901760
  %1401 = vmatpush.msra.mxu0 %v1400
  %v1402 = vand.u32 %v117, 4294901760
  %v1403 = vsub.f32 %v117, %v1402
  %v1404 = vand.u32 %v1403, 4294901760
  %v1405 = vsub.f32 %v1403, %v1404
  %v1406 = vand.u32 %v1405, 4294901760
  %1407 = vmatpush.msra.mxu0 %v1406
  %v1408 = vand.u32 %v116, 4294901760
  %v1409 = vsub.f32 %v116, %v1408
  %v1410 = vand.u32 %v1409, 4294901760
  %v1411 = vsub.f32 %v1409, %v1410
  %v1412 = vand.u32 %v1411, 4294901760
  %1413 = vmatpush.msra.mxu0 %v1412
  %v1414 = vand.u32 %v115, 4294901760
  %v1415 = vsub.f32 %v115, %v1414
  %v1416 = vand.u32 %v1415, 4294901760
  %v1417 = vsub.f32 %v1415, %v1416
  %v1418 = vand.u32 %v1417, 4294901760
  %1419 = vmatpush.msra.mxu0 %v1418
  %v1420 = vand.u32 %v58, 4294901760
  %1421 = vmatmul.f32.gmra.mxu0 %v1420
  %v1422 = vpop.f32.mrf.mxu0
  %v1423 = vadd.f32 %v1322, %v1422
  %1424 = vdwg.mxu0
  %v1425 = vand.u32 %v130, 4294901760
  %v1426 = vsub.f32 %v130, %v1425
  %1427 = vmatpush.msra.mxu0 %v1426
  %v1428 = vand.u32 %v129, 4294901760
  %v1429 = vsub.f32 %v129, %v1428
  %1430 = vmatpush.msra.mxu0 %v1429
  %v1431 = vand.u32 %v128, 4294901760
  %v1432 = vsub.f32 %v128, %v1431
  %1433 = vmatpush.msra.mxu0 %v1432
  %v1434 = vand.u32 %v127, 4294901760
  %v1435 = vsub.f32 %v127, %v1434
  %1436 = vmatpush.msra.mxu0 %v1435
  %v1437 = vand.u32 %v126, 4294901760
  %v1438 = vsub.f32 %v126, %v1437
  %1439 = vmatpush.msra.mxu0 %v1438
  %v1440 = vand.u32 %v125, 4294901760
  %v1441 = vsub.f32 %v125, %v1440
  %1442 = vmatpush.msra.mxu0 %v1441
  %v1443 = vand.u32 %v124, 4294901760
  %v1444 = vsub.f32 %v124, %v1443
  %1445 = vmatpush.msra.mxu0 %v1444
  %v1446 = vand.u32 %v123, 4294901760
  %v1447 = vsub.f32 %v123, %v1446
  %1448 = vmatpush.msra.mxu0 %v1447
  %v1449 = vand.u32 %v122, 4294901760
  %v1450 = vsub.f32 %v122, %v1449
  %1451 = vmatpush.msra.mxu0 %v1450
  %v1452 = vand.u32 %v121, 4294901760
  %v1453 = vsub.f32 %v121, %v1452
  %1454 = vmatpush.msra.mxu0 %v1453
  %v1455 = vand.u32 %v120, 4294901760
  %v1456 = vsub.f32 %v120, %v1455
  %1457 = vmatpush.msra.mxu0 %v1456
  %v1458 = vand.u32 %v119, 4294901760
  %v1459 = vsub.f32 %v119, %v1458
  %1460 = vmatpush.msra.mxu0 %v1459
  %v1461 = vand.u32 %v118, 4294901760
  %v1462 = vsub.f32 %v118, %v1461
  %1463 = vmatpush.msra.mxu0 %v1462
  %v1464 = vand.u32 %v117, 4294901760
  %v1465 = vsub.f32 %v117, %v1464
  %1466 = vmatpush.msra.mxu0 %v1465
  %v1467 = vand.u32 %v116, 4294901760
  %v1468 = vsub.f32 %v116, %v1467
  %1469 = vmatpush.msra.mxu0 %v1468
  %v1470 = vand.u32 %v115, 4294901760
  %v1471 = vsub.f32 %v115, %v1470
  %1472 = vmatpush.msra.mxu0 %v1471
  %v1473 = vand.u32 %v58, 4294901760
  %v1474 = vsub.f32 %v58, %v1473
  %1475 = vmatmul.f32.gmra.mxu0 %v1474
  %v1476 = vpop.f32.mrf.mxu0
  %v1477 = vadd.f32 %v1423, %v1476
  %1478 = vdwg.mxu0
  %v1479 = vand.u32 %v130, 4294901760
  %1480 = vmatpush.msra.mxu0 %v1479
  %v1481 = vand.u32 %v129, 4294901760
  %1482 = vmatpush.msra.mxu0 %v1481
  %v1483 = vand.u32 %v128, 4294901760
  %1484 = vmatpush.msra.mxu0 %v1483
  %v1485 = vand.u32 %v127, 4294901760
  %1486 = vmatpush.msra.mxu0 %v1485
  %v1487 = vand.u32 %v126, 4294901760
  %1488 = vmatpush.msra.mxu0 %v1487
  %v1489 = vand.u32 %v125, 4294901760
  %1490 = vmatpush.msra.mxu0 %v1489
  %v1491 = vand.u32 %v124, 4294901760
  %1492 = vmatpush.msra.mxu0 %v1491
  %v1493 = vand.u32 %v123, 4294901760
  %1494 = vmatpush.msra.mxu0 %v1493
  %v1495 = vand.u32 %v122, 4294901760
  %1496 = vmatpush.msra.mxu0 %v1495
  %v1497 = vand.u32 %v121, 4294901760
  %1498 = vmatpush.msra.mxu0 %v1497
  %v1499 = vand.u32 %v120, 4294901760
  %1500 = vmatpush.msra.mxu0 %v1499
  %v1501 = vand.u32 %v119, 4294901760
  %1502 = vmatpush.msra.mxu0 %v1501
  %v1503 = vand.u32 %v118, 4294901760
  %1504 = vmatpush.msra.mxu0 %v1503
  %v1505 = vand.u32 %v117, 4294901760
  %1506 = vmatpush.msra.mxu0 %v1505
  %v1507 = vand.u32 %v116, 4294901760
  %1508 = vmatpush.msra.mxu0 %v1507
  %v1509 = vand.u32 %v115, 4294901760
  %1510 = vmatpush.msra.mxu0 %v1509
  %v1511 = vand.u32 %v58, 4294901760
  %v1512 = vsub.f32 %v58, %v1511
  %v1513 = vand.u32 %v1512, 4294901760
  %1514 = vmatmul.f32.gmra.mxu0 %v1513
  %v1515 = vpop.f32.mrf.mxu0
  %v1516 = vadd.f32 %v1477, %v1515
  %1517 = vdwg.mxu0
  %v1518 = vand.u32 %v130, 4294901760
  %v1519 = vsub.f32 %v130, %v1518
  %v1520 = vand.u32 %v1519, 4294901760
  %1521 = vmatpush.msra.mxu0 %v1520
  %v1522 = vand.u32 %v129, 4294901760
  %v1523 = vsub.f32 %v129, %v1522
  %v1524 = vand.u32 %v1523, 4294901760
  %1525 = vmatpush.msra.mxu0 %v1524
  %v1526 = vand.u32 %v128, 4294901760
  %v1527 = vsub.f32 %v128, %v1526
  %v1528 = vand.u32 %v1527, 4294901760
  %1529 = vmatpush.msra.mxu0 %v1528
  %v1530 = vand.u32 %v127, 4294901760
  %v1531 = vsub.f32 %v127, %v1530
  %v1532 = vand.u32 %v1531, 4294901760
  %1533 = vmatpush.msra.mxu0 %v1532
  %v1534 = vand.u32 %v126, 4294901760
  %v1535 = vsub.f32 %v126, %v1534
  %v1536 = vand.u32 %v1535, 4294901760
  %1537 = vmatpush.msra.mxu0 %v1536
  %v1538 = vand.u32 %v125, 4294901760
  %v1539 = vsub.f32 %v125, %v1538
  %v1540 = vand.u32 %v1539, 4294901760
  %1541 = vmatpush.msra.mxu0 %v1540
  %v1542 = vand.u32 %v124, 4294901760
  %v1543 = vsub.f32 %v124, %v1542
  %v1544 = vand.u32 %v1543, 4294901760
  %1545 = vmatpush.msra.mxu0 %v1544
  %v1546 = vand.u32 %v123, 4294901760
  %v1547 = vsub.f32 %v123, %v1546
  %v1548 = vand.u32 %v1547, 4294901760
  %1549 = vmatpush.msra.mxu0 %v1548
  %v1550 = vand.u32 %v122, 4294901760
  %v1551 = vsub.f32 %v122, %v1550
  %v1552 = vand.u32 %v1551, 4294901760
  %1553 = vmatpush.msra.mxu0 %v1552
  %v1554 = vand.u32 %v121, 4294901760
  %v1555 = vsub.f32 %v121, %v1554
  %v1556 = vand.u32 %v1555, 4294901760
  %1557 = vmatpush.msra.mxu0 %v1556
  %v1558 = vand.u32 %v120, 4294901760
  %v1559 = vsub.f32 %v120, %v1558
  %v1560 = vand.u32 %v1559, 4294901760
  %1561 = vmatpush.msra.mxu0 %v1560
  %v1562 = vand.u32 %v119, 4294901760
  %v1563 = vsub.f32 %v119, %v1562
  %v1564 = vand.u32 %v1563, 4294901760
  %1565 = vmatpush.msra.mxu0 %v1564
  %v1566 = vand.u32 %v118, 4294901760
  %v1567 = vsub.f32 %v118, %v1566
  %v1568 = vand.u32 %v1567, 4294901760
  %1569 = vmatpush.msra.mxu0 %v1568
  %v1570 = vand.u32 %v117, 4294901760
  %v1571 = vsub.f32 %v117, %v1570
  %v1572 = vand.u32 %v1571, 4294901760
  %1573 = vmatpush.msra.mxu0 %v1572
  %v1574 = vand.u32 %v116, 4294901760
  %v1575 = vsub.f32 %v116, %v1574
  %v1576 = vand.u32 %v1575, 4294901760
  %1577 = vmatpush.msra.mxu0 %v1576
  %v1578 = vand.u32 %v115, 4294901760
  %v1579 = vsub.f32 %v115, %v1578
  %v1580 = vand.u32 %v1579, 4294901760
  %1581 = vmatpush.msra.mxu0 %v1580
  %v1582 = vand.u32 %v58, 4294901760
  %1583 = vmatmul.f32.gmra.mxu0 %v1582
  %v1584 = vpop.f32.mrf.mxu0
  %v1585 = vadd.f32 %v1516, %v1584
  %1586 = vdwg.mxu0
  %v1587 = vand.u32 %v130, 4294901760
  %1588 = vmatpush.msra.mxu0 %v1587
  %v1589 = vand.u32 %v129, 4294901760
  %1590 = vmatpush.msra.mxu0 %v1589
  %v1591 = vand.u32 %v128, 4294901760
  %1592 = vmatpush.msra.mxu0 %v1591
  %v1593 = vand.u32 %v127, 4294901760
  %1594 = vmatpush.msra.mxu0 %v1593
  %v1595 = vand.u32 %v126, 4294901760
  %1596 = vmatpush.msra.mxu0 %v1595
  %v1597 = vand.u32 %v125, 4294901760
  %1598 = vmatpush.msra.mxu0 %v1597
  %v1599 = vand.u32 %v124, 4294901760
  %1600 = vmatpush.msra.mxu0 %v1599
  %v1601 = vand.u32 %v123, 4294901760
  %1602 = vmatpush.msra.mxu0 %v1601
  %v1603 = vand.u32 %v122, 4294901760
  %1604 = vmatpush.msra.mxu0 %v1603
  %v1605 = vand.u32 %v121, 4294901760
  %1606 = vmatpush.msra.mxu0 %v1605
  %v1607 = vand.u32 %v120, 4294901760
  %1608 = vmatpush.msra.mxu0 %v1607
  %v1609 = vand.u32 %v119, 4294901760
  %1610 = vmatpush.msra.mxu0 %v1609
  %v1611 = vand.u32 %v118, 4294901760
  %1612 = vmatpush.msra.mxu0 %v1611
  %v1613 = vand.u32 %v117, 4294901760
  %1614 = vmatpush.msra.mxu0 %v1613
  %v1615 = vand.u32 %v116, 4294901760
  %1616 = vmatpush.msra.mxu0 %v1615
  %v1617 = vand.u32 %v115, 4294901760
  %1618 = vmatpush.msra.mxu0 %v1617
  %v1619 = vand.u32 %v58, 4294901760
  %1620 = vmatmul.f32.gmra.mxu0 %v1619
  %v1621 = vpop.f32.mrf.mxu0
  %v1622 = vadd.f32 %v1585, %v1621
  %1623 = vdwg.mxu0
  %v1624 = vand.u32 %v146, 4294901760
  %1625 = vmatpush.msra.mxu0 %v1624
  %v1626 = vand.u32 %v145, 4294901760
  %1627 = vmatpush.msra.mxu0 %v1626
  %v1628 = vand.u32 %v144, 4294901760
  %1629 = vmatpush.msra.mxu0 %v1628
  %v1630 = vand.u32 %v143, 4294901760
  %1631 = vmatpush.msra.mxu0 %v1630
  %v1632 = vand.u32 %v142, 4294901760
  %1633 = vmatpush.msra.mxu0 %v1632
  %v1634 = vand.u32 %v141, 4294901760
  %1635 = vmatpush.msra.mxu0 %v1634
  %v1636 = vand.u32 %v140, 4294901760
  %1637 = vmatpush.msra.mxu0 %v1636
  %v1638 = vand.u32 %v139, 4294901760
  %1639 = vmatpush.msra.mxu0 %v1638
  %v1640 = vand.u32 %v138, 4294901760
  %1641 = vmatpush.msra.mxu0 %v1640
  %v1642 = vand.u32 %v137, 4294901760
  %1643 = vmatpush.msra.mxu0 %v1642
  %v1644 = vand.u32 %v136, 4294901760
  %1645 = vmatpush.msra.mxu0 %v1644
  %v1646 = vand.u32 %v135, 4294901760
  %1647 = vmatpush.msra.mxu0 %v1646
  %v1648 = vand.u32 %v134, 4294901760
  %1649 = vmatpush.msra.mxu0 %v1648
  %v1650 = vand.u32 %v133, 4294901760
  %1651 = vmatpush.msra.mxu0 %v1650
  %v1652 = vand.u32 %v132, 4294901760
  %1653 = vmatpush.msra.mxu0 %v1652
  %v1654 = vand.u32 %v131, 4294901760
  %1655 = vmatpush.msra.mxu0 %v1654
  %v1656 = vand.u32 %v59, 4294901760
  %v1657 = vsub.f32 %v59, %v1656
  %v1658 = vand.u32 %v1657, 4294901760
  %v1659 = vsub.f32 %v1657, %v1658
  %v1660 = vand.u32 %v1659, 4294901760
  %1661 = vmatmul.f32.gmra.mxu0 %v1660
  %v1662 = vpop.f32.mrf.mxu0
  %v1663 = vadd.f32 %v1622, %v1662
  %1664 = vdwg.mxu0
  %v1665 = vand.u32 %v146, 4294901760
  %v1666 = vsub.f32 %v146, %v1665
  %v1667 = vand.u32 %v1666, 4294901760
  %v1668 = vsub.f32 %v1666, %v1667
  %v1669 = vand.u32 %v1668, 4294901760
  %1670 = vmatpush.msra.mxu0 %v1669
  %v1671 = vand.u32 %v145, 4294901760
  %v1672 = vsub.f32 %v145, %v1671
  %v1673 = vand.u32 %v1672, 4294901760
  %v1674 = vsub.f32 %v1672, %v1673
  %v1675 = vand.u32 %v1674, 4294901760
  %1676 = vmatpush.msra.mxu0 %v1675
  %v1677 = vand.u32 %v144, 4294901760
  %v1678 = vsub.f32 %v144, %v1677
  %v1679 = vand.u32 %v1678, 4294901760
  %v1680 = vsub.f32 %v1678, %v1679
  %v1681 = vand.u32 %v1680, 4294901760
  %1682 = vmatpush.msra.mxu0 %v1681
  %v1683 = vand.u32 %v143, 4294901760
  %v1684 = vsub.f32 %v143, %v1683
  %v1685 = vand.u32 %v1684, 4294901760
  %v1686 = vsub.f32 %v1684, %v1685
  %v1687 = vand.u32 %v1686, 4294901760
  %1688 = vmatpush.msra.mxu0 %v1687
  %v1689 = vand.u32 %v142, 4294901760
  %v1690 = vsub.f32 %v142, %v1689
  %v1691 = vand.u32 %v1690, 4294901760
  %v1692 = vsub.f32 %v1690, %v1691
  %v1693 = vand.u32 %v1692, 4294901760
  %1694 = vmatpush.msra.mxu0 %v1693
  %v1695 = vand.u32 %v141, 4294901760
  %v1696 = vsub.f32 %v141, %v1695
  %v1697 = vand.u32 %v1696, 4294901760
  %v1698 = vsub.f32 %v1696, %v1697
  %v1699 = vand.u32 %v1698, 4294901760
  %1700 = vmatpush.msra.mxu0 %v1699
  %v1701 = vand.u32 %v140, 4294901760
  %v1702 = vsub.f32 %v140, %v1701
  %v1703 = vand.u32 %v1702, 4294901760
  %v1704 = vsub.f32 %v1702, %v1703
  %v1705 = vand.u32 %v1704, 4294901760
  %1706 = vmatpush.msra.mxu0 %v1705
  %v1707 = vand.u32 %v139, 4294901760
  %v1708 = vsub.f32 %v139, %v1707
  %v1709 = vand.u32 %v1708, 4294901760
  %v1710 = vsub.f32 %v1708, %v1709
  %v1711 = vand.u32 %v1710, 4294901760
  %1712 = vmatpush.msra.mxu0 %v1711
  %v1713 = vand.u32 %v138, 4294901760
  %v1714 = vsub.f32 %v138, %v1713
  %v1715 = vand.u32 %v1714, 4294901760
  %v1716 = vsub.f32 %v1714, %v1715
  %v1717 = vand.u32 %v1716, 4294901760
  %1718 = vmatpush.msra.mxu0 %v1717
  %v1719 = vand.u32 %v137, 4294901760
  %v1720 = vsub.f32 %v137, %v1719
  %v1721 = vand.u32 %v1720, 4294901760
  %v1722 = vsub.f32 %v1720, %v1721
  %v1723 = vand.u32 %v1722, 4294901760
  %1724 = vmatpush.msra.mxu0 %v1723
  %v1725 = vand.u32 %v136, 4294901760
  %v1726 = vsub.f32 %v136, %v1725
  %v1727 = vand.u32 %v1726, 4294901760
  %v1728 = vsub.f32 %v1726, %v1727
  %v1729 = vand.u32 %v1728, 4294901760
  %1730 = vmatpush.msra.mxu0 %v1729
  %v1731 = vand.u32 %v135, 4294901760
  %v1732 = vsub.f32 %v135, %v1731
  %v1733 = vand.u32 %v1732, 4294901760
  %v1734 = vsub.f32 %v1732, %v1733
  %v1735 = vand.u32 %v1734, 4294901760
  %1736 = vmatpush.msra.mxu0 %v1735
  %v1737 = vand.u32 %v134, 4294901760
  %v1738 = vsub.f32 %v134, %v1737
  %v1739 = vand.u32 %v1738, 4294901760
  %v1740 = vsub.f32 %v1738, %v1739
  %v1741 = vand.u32 %v1740, 4294901760
  %1742 = vmatpush.msra.mxu0 %v1741
  %v1743 = vand.u32 %v133, 4294901760
  %v1744 = vsub.f32 %v133, %v1743
  %v1745 = vand.u32 %v1744, 4294901760
  %v1746 = vsub.f32 %v1744, %v1745
  %v1747 = vand.u32 %v1746, 4294901760
  %1748 = vmatpush.msra.mxu0 %v1747
  %v1749 = vand.u32 %v132, 4294901760
  %v1750 = vsub.f32 %v132, %v1749
  %v1751 = vand.u32 %v1750, 4294901760
  %v1752 = vsub.f32 %v1750, %v1751
  %v1753 = vand.u32 %v1752, 4294901760
  %1754 = vmatpush.msra.mxu0 %v1753
  %v1755 = vand.u32 %v131, 4294901760
  %v1756 = vsub.f32 %v131, %v1755
  %v1757 = vand.u32 %v1756, 4294901760
  %v1758 = vsub.f32 %v1756, %v1757
  %v1759 = vand.u32 %v1758, 4294901760
  %1760 = vmatpush.msra.mxu0 %v1759
  %v1761 = vand.u32 %v59, 4294901760
  %1762 = vmatmul.f32.gmra.mxu0 %v1761
  %v1763 = vpop.f32.mrf.mxu0
  %v1764 = vadd.f32 %v1663, %v1763
  %1765 = vdwg.mxu0
  %v1766 = vand.u32 %v146, 4294901760
  %v1767 = vsub.f32 %v146, %v1766
  %1768 = vmatpush.msra.mxu0 %v1767
  %v1769 = vand.u32 %v145, 4294901760
  %v1770 = vsub.f32 %v145, %v1769
  %1771 = vmatpush.msra.mxu0 %v1770
  %v1772 = vand.u32 %v144, 4294901760
  %v1773 = vsub.f32 %v144, %v1772
  %1774 = vmatpush.msra.mxu0 %v1773
  %v1775 = vand.u32 %v143, 4294901760
  %v1776 = vsub.f32 %v143, %v1775
  %1777 = vmatpush.msra.mxu0 %v1776
  %v1778 = vand.u32 %v142, 4294901760
  %v1779 = vsub.f32 %v142, %v1778
  %1780 = vmatpush.msra.mxu0 %v1779
  %v1781 = vand.u32 %v141, 4294901760
  %v1782 = vsub.f32 %v141, %v1781
  %1783 = vmatpush.msra.mxu0 %v1782
  %v1784 = vand.u32 %v140, 4294901760
  %v1785 = vsub.f32 %v140, %v1784
  %1786 = vmatpush.msra.mxu0 %v1785
  %v1787 = vand.u32 %v139, 4294901760
  %v1788 = vsub.f32 %v139, %v1787
  %1789 = vmatpush.msra.mxu0 %v1788
  %v1790 = vand.u32 %v138, 4294901760
  %v1791 = vsub.f32 %v138, %v1790
  %1792 = vmatpush.msra.mxu0 %v1791
  %v1793 = vand.u32 %v137, 4294901760
  %v1794 = vsub.f32 %v137, %v1793
  %1795 = vmatpush.msra.mxu0 %v1794
  %v1796 = vand.u32 %v136, 4294901760
  %v1797 = vsub.f32 %v136, %v1796
  %1798 = vmatpush.msra.mxu0 %v1797
  %v1799 = vand.u32 %v135, 4294901760
  %v1800 = vsub.f32 %v135, %v1799
  %1801 = vmatpush.msra.mxu0 %v1800
  %v1802 = vand.u32 %v134, 4294901760
  %v1803 = vsub.f32 %v134, %v1802
  %1804 = vmatpush.msra.mxu0 %v1803
  %v1805 = vand.u32 %v133, 4294901760
  %v1806 = vsub.f32 %v133, %v1805
  %1807 = vmatpush.msra.mxu0 %v1806
  %v1808 = vand.u32 %v132, 4294901760
  %v1809 = vsub.f32 %v132, %v1808
  %1810 = vmatpush.msra.mxu0 %v1809
  %v1811 = vand.u32 %v131, 4294901760
  %v1812 = vsub.f32 %v131, %v1811
  %1813 = vmatpush.msra.mxu0 %v1812
  %v1814 = vand.u32 %v59, 4294901760
  %v1815 = vsub.f32 %v59, %v1814
  %1816 = vmatmul.f32.gmra.mxu0 %v1815
  %v1817 = vpop.f32.mrf.mxu0
  %v1818 = vadd.f32 %v1764, %v1817
  %1819 = vdwg.mxu0
  %v1820 = vand.u32 %v146, 4294901760
  %1821 = vmatpush.msra.mxu0 %v1820
  %v1822 = vand.u32 %v145, 4294901760
  %1823 = vmatpush.msra.mxu0 %v1822
  %v1824 = vand.u32 %v144, 4294901760
  %1825 = vmatpush.msra.mxu0 %v1824
  %v1826 = vand.u32 %v143, 4294901760
  %1827 = vmatpush.msra.mxu0 %v1826
  %v1828 = vand.u32 %v142, 4294901760
  %1829 = vmatpush.msra.mxu0 %v1828
  %v1830 = vand.u32 %v141, 4294901760
  %1831 = vmatpush.msra.mxu0 %v1830
  %v1832 = vand.u32 %v140, 4294901760
  %1833 = vmatpush.msra.mxu0 %v1832
  %v1834 = vand.u32 %v139, 4294901760
  %1835 = vmatpush.msra.mxu0 %v1834
  %v1836 = vand.u32 %v138, 4294901760
  %1837 = vmatpush.msra.mxu0 %v1836
  %v1838 = vand.u32 %v137, 4294901760
  %1839 = vmatpush.msra.mxu0 %v1838
  %v1840 = vand.u32 %v136, 4294901760
  %1841 = vmatpush.msra.mxu0 %v1840
  %v1842 = vand.u32 %v135, 4294901760
  %1843 = vmatpush.msra.mxu0 %v1842
  %v1844 = vand.u32 %v134, 4294901760
  %1845 = vmatpush.msra.mxu0 %v1844
  %v1846 = vand.u32 %v133, 4294901760
  %1847 = vmatpush.msra.mxu0 %v1846
  %v1848 = vand.u32 %v132, 4294901760
  %1849 = vmatpush.msra.mxu0 %v1848
  %v1850 = vand.u32 %v131, 4294901760
  %1851 = vmatpush.msra.mxu0 %v1850
  %v1852 = vand.u32 %v59, 4294901760
  %v1853 = vsub.f32 %v59, %v1852
  %v1854 = vand.u32 %v1853, 4294901760
  %1855 = vmatmul.f32.gmra.mxu0 %v1854
  %v1856 = vpop.f32.mrf.mxu0
  %v1857 = vadd.f32 %v1818, %v1856
  %1858 = vdwg.mxu0
  %v1859 = vand.u32 %v146, 4294901760
  %v1860 = vsub.f32 %v146, %v1859
  %v1861 = vand.u32 %v1860, 4294901760
  %1862 = vmatpush.msra.mxu0 %v1861
  %v1863 = vand.u32 %v145, 4294901760
  %v1864 = vsub.f32 %v145, %v1863
  %v1865 = vand.u32 %v1864, 4294901760
  %1866 = vmatpush.msra.mxu0 %v1865
  %v1867 = vand.u32 %v144, 4294901760
  %v1868 = vsub.f32 %v144, %v1867
  %v1869 = vand.u32 %v1868, 4294901760
  %1870 = vmatpush.msra.mxu0 %v1869
  %v1871 = vand.u32 %v143, 4294901760
  %v1872 = vsub.f32 %v143, %v1871
  %v1873 = vand.u32 %v1872, 4294901760
  %1874 = vmatpush.msra.mxu0 %v1873
  %v1875 = vand.u32 %v142, 4294901760
  %v1876 = vsub.f32 %v142, %v1875
  %v1877 = vand.u32 %v1876, 4294901760
  %1878 = vmatpush.msra.mxu0 %v1877
  %v1879 = vand.u32 %v141, 4294901760
  %v1880 = vsub.f32 %v141, %v1879
  %v1881 = vand.u32 %v1880, 4294901760
  %1882 = vmatpush.msra.mxu0 %v1881
  %v1883 = vand.u32 %v140, 4294901760
  %v1884 = vsub.f32 %v140, %v1883
  %v1885 = vand.u32 %v1884, 4294901760
  %1886 = vmatpush.msra.mxu0 %v1885
  %v1887 = vand.u32 %v139, 4294901760
  %v1888 = vsub.f32 %v139, %v1887
  %v1889 = vand.u32 %v1888, 4294901760
  %1890 = vmatpush.msra.mxu0 %v1889
  %v1891 = vand.u32 %v138, 4294901760
  %v1892 = vsub.f32 %v138, %v1891
  %v1893 = vand.u32 %v1892, 4294901760
  %1894 = vmatpush.msra.mxu0 %v1893
  %v1895 = vand.u32 %v137, 4294901760
  %v1896 = vsub.f32 %v137, %v1895
  %v1897 = vand.u32 %v1896, 4294901760
  %1898 = vmatpush.msra.mxu0 %v1897
  %v1899 = vand.u32 %v136, 4294901760
  %v1900 = vsub.f32 %v136, %v1899
  %v1901 = vand.u32 %v1900, 4294901760
  %1902 = vmatpush.msra.mxu0 %v1901
  %v1903 = vand.u32 %v135, 4294901760
  %v1904 = vsub.f32 %v135, %v1903
  %v1905 = vand.u32 %v1904, 4294901760
  %1906 = vmatpush.msra.mxu0 %v1905
  %v1907 = vand.u32 %v134, 4294901760
  %v1908 = vsub.f32 %v134, %v1907
  %v1909 = vand.u32 %v1908, 4294901760
  %1910 = vmatpush.msra.mxu0 %v1909
  %v1911 = vand.u32 %v133, 4294901760
  %v1912 = vsub.f32 %v133, %v1911
  %v1913 = vand.u32 %v1912, 4294901760
  %1914 = vmatpush.msra.mxu0 %v1913
  %v1915 = vand.u32 %v132, 4294901760
  %v1916 = vsub.f32 %v132, %v1915
  %v1917 = vand.u32 %v1916, 4294901760
  %1918 = vmatpush.msra.mxu0 %v1917
  %v1919 = vand.u32 %v131, 4294901760
  %v1920 = vsub.f32 %v131, %v1919
  %v1921 = vand.u32 %v1920, 4294901760
  %1922 = vmatpush.msra.mxu0 %v1921
  %v1923 = vand.u32 %v59, 4294901760
  %1924 = vmatmul.f32.gmra.mxu0 %v1923
  %v1925 = vpop.f32.mrf.mxu0
  %v1926 = vadd.f32 %v1857, %v1925
  %1927 = vdwg.mxu0
  %v1928 = vand.u32 %v146, 4294901760
  %1929 = vmatpush.msra.mxu0 %v1928
  %v1930 = vand.u32 %v145, 4294901760
  %1931 = vmatpush.msra.mxu0 %v1930
  %v1932 = vand.u32 %v144, 4294901760
  %1933 = vmatpush.msra.mxu0 %v1932
  %v1934 = vand.u32 %v143, 4294901760
  %1935 = vmatpush.msra.mxu0 %v1934
  %v1936 = vand.u32 %v142, 4294901760
  %1937 = vmatpush.msra.mxu0 %v1936
  %v1938 = vand.u32 %v141, 4294901760
  %1939 = vmatpush.msra.mxu0 %v1938
  %v1940 = vand.u32 %v140, 4294901760
  %1941 = vmatpush.msra.mxu0 %v1940
  %v1942 = vand.u32 %v139, 4294901760
  %1943 = vmatpush.msra.mxu0 %v1942
  %v1944 = vand.u32 %v138, 4294901760
  %1945 = vmatpush.msra.mxu0 %v1944
  %v1946 = vand.u32 %v137, 4294901760
  %1947 = vmatpush.msra.mxu0 %v1946
  %v1948 = vand.u32 %v136, 4294901760
  %1949 = vmatpush.msra.mxu0 %v1948
  %v1950 = vand.u32 %v135, 4294901760
  %1951 = vmatpush.msra.mxu0 %v1950
  %v1952 = vand.u32 %v134, 4294901760
  %1953 = vmatpush.msra.mxu0 %v1952
  %v1954 = vand.u32 %v133, 4294901760
  %1955 = vmatpush.msra.mxu0 %v1954
  %v1956 = vand.u32 %v132, 4294901760
  %1957 = vmatpush.msra.mxu0 %v1956
  %v1958 = vand.u32 %v131, 4294901760
  %1959 = vmatpush.msra.mxu0 %v1958
  %v1960 = vand.u32 %v59, 4294901760
  %1961 = vmatmul.f32.gmra.mxu0 %v1960
  %v1962 = vpop.f32.mrf.mxu0
  %v1963 = vadd.f32 %v1926, %v1962
  %1964 = vdwg.mxu0
  %v1965 = vand.u32 %v162, 4294901760
  %1966 = vmatpush.msra.mxu0 %v1965
  %v1967 = vand.u32 %v161, 4294901760
  %1968 = vmatpush.msra.mxu0 %v1967
  %v1969 = vand.u32 %v160, 4294901760
  %1970 = vmatpush.msra.mxu0 %v1969
  %v1971 = vand.u32 %v159, 4294901760
  %1972 = vmatpush.msra.mxu0 %v1971
  %v1973 = vand.u32 %v158, 4294901760
  %1974 = vmatpush.msra.mxu0 %v1973
  %v1975 = vand.u32 %v157, 4294901760
  %1976 = vmatpush.msra.mxu0 %v1975
  %v1977 = vand.u32 %v156, 4294901760
  %1978 = vmatpush.msra.mxu0 %v1977
  %v1979 = vand.u32 %v155, 4294901760
  %1980 = vmatpush.msra.mxu0 %v1979
  %v1981 = vand.u32 %v154, 4294901760
  %1982 = vmatpush.msra.mxu0 %v1981
  %v1983 = vand.u32 %v153, 4294901760
  %1984 = vmatpush.msra.mxu0 %v1983
  %v1985 = vand.u32 %v152, 4294901760
  %1986 = vmatpush.msra.mxu0 %v1985
  %v1987 = vand.u32 %v151, 4294901760
  %1988 = vmatpush.msra.mxu0 %v1987
  %v1989 = vand.u32 %v150, 4294901760
  %1990 = vmatpush.msra.mxu0 %v1989
  %v1991 = vand.u32 %v149, 4294901760
  %1992 = vmatpush.msra.mxu0 %v1991
  %v1993 = vand.u32 %v148, 4294901760
  %1994 = vmatpush.msra.mxu0 %v1993
  %v1995 = vand.u32 %v147, 4294901760
  %1996 = vmatpush.msra.mxu0 %v1995
  %v1997 = vand.u32 %v60, 4294901760
  %v1998 = vsub.f32 %v60, %v1997
  %v1999 = vand.u32 %v1998, 4294901760
  %v2000 = vsub.f32 %v1998, %v1999
  %v2001 = vand.u32 %v2000, 4294901760
  %2002 = vmatmul.f32.gmra.mxu0 %v2001
  %v2003 = vpop.f32.mrf.mxu0
  %v2004 = vadd.f32 %v1963, %v2003
  %2005 = vdwg.mxu0
  %v2006 = vand.u32 %v162, 4294901760
  %v2007 = vsub.f32 %v162, %v2006
  %v2008 = vand.u32 %v2007, 4294901760
  %v2009 = vsub.f32 %v2007, %v2008
  %v2010 = vand.u32 %v2009, 4294901760
  %2011 = vmatpush.msra.mxu0 %v2010
  %v2012 = vand.u32 %v161, 4294901760
  %v2013 = vsub.f32 %v161, %v2012
  %v2014 = vand.u32 %v2013, 4294901760
  %v2015 = vsub.f32 %v2013, %v2014
  %v2016 = vand.u32 %v2015, 4294901760
  %2017 = vmatpush.msra.mxu0 %v2016
  %v2018 = vand.u32 %v160, 4294901760
  %v2019 = vsub.f32 %v160, %v2018
  %v2020 = vand.u32 %v2019, 4294901760
  %v2021 = vsub.f32 %v2019, %v2020
  %v2022 = vand.u32 %v2021, 4294901760
  %2023 = vmatpush.msra.mxu0 %v2022
  %v2024 = vand.u32 %v159, 4294901760
  %v2025 = vsub.f32 %v159, %v2024
  %v2026 = vand.u32 %v2025, 4294901760
  %v2027 = vsub.f32 %v2025, %v2026
  %v2028 = vand.u32 %v2027, 4294901760
  %2029 = vmatpush.msra.mxu0 %v2028
  %v2030 = vand.u32 %v158, 4294901760
  %v2031 = vsub.f32 %v158, %v2030
  %v2032 = vand.u32 %v2031, 4294901760
  %v2033 = vsub.f32 %v2031, %v2032
  %v2034 = vand.u32 %v2033, 4294901760
  %2035 = vmatpush.msra.mxu0 %v2034
  %v2036 = vand.u32 %v157, 4294901760
  %v2037 = vsub.f32 %v157, %v2036
  %v2038 = vand.u32 %v2037, 4294901760
  %v2039 = vsub.f32 %v2037, %v2038
  %v2040 = vand.u32 %v2039, 4294901760
  %2041 = vmatpush.msra.mxu0 %v2040
  %v2042 = vand.u32 %v156, 4294901760
  %v2043 = vsub.f32 %v156, %v2042
  %v2044 = vand.u32 %v2043, 4294901760
  %v2045 = vsub.f32 %v2043, %v2044
  %v2046 = vand.u32 %v2045, 4294901760
  %2047 = vmatpush.msra.mxu0 %v2046
  %v2048 = vand.u32 %v155, 4294901760
  %v2049 = vsub.f32 %v155, %v2048
  %v2050 = vand.u32 %v2049, 4294901760
  %v2051 = vsub.f32 %v2049, %v2050
  %v2052 = vand.u32 %v2051, 4294901760
  %2053 = vmatpush.msra.mxu0 %v2052
  %v2054 = vand.u32 %v154, 4294901760
  %v2055 = vsub.f32 %v154, %v2054
  %v2056 = vand.u32 %v2055, 4294901760
  %v2057 = vsub.f32 %v2055, %v2056
  %v2058 = vand.u32 %v2057, 4294901760
  %2059 = vmatpush.msra.mxu0 %v2058
  %v2060 = vand.u32 %v153, 4294901760
  %v2061 = vsub.f32 %v153, %v2060
  %v2062 = vand.u32 %v2061, 4294901760
  %v2063 = vsub.f32 %v2061, %v2062
  %v2064 = vand.u32 %v2063, 4294901760
  %2065 = vmatpush.msra.mxu0 %v2064
  %v2066 = vand.u32 %v152, 4294901760
  %v2067 = vsub.f32 %v152, %v2066
  %v2068 = vand.u32 %v2067, 4294901760
  %v2069 = vsub.f32 %v2067, %v2068
  %v2070 = vand.u32 %v2069, 4294901760
  %2071 = vmatpush.msra.mxu0 %v2070
  %v2072 = vand.u32 %v151, 4294901760
  %v2073 = vsub.f32 %v151, %v2072
  %v2074 = vand.u32 %v2073, 4294901760
  %v2075 = vsub.f32 %v2073, %v2074
  %v2076 = vand.u32 %v2075, 4294901760
  %2077 = vmatpush.msra.mxu0 %v2076
  %v2078 = vand.u32 %v150, 4294901760
  %v2079 = vsub.f32 %v150, %v2078
  %v2080 = vand.u32 %v2079, 4294901760
  %v2081 = vsub.f32 %v2079, %v2080
  %v2082 = vand.u32 %v2081, 4294901760
  %2083 = vmatpush.msra.mxu0 %v2082
  %v2084 = vand.u32 %v149, 4294901760
  %v2085 = vsub.f32 %v149, %v2084
  %v2086 = vand.u32 %v2085, 4294901760
  %v2087 = vsub.f32 %v2085, %v2086
  %v2088 = vand.u32 %v2087, 4294901760
  %2089 = vmatpush.msra.mxu0 %v2088
  %v2090 = vand.u32 %v148, 4294901760
  %v2091 = vsub.f32 %v148, %v2090
  %v2092 = vand.u32 %v2091, 4294901760
  %v2093 = vsub.f32 %v2091, %v2092
  %v2094 = vand.u32 %v2093, 4294901760
  %2095 = vmatpush.msra.mxu0 %v2094
  %v2096 = vand.u32 %v147, 4294901760
  %v2097 = vsub.f32 %v147, %v2096
  %v2098 = vand.u32 %v2097, 4294901760
  %v2099 = vsub.f32 %v2097, %v2098
  %v2100 = vand.u32 %v2099, 4294901760
  %2101 = vmatpush.msra.mxu0 %v2100
  %v2102 = vand.u32 %v60, 4294901760
  %2103 = vmatmul.f32.gmra.mxu0 %v2102
  %v2104 = vpop.f32.mrf.mxu0
  %v2105 = vadd.f32 %v2004, %v2104
  %2106 = vdwg.mxu0
  %v2107 = vand.u32 %v162, 4294901760
  %v2108 = vsub.f32 %v162, %v2107
  %2109 = vmatpush.msra.mxu0 %v2108
  %v2110 = vand.u32 %v161, 4294901760
  %v2111 = vsub.f32 %v161, %v2110
  %2112 = vmatpush.msra.mxu0 %v2111
  %v2113 = vand.u32 %v160, 4294901760
  %v2114 = vsub.f32 %v160, %v2113
  %2115 = vmatpush.msra.mxu0 %v2114
  %v2116 = vand.u32 %v159, 4294901760
  %v2117 = vsub.f32 %v159, %v2116
  %2118 = vmatpush.msra.mxu0 %v2117
  %v2119 = vand.u32 %v158, 4294901760
  %v2120 = vsub.f32 %v158, %v2119
  %2121 = vmatpush.msra.mxu0 %v2120
  %v2122 = vand.u32 %v157, 4294901760
  %v2123 = vsub.f32 %v157, %v2122
  %2124 = vmatpush.msra.mxu0 %v2123
  %v2125 = vand.u32 %v156, 4294901760
  %v2126 = vsub.f32 %v156, %v2125
  %2127 = vmatpush.msra.mxu0 %v2126
  %v2128 = vand.u32 %v155, 4294901760
  %v2129 = vsub.f32 %v155, %v2128
  %2130 = vmatpush.msra.mxu0 %v2129
  %v2131 = vand.u32 %v154, 4294901760
  %v2132 = vsub.f32 %v154, %v2131
  %2133 = vmatpush.msra.mxu0 %v2132
  %v2134 = vand.u32 %v153, 4294901760
  %v2135 = vsub.f32 %v153, %v2134
  %2136 = vmatpush.msra.mxu0 %v2135
  %v2137 = vand.u32 %v152, 4294901760
  %v2138 = vsub.f32 %v152, %v2137
  %2139 = vmatpush.msra.mxu0 %v2138
  %v2140 = vand.u32 %v151, 4294901760
  %v2141 = vsub.f32 %v151, %v2140
  %2142 = vmatpush.msra.mxu0 %v2141
  %v2143 = vand.u32 %v150, 4294901760
  %v2144 = vsub.f32 %v150, %v2143
  %2145 = vmatpush.msra.mxu0 %v2144
  %v2146 = vand.u32 %v149, 4294901760
  %v2147 = vsub.f32 %v149, %v2146
  %2148 = vmatpush.msra.mxu0 %v2147
  %v2149 = vand.u32 %v148, 4294901760
  %v2150 = vsub.f32 %v148, %v2149
  %2151 = vmatpush.msra.mxu0 %v2150
  %v2152 = vand.u32 %v147, 4294901760
  %v2153 = vsub.f32 %v147, %v2152
  %2154 = vmatpush.msra.mxu0 %v2153
  %v2155 = vand.u32 %v60, 4294901760
  %v2156 = vsub.f32 %v60, %v2155
  %2157 = vmatmul.f32.gmra.mxu0 %v2156
  %v2158 = vpop.f32.mrf.mxu0
  %v2159 = vadd.f32 %v2105, %v2158
  %2160 = vdwg.mxu0
  %v2161 = vand.u32 %v162, 4294901760
  %2162 = vmatpush.msra.mxu0 %v2161
  %v2163 = vand.u32 %v161, 4294901760
  %2164 = vmatpush.msra.mxu0 %v2163
  %v2165 = vand.u32 %v160, 4294901760
  %2166 = vmatpush.msra.mxu0 %v2165
  %v2167 = vand.u32 %v159, 4294901760
  %2168 = vmatpush.msra.mxu0 %v2167
  %v2169 = vand.u32 %v158, 4294901760
  %2170 = vmatpush.msra.mxu0 %v2169
  %v2171 = vand.u32 %v157, 4294901760
  %2172 = vmatpush.msra.mxu0 %v2171
  %v2173 = vand.u32 %v156, 4294901760
  %2174 = vmatpush.msra.mxu0 %v2173
  %v2175 = vand.u32 %v155, 4294901760
  %2176 = vmatpush.msra.mxu0 %v2175
  %v2177 = vand.u32 %v154, 4294901760
  %2178 = vmatpush.msra.mxu0 %v2177
  %v2179 = vand.u32 %v153, 4294901760
  %2180 = vmatpush.msra.mxu0 %v2179
  %v2181 = vand.u32 %v152, 4294901760
  %2182 = vmatpush.msra.mxu0 %v2181
  %v2183 = vand.u32 %v151, 4294901760
  %2184 = vmatpush.msra.mxu0 %v2183
  %v2185 = vand.u32 %v150, 4294901760
  %2186 = vmatpush.msra.mxu0 %v2185
  %v2187 = vand.u32 %v149, 4294901760
  %2188 = vmatpush.msra.mxu0 %v2187
  %v2189 = vand.u32 %v148, 4294901760
  %2190 = vmatpush.msra.mxu0 %v2189
  %v2191 = vand.u32 %v147, 4294901760
  %2192 = vmatpush.msra.mxu0 %v2191
  %v2193 = vand.u32 %v60, 4294901760
  %v2194 = vsub.f32 %v60, %v2193
  %v2195 = vand.u32 %v2194, 4294901760
  %2196 = vmatmul.f32.gmra.mxu0 %v2195
  %v2197 = vpop.f32.mrf.mxu0
  %v2198 = vadd.f32 %v2159, %v2197
  %2199 = vdwg.mxu0
  %v2200 = vand.u32 %v162, 4294901760
  %v2201 = vsub.f32 %v162, %v2200
  %v2202 = vand.u32 %v2201, 4294901760
  %2203 = vmatpush.msra.mxu0 %v2202
  %v2204 = vand.u32 %v161, 4294901760
  %v2205 = vsub.f32 %v161, %v2204
  %v2206 = vand.u32 %v2205, 4294901760
  %2207 = vmatpush.msra.mxu0 %v2206
  %v2208 = vand.u32 %v160, 4294901760
  %v2209 = vsub.f32 %v160, %v2208
  %v2210 = vand.u32 %v2209, 4294901760
  %2211 = vmatpush.msra.mxu0 %v2210
  %v2212 = vand.u32 %v159, 4294901760
  %v2213 = vsub.f32 %v159, %v2212
  %v2214 = vand.u32 %v2213, 4294901760
  %2215 = vmatpush.msra.mxu0 %v2214
  %v2216 = vand.u32 %v158, 4294901760
  %v2217 = vsub.f32 %v158, %v2216
  %v2218 = vand.u32 %v2217, 4294901760
  %2219 = vmatpush.msra.mxu0 %v2218
  %v2220 = vand.u32 %v157, 4294901760
  %v2221 = vsub.f32 %v157, %v2220
  %v2222 = vand.u32 %v2221, 4294901760
  %2223 = vmatpush.msra.mxu0 %v2222
  %v2224 = vand.u32 %v156, 4294901760
  %v2225 = vsub.f32 %v156, %v2224
  %v2226 = vand.u32 %v2225, 4294901760
  %2227 = vmatpush.msra.mxu0 %v2226
  %v2228 = vand.u32 %v155, 4294901760
  %v2229 = vsub.f32 %v155, %v2228
  %v2230 = vand.u32 %v2229, 4294901760
  %2231 = vmatpush.msra.mxu0 %v2230
  %v2232 = vand.u32 %v154, 4294901760
  %v2233 = vsub.f32 %v154, %v2232
  %v2234 = vand.u32 %v2233, 4294901760
  %2235 = vmatpush.msra.mxu0 %v2234
  %v2236 = vand.u32 %v153, 4294901760
  %v2237 = vsub.f32 %v153, %v2236
  %v2238 = vand.u32 %v2237, 4294901760
  %2239 = vmatpush.msra.mxu0 %v2238
  %v2240 = vand.u32 %v152, 4294901760
  %v2241 = vsub.f32 %v152, %v2240
  %v2242 = vand.u32 %v2241, 4294901760
  %2243 = vmatpush.msra.mxu0 %v2242
  %v2244 = vand.u32 %v151, 4294901760
  %v2245 = vsub.f32 %v151, %v2244
  %v2246 = vand.u32 %v2245, 4294901760
  %2247 = vmatpush.msra.mxu0 %v2246
  %v2248 = vand.u32 %v150, 4294901760
  %v2249 = vsub.f32 %v150, %v2248
  %v2250 = vand.u32 %v2249, 4294901760
  %2251 = vmatpush.msra.mxu0 %v2250
  %v2252 = vand.u32 %v149, 4294901760
  %v2253 = vsub.f32 %v149, %v2252
  %v2254 = vand.u32 %v2253, 4294901760
  %2255 = vmatpush.msra.mxu0 %v2254
  %v2256 = vand.u32 %v148, 4294901760
  %v2257 = vsub.f32 %v148, %v2256
  %v2258 = vand.u32 %v2257, 4294901760
  %2259 = vmatpush.msra.mxu0 %v2258
  %v2260 = vand.u32 %v147, 4294901760
  %v2261 = vsub.f32 %v147, %v2260
  %v2262 = vand.u32 %v2261, 4294901760
  %2263 = vmatpush.msra.mxu0 %v2262
  %v2264 = vand.u32 %v60, 4294901760
  %2265 = vmatmul.f32.gmra.mxu0 %v2264
  %v2266 = vpop.f32.mrf.mxu0
  %v2267 = vadd.f32 %v2198, %v2266
  %2268 = vdwg.mxu0
  %v2269 = vand.u32 %v162, 4294901760
  %2270 = vmatpush.msra.mxu0 %v2269
  %v2271 = vand.u32 %v161, 4294901760
  %2272 = vmatpush.msra.mxu0 %v2271
  %v2273 = vand.u32 %v160, 4294901760
  %2274 = vmatpush.msra.mxu0 %v2273
  %v2275 = vand.u32 %v159, 4294901760
  %2276 = vmatpush.msra.mxu0 %v2275
  %v2277 = vand.u32 %v158, 4294901760
  %2278 = vmatpush.msra.mxu0 %v2277
  %v2279 = vand.u32 %v157, 4294901760
  %2280 = vmatpush.msra.mxu0 %v2279
  %v2281 = vand.u32 %v156, 4294901760
  %2282 = vmatpush.msra.mxu0 %v2281
  %v2283 = vand.u32 %v155, 4294901760
  %2284 = vmatpush.msra.mxu0 %v2283
  %v2285 = vand.u32 %v154, 4294901760
  %2286 = vmatpush.msra.mxu0 %v2285
  %v2287 = vand.u32 %v153, 4294901760
  %2288 = vmatpush.msra.mxu0 %v2287
  %v2289 = vand.u32 %v152, 4294901760
  %2290 = vmatpush.msra.mxu0 %v2289
  %v2291 = vand.u32 %v151, 4294901760
  %2292 = vmatpush.msra.mxu0 %v2291
  %v2293 = vand.u32 %v150, 4294901760
  %2294 = vmatpush.msra.mxu0 %v2293
  %v2295 = vand.u32 %v149, 4294901760
  %2296 = vmatpush.msra.mxu0 %v2295
  %v2297 = vand.u32 %v148, 4294901760
  %2298 = vmatpush.msra.mxu0 %v2297
  %v2299 = vand.u32 %v147, 4294901760
  %2300 = vmatpush.msra.mxu0 %v2299
  %v2301 = vand.u32 %v60, 4294901760
  %2302 = vmatmul.f32.gmra.mxu0 %v2301
  %v2303 = vpop.f32.mrf.mxu0
  %v2304 = vadd.f32 %v2267, %v2303
  %2305 = vdwg.mxu0
  %v2306 = vand.u32 %v178, 4294901760
  %2307 = vmatpush.msra.mxu0 %v2306
  %v2308 = vand.u32 %v177, 4294901760
  %2309 = vmatpush.msra.mxu0 %v2308
  %v2310 = vand.u32 %v176, 4294901760
  %2311 = vmatpush.msra.mxu0 %v2310
  %v2312 = vand.u32 %v175, 4294901760
  %2313 = vmatpush.msra.mxu0 %v2312
  %v2314 = vand.u32 %v174, 4294901760
  %2315 = vmatpush.msra.mxu0 %v2314
  %v2316 = vand.u32 %v173, 4294901760
  %2317 = vmatpush.msra.mxu0 %v2316
  %v2318 = vand.u32 %v172, 4294901760
  %2319 = vmatpush.msra.mxu0 %v2318
  %v2320 = vand.u32 %v171, 4294901760
  %2321 = vmatpush.msra.mxu0 %v2320
  %v2322 = vand.u32 %v170, 4294901760
  %2323 = vmatpush.msra.mxu0 %v2322
  %v2324 = vand.u32 %v169, 4294901760
  %2325 = vmatpush.msra.mxu0 %v2324
  %v2326 = vand.u32 %v168, 4294901760
  %2327 = vmatpush.msra.mxu0 %v2326
  %v2328 = vand.u32 %v167, 4294901760
  %2329 = vmatpush.msra.mxu0 %v2328
  %v2330 = vand.u32 %v166, 4294901760
  %2331 = vmatpush.msra.mxu0 %v2330
  %v2332 = vand.u32 %v165, 4294901760
  %2333 = vmatpush.msra.mxu0 %v2332
  %v2334 = vand.u32 %v164, 4294901760
  %2335 = vmatpush.msra.mxu0 %v2334
  %v2336 = vand.u32 %v163, 4294901760
  %2337 = vmatpush.msra.mxu0 %v2336
  %v2338 = vand.u32 %v61, 4294901760
  %v2339 = vsub.f32 %v61, %v2338
  %v2340 = vand.u32 %v2339, 4294901760
  %v2341 = vsub.f32 %v2339, %v2340
  %v2342 = vand.u32 %v2341, 4294901760
  %2343 = vmatmul.f32.gmra.mxu0 %v2342
  %v2344 = vpop.f32.mrf.mxu0
  %v2345 = vadd.f32 0.0, %v2344
  %2346 = vdwg.mxu0
  %v2347 = vand.u32 %v178, 4294901760
  %v2348 = vsub.f32 %v178, %v2347
  %v2349 = vand.u32 %v2348, 4294901760
  %v2350 = vsub.f32 %v2348, %v2349
  %v2351 = vand.u32 %v2350, 4294901760
  %2352 = vmatpush.msra.mxu0 %v2351
  %v2353 = vand.u32 %v177, 4294901760
  %v2354 = vsub.f32 %v177, %v2353
  %v2355 = vand.u32 %v2354, 4294901760
  %v2356 = vsub.f32 %v2354, %v2355
  %v2357 = vand.u32 %v2356, 4294901760
  %2358 = vmatpush.msra.mxu0 %v2357
  %v2359 = vand.u32 %v176, 4294901760
  %v2360 = vsub.f32 %v176, %v2359
  %v2361 = vand.u32 %v2360, 4294901760
  %v2362 = vsub.f32 %v2360, %v2361
  %v2363 = vand.u32 %v2362, 4294901760
  %2364 = vmatpush.msra.mxu0 %v2363
  %v2365 = vand.u32 %v175, 4294901760
  %v2366 = vsub.f32 %v175, %v2365
  %v2367 = vand.u32 %v2366, 4294901760
  %v2368 = vsub.f32 %v2366, %v2367
  %v2369 = vand.u32 %v2368, 4294901760
  %2370 = vmatpush.msra.mxu0 %v2369
  %v2371 = vand.u32 %v174, 4294901760
  %v2372 = vsub.f32 %v174, %v2371
  %v2373 = vand.u32 %v2372, 4294901760
  %v2374 = vsub.f32 %v2372, %v2373
  %v2375 = vand.u32 %v2374, 4294901760
  %2376 = vmatpush.msra.mxu0 %v2375
  %v2377 = vand.u32 %v173, 4294901760
  %v2378 = vsub.f32 %v173, %v2377
  %v2379 = vand.u32 %v2378, 4294901760
  %v2380 = vsub.f32 %v2378, %v2379
  %v2381 = vand.u32 %v2380, 4294901760
  %2382 = vmatpush.msra.mxu0 %v2381
  %v2383 = vand.u32 %v172, 4294901760
  %v2384 = vsub.f32 %v172, %v2383
  %v2385 = vand.u32 %v2384, 4294901760
  %v2386 = vsub.f32 %v2384, %v2385
  %v2387 = vand.u32 %v2386, 4294901760
  %2388 = vmatpush.msra.mxu0 %v2387
  %v2389 = vand.u32 %v171, 4294901760
  %v2390 = vsub.f32 %v171, %v2389
  %v2391 = vand.u32 %v2390, 4294901760
  %v2392 = vsub.f32 %v2390, %v2391
  %v2393 = vand.u32 %v2392, 4294901760
  %2394 = vmatpush.msra.mxu0 %v2393
  %v2395 = vand.u32 %v170, 4294901760
  %v2396 = vsub.f32 %v170, %v2395
  %v2397 = vand.u32 %v2396, 4294901760
  %v2398 = vsub.f32 %v2396, %v2397
  %v2399 = vand.u32 %v2398, 4294901760
  %2400 = vmatpush.msra.mxu0 %v2399
  %v2401 = vand.u32 %v169, 4294901760
  %v2402 = vsub.f32 %v169, %v2401
  %v2403 = vand.u32 %v2402, 4294901760
  %v2404 = vsub.f32 %v2402, %v2403
  %v2405 = vand.u32 %v2404, 4294901760
  %2406 = vmatpush.msra.mxu0 %v2405
  %v2407 = vand.u32 %v168, 4294901760
  %v2408 = vsub.f32 %v168, %v2407
  %v2409 = vand.u32 %v2408, 4294901760
  %v2410 = vsub.f32 %v2408, %v2409
  %v2411 = vand.u32 %v2410, 4294901760
  %2412 = vmatpush.msra.mxu0 %v2411
  %v2413 = vand.u32 %v167, 4294901760
  %v2414 = vsub.f32 %v167, %v2413
  %v2415 = vand.u32 %v2414, 4294901760
  %v2416 = vsub.f32 %v2414, %v2415
  %v2417 = vand.u32 %v2416, 4294901760
  %2418 = vmatpush.msra.mxu0 %v2417
  %v2419 = vand.u32 %v166, 4294901760
  %v2420 = vsub.f32 %v166, %v2419
  %v2421 = vand.u32 %v2420, 4294901760
  %v2422 = vsub.f32 %v2420, %v2421
  %v2423 = vand.u32 %v2422, 4294901760
  %2424 = vmatpush.msra.mxu0 %v2423
  %v2425 = vand.u32 %v165, 4294901760
  %v2426 = vsub.f32 %v165, %v2425
  %v2427 = vand.u32 %v2426, 4294901760
  %v2428 = vsub.f32 %v2426, %v2427
  %v2429 = vand.u32 %v2428, 4294901760
  %2430 = vmatpush.msra.mxu0 %v2429
  %v2431 = vand.u32 %v164, 4294901760
  %v2432 = vsub.f32 %v164, %v2431
  %v2433 = vand.u32 %v2432, 4294901760
  %v2434 = vsub.f32 %v2432, %v2433
  %v2435 = vand.u32 %v2434, 4294901760
  %2436 = vmatpush.msra.mxu0 %v2435
  %v2437 = vand.u32 %v163, 4294901760
  %v2438 = vsub.f32 %v163, %v2437
  %v2439 = vand.u32 %v2438, 4294901760
  %v2440 = vsub.f32 %v2438, %v2439
  %v2441 = vand.u32 %v2440, 4294901760
  %2442 = vmatpush.msra.mxu0 %v2441
  %v2443 = vand.u32 %v61, 4294901760
  %2444 = vmatmul.f32.gmra.mxu0 %v2443
  %v2445 = vpop.f32.mrf.mxu0
  %v2446 = vadd.f32 %v2345, %v2445
  %2447 = vdwg.mxu0
  %v2448 = vand.u32 %v178, 4294901760
  %v2449 = vsub.f32 %v178, %v2448
  %2450 = vmatpush.msra.mxu0 %v2449
  %v2451 = vand.u32 %v177, 4294901760
  %v2452 = vsub.f32 %v177, %v2451
  %2453 = vmatpush.msra.mxu0 %v2452
  %v2454 = vand.u32 %v176, 4294901760
  %v2455 = vsub.f32 %v176, %v2454
  %2456 = vmatpush.msra.mxu0 %v2455
  %v2457 = vand.u32 %v175, 4294901760
  %v2458 = vsub.f32 %v175, %v2457
  %2459 = vmatpush.msra.mxu0 %v2458
  %v2460 = vand.u32 %v174, 4294901760
  %v2461 = vsub.f32 %v174, %v2460
  %2462 = vmatpush.msra.mxu0 %v2461
  %v2463 = vand.u32 %v173, 4294901760
  %v2464 = vsub.f32 %v173, %v2463
  %2465 = vmatpush.msra.mxu0 %v2464
  %v2466 = vand.u32 %v172, 4294901760
  %v2467 = vsub.f32 %v172, %v2466
  %2468 = vmatpush.msra.mxu0 %v2467
  %v2469 = vand.u32 %v171, 4294901760
  %v2470 = vsub.f32 %v171, %v2469
  %2471 = vmatpush.msra.mxu0 %v2470
  %v2472 = vand.u32 %v170, 4294901760
  %v2473 = vsub.f32 %v170, %v2472
  %2474 = vmatpush.msra.mxu0 %v2473
  %v2475 = vand.u32 %v169, 4294901760
  %v2476 = vsub.f32 %v169, %v2475
  %2477 = vmatpush.msra.mxu0 %v2476
  %v2478 = vand.u32 %v168, 4294901760
  %v2479 = vsub.f32 %v168, %v2478
  %2480 = vmatpush.msra.mxu0 %v2479
  %v2481 = vand.u32 %v167, 4294901760
  %v2482 = vsub.f32 %v167, %v2481
  %2483 = vmatpush.msra.mxu0 %v2482
  %v2484 = vand.u32 %v166, 4294901760
  %v2485 = vsub.f32 %v166, %v2484
  %2486 = vmatpush.msra.mxu0 %v2485
  %v2487 = vand.u32 %v165, 4294901760
  %v2488 = vsub.f32 %v165, %v2487
  %2489 = vmatpush.msra.mxu0 %v2488
  %v2490 = vand.u32 %v164, 4294901760
  %v2491 = vsub.f32 %v164, %v2490
  %2492 = vmatpush.msra.mxu0 %v2491
  %v2493 = vand.u32 %v163, 4294901760
  %v2494 = vsub.f32 %v163, %v2493
  %2495 = vmatpush.msra.mxu0 %v2494
  %v2496 = vand.u32 %v61, 4294901760
  %v2497 = vsub.f32 %v61, %v2496
  %2498 = vmatmul.f32.gmra.mxu0 %v2497
  %v2499 = vpop.f32.mrf.mxu0
  %v2500 = vadd.f32 %v2446, %v2499
  %2501 = vdwg.mxu0
  %v2502 = vand.u32 %v178, 4294901760
  %2503 = vmatpush.msra.mxu0 %v2502
  %v2504 = vand.u32 %v177, 4294901760
  %2505 = vmatpush.msra.mxu0 %v2504
  %v2506 = vand.u32 %v176, 4294901760
  %2507 = vmatpush.msra.mxu0 %v2506
  %v2508 = vand.u32 %v175, 4294901760
  %2509 = vmatpush.msra.mxu0 %v2508
  %v2510 = vand.u32 %v174, 4294901760
  %2511 = vmatpush.msra.mxu0 %v2510
  %v2512 = vand.u32 %v173, 4294901760
  %2513 = vmatpush.msra.mxu0 %v2512
  %v2514 = vand.u32 %v172, 4294901760
  %2515 = vmatpush.msra.mxu0 %v2514
  %v2516 = vand.u32 %v171, 4294901760
  %2517 = vmatpush.msra.mxu0 %v2516
  %v2518 = vand.u32 %v170, 4294901760
  %2519 = vmatpush.msra.mxu0 %v2518
  %v2520 = vand.u32 %v169, 4294901760
  %2521 = vmatpush.msra.mxu0 %v2520
  %v2522 = vand.u32 %v168, 4294901760
  %2523 = vmatpush.msra.mxu0 %v2522
  %v2524 = vand.u32 %v167, 4294901760
  %2525 = vmatpush.msra.mxu0 %v2524
  %v2526 = vand.u32 %v166, 4294901760
  %2527 = vmatpush.msra.mxu0 %v2526
  %v2528 = vand.u32 %v165, 4294901760
  %2529 = vmatpush.msra.mxu0 %v2528
  %v2530 = vand.u32 %v164, 4294901760
  %2531 = vmatpush.msra.mxu0 %v2530
  %v2532 = vand.u32 %v163, 4294901760
  %2533 = vmatpush.msra.mxu0 %v2532
  %v2534 = vand.u32 %v61, 4294901760
  %v2535 = vsub.f32 %v61, %v2534
  %v2536 = vand.u32 %v2535, 4294901760
  %2537 = vmatmul.f32.gmra.mxu0 %v2536
  %v2538 = vpop.f32.mrf.mxu0
  %v2539 = vadd.f32 %v2500, %v2538
  %2540 = vdwg.mxu0
  %v2541 = vand.u32 %v178, 4294901760
  %v2542 = vsub.f32 %v178, %v2541
  %v2543 = vand.u32 %v2542, 4294901760
  %2544 = vmatpush.msra.mxu0 %v2543
  %v2545 = vand.u32 %v177, 4294901760
  %v2546 = vsub.f32 %v177, %v2545
  %v2547 = vand.u32 %v2546, 4294901760
  %2548 = vmatpush.msra.mxu0 %v2547
  %v2549 = vand.u32 %v176, 4294901760
  %v2550 = vsub.f32 %v176, %v2549
  %v2551 = vand.u32 %v2550, 4294901760
  %2552 = vmatpush.msra.mxu0 %v2551
  %v2553 = vand.u32 %v175, 4294901760
  %v2554 = vsub.f32 %v175, %v2553
  %v2555 = vand.u32 %v2554, 4294901760
  %2556 = vmatpush.msra.mxu0 %v2555
  %v2557 = vand.u32 %v174, 4294901760
  %v2558 = vsub.f32 %v174, %v2557
  %v2559 = vand.u32 %v2558, 4294901760
  %2560 = vmatpush.msra.mxu0 %v2559
  %v2561 = vand.u32 %v173, 4294901760
  %v2562 = vsub.f32 %v173, %v2561
  %v2563 = vand.u32 %v2562, 4294901760
  %2564 = vmatpush.msra.mxu0 %v2563
  %v2565 = vand.u32 %v172, 4294901760
  %v2566 = vsub.f32 %v172, %v2565
  %v2567 = vand.u32 %v2566, 4294901760
  %2568 = vmatpush.msra.mxu0 %v2567
  %v2569 = vand.u32 %v171, 4294901760
  %v2570 = vsub.f32 %v171, %v2569
  %v2571 = vand.u32 %v2570, 4294901760
  %2572 = vmatpush.msra.mxu0 %v2571
  %v2573 = vand.u32 %v170, 4294901760
  %v2574 = vsub.f32 %v170, %v2573
  %v2575 = vand.u32 %v2574, 4294901760
  %2576 = vmatpush.msra.mxu0 %v2575
  %v2577 = vand.u32 %v169, 4294901760
  %v2578 = vsub.f32 %v169, %v2577
  %v2579 = vand.u32 %v2578, 4294901760
  %2580 = vmatpush.msra.mxu0 %v2579
  %v2581 = vand.u32 %v168, 4294901760
  %v2582 = vsub.f32 %v168, %v2581
  %v2583 = vand.u32 %v2582, 4294901760
  %2584 = vmatpush.msra.mxu0 %v2583
  %v2585 = vand.u32 %v167, 4294901760
  %v2586 = vsub.f32 %v167, %v2585
  %v2587 = vand.u32 %v2586, 4294901760
  %2588 = vmatpush.msra.mxu0 %v2587
  %v2589 = vand.u32 %v166, 4294901760
  %v2590 = vsub.f32 %v166, %v2589
  %v2591 = vand.u32 %v2590, 4294901760
  %2592 = vmatpush.msra.mxu0 %v2591
  %v2593 = vand.u32 %v165, 4294901760
  %v2594 = vsub.f32 %v165, %v2593
  %v2595 = vand.u32 %v2594, 4294901760
  %2596 = vmatpush.msra.mxu0 %v2595
  %v2597 = vand.u32 %v164, 4294901760
  %v2598 = vsub.f32 %v164, %v2597
  %v2599 = vand.u32 %v2598, 4294901760
  %2600 = vmatpush.msra.mxu0 %v2599
  %v2601 = vand.u32 %v163, 4294901760
  %v2602 = vsub.f32 %v163, %v2601
  %v2603 = vand.u32 %v2602, 4294901760
  %2604 = vmatpush.msra.mxu0 %v2603
  %v2605 = vand.u32 %v61, 4294901760
  %2606 = vmatmul.f32.gmra.mxu0 %v2605
  %v2607 = vpop.f32.mrf.mxu0
  %v2608 = vadd.f32 %v2539, %v2607
  %2609 = vdwg.mxu0
  %v2610 = vand.u32 %v178, 4294901760
  %2611 = vmatpush.msra.mxu0 %v2610
  %v2612 = vand.u32 %v177, 4294901760
  %2613 = vmatpush.msra.mxu0 %v2612
  %v2614 = vand.u32 %v176, 4294901760
  %2615 = vmatpush.msra.mxu0 %v2614
  %v2616 = vand.u32 %v175, 4294901760
  %2617 = vmatpush.msra.mxu0 %v2616
  %v2618 = vand.u32 %v174, 4294901760
  %2619 = vmatpush.msra.mxu0 %v2618
  %v2620 = vand.u32 %v173, 4294901760
  %2621 = vmatpush.msra.mxu0 %v2620
  %v2622 = vand.u32 %v172, 4294901760
  %2623 = vmatpush.msra.mxu0 %v2622
  %v2624 = vand.u32 %v171, 4294901760
  %2625 = vmatpush.msra.mxu0 %v2624
  %v2626 = vand.u32 %v170, 4294901760
  %2627 = vmatpush.msra.mxu0 %v2626
  %v2628 = vand.u32 %v169, 4294901760
  %2629 = vmatpush.msra.mxu0 %v2628
  %v2630 = vand.u32 %v168, 4294901760
  %2631 = vmatpush.msra.mxu0 %v2630
  %v2632 = vand.u32 %v167, 4294901760
  %2633 = vmatpush.msra.mxu0 %v2632
  %v2634 = vand.u32 %v166, 4294901760
  %2635 = vmatpush.msra.mxu0 %v2634
  %v2636 = vand.u32 %v165, 4294901760
  %2637 = vmatpush.msra.mxu0 %v2636
  %v2638 = vand.u32 %v164, 4294901760
  %2639 = vmatpush.msra.mxu0 %v2638
  %v2640 = vand.u32 %v163, 4294901760
  %2641 = vmatpush.msra.mxu0 %v2640
  %v2642 = vand.u32 %v61, 4294901760
  %2643 = vmatmul.f32.gmra.mxu0 %v2642
  %v2644 = vpop.f32.mrf.mxu0
  %v2645 = vadd.f32 %v2608, %v2644
  %2646 = vdwg.mxu0
  %v2647 = vand.u32 %v194, 4294901760
  %2648 = vmatpush.msra.mxu0 %v2647
  %v2649 = vand.u32 %v193, 4294901760
  %2650 = vmatpush.msra.mxu0 %v2649
  %v2651 = vand.u32 %v192, 4294901760
  %2652 = vmatpush.msra.mxu0 %v2651
  %v2653 = vand.u32 %v191, 4294901760
  %2654 = vmatpush.msra.mxu0 %v2653
  %v2655 = vand.u32 %v190, 4294901760
  %2656 = vmatpush.msra.mxu0 %v2655
  %v2657 = vand.u32 %v189, 4294901760
  %2658 = vmatpush.msra.mxu0 %v2657
  %v2659 = vand.u32 %v188, 4294901760
  %2660 = vmatpush.msra.mxu0 %v2659
  %v2661 = vand.u32 %v187, 4294901760
  %2662 = vmatpush.msra.mxu0 %v2661
  %v2663 = vand.u32 %v186, 4294901760
  %2664 = vmatpush.msra.mxu0 %v2663
  %v2665 = vand.u32 %v185, 4294901760
  %2666 = vmatpush.msra.mxu0 %v2665
  %v2667 = vand.u32 %v184, 4294901760
  %2668 = vmatpush.msra.mxu0 %v2667
  %v2669 = vand.u32 %v183, 4294901760
  %2670 = vmatpush.msra.mxu0 %v2669
  %v2671 = vand.u32 %v182, 4294901760
  %2672 = vmatpush.msra.mxu0 %v2671
  %v2673 = vand.u32 %v181, 4294901760
  %2674 = vmatpush.msra.mxu0 %v2673
  %v2675 = vand.u32 %v180, 4294901760
  %2676 = vmatpush.msra.mxu0 %v2675
  %v2677 = vand.u32 %v179, 4294901760
  %2678 = vmatpush.msra.mxu0 %v2677
  %v2679 = vand.u32 %v62, 4294901760
  %v2680 = vsub.f32 %v62, %v2679
  %v2681 = vand.u32 %v2680, 4294901760
  %v2682 = vsub.f32 %v2680, %v2681
  %v2683 = vand.u32 %v2682, 4294901760
  %2684 = vmatmul.f32.gmra.mxu0 %v2683
  %v2685 = vpop.f32.mrf.mxu0
  %v2686 = vadd.f32 %v2645, %v2685
  %2687 = vdwg.mxu0
  %v2688 = vand.u32 %v194, 4294901760
  %v2689 = vsub.f32 %v194, %v2688
  %v2690 = vand.u32 %v2689, 4294901760
  %v2691 = vsub.f32 %v2689, %v2690
  %v2692 = vand.u32 %v2691, 4294901760
  %2693 = vmatpush.msra.mxu0 %v2692
  %v2694 = vand.u32 %v193, 4294901760
  %v2695 = vsub.f32 %v193, %v2694
  %v2696 = vand.u32 %v2695, 4294901760
  %v2697 = vsub.f32 %v2695, %v2696
  %v2698 = vand.u32 %v2697, 4294901760
  %2699 = vmatpush.msra.mxu0 %v2698
  %v2700 = vand.u32 %v192, 4294901760
  %v2701 = vsub.f32 %v192, %v2700
  %v2702 = vand.u32 %v2701, 4294901760
  %v2703 = vsub.f32 %v2701, %v2702
  %v2704 = vand.u32 %v2703, 4294901760
  %2705 = vmatpush.msra.mxu0 %v2704
  %v2706 = vand.u32 %v191, 4294901760
  %v2707 = vsub.f32 %v191, %v2706
  %v2708 = vand.u32 %v2707, 4294901760
  %v2709 = vsub.f32 %v2707, %v2708
  %v2710 = vand.u32 %v2709, 4294901760
  %2711 = vmatpush.msra.mxu0 %v2710
  %v2712 = vand.u32 %v190, 4294901760
  %v2713 = vsub.f32 %v190, %v2712
  %v2714 = vand.u32 %v2713, 4294901760
  %v2715 = vsub.f32 %v2713, %v2714
  %v2716 = vand.u32 %v2715, 4294901760
  %2717 = vmatpush.msra.mxu0 %v2716
  %v2718 = vand.u32 %v189, 4294901760
  %v2719 = vsub.f32 %v189, %v2718
  %v2720 = vand.u32 %v2719, 4294901760
  %v2721 = vsub.f32 %v2719, %v2720
  %v2722 = vand.u32 %v2721, 4294901760
  %2723 = vmatpush.msra.mxu0 %v2722
  %v2724 = vand.u32 %v188, 4294901760
  %v2725 = vsub.f32 %v188, %v2724
  %v2726 = vand.u32 %v2725, 4294901760
  %v2727 = vsub.f32 %v2725, %v2726
  %v2728 = vand.u32 %v2727, 4294901760
  %2729 = vmatpush.msra.mxu0 %v2728
  %v2730 = vand.u32 %v187, 4294901760
  %v2731 = vsub.f32 %v187, %v2730
  %v2732 = vand.u32 %v2731, 4294901760
  %v2733 = vsub.f32 %v2731, %v2732
  %v2734 = vand.u32 %v2733, 4294901760
  %2735 = vmatpush.msra.mxu0 %v2734
  %v2736 = vand.u32 %v186, 4294901760
  %v2737 = vsub.f32 %v186, %v2736
  %v2738 = vand.u32 %v2737, 4294901760
  %v2739 = vsub.f32 %v2737, %v2738
  %v2740 = vand.u32 %v2739, 4294901760
  %2741 = vmatpush.msra.mxu0 %v2740
  %v2742 = vand.u32 %v185, 4294901760
  %v2743 = vsub.f32 %v185, %v2742
  %v2744 = vand.u32 %v2743, 4294901760
  %v2745 = vsub.f32 %v2743, %v2744
  %v2746 = vand.u32 %v2745, 4294901760
  %2747 = vmatpush.msra.mxu0 %v2746
  %v2748 = vand.u32 %v184, 4294901760
  %v2749 = vsub.f32 %v184, %v2748
  %v2750 = vand.u32 %v2749, 4294901760
  %v2751 = vsub.f32 %v2749, %v2750
  %v2752 = vand.u32 %v2751, 4294901760
  %2753 = vmatpush.msra.mxu0 %v2752
  %v2754 = vand.u32 %v183, 4294901760
  %v2755 = vsub.f32 %v183, %v2754
  %v2756 = vand.u32 %v2755, 4294901760
  %v2757 = vsub.f32 %v2755, %v2756
  %v2758 = vand.u32 %v2757, 4294901760
  %2759 = vmatpush.msra.mxu0 %v2758
  %v2760 = vand.u32 %v182, 4294901760
  %v2761 = vsub.f32 %v182, %v2760
  %v2762 = vand.u32 %v2761, 4294901760
  %v2763 = vsub.f32 %v2761, %v2762
  %v2764 = vand.u32 %v2763, 4294901760
  %2765 = vmatpush.msra.mxu0 %v2764
  %v2766 = vand.u32 %v181, 4294901760
  %v2767 = vsub.f32 %v181, %v2766
  %v2768 = vand.u32 %v2767, 4294901760
  %v2769 = vsub.f32 %v2767, %v2768
  %v2770 = vand.u32 %v2769, 4294901760
  %2771 = vmatpush.msra.mxu0 %v2770
  %v2772 = vand.u32 %v180, 4294901760
  %v2773 = vsub.f32 %v180, %v2772
  %v2774 = vand.u32 %v2773, 4294901760
  %v2775 = vsub.f32 %v2773, %v2774
  %v2776 = vand.u32 %v2775, 4294901760
  %2777 = vmatpush.msra.mxu0 %v2776
  %v2778 = vand.u32 %v179, 4294901760
  %v2779 = vsub.f32 %v179, %v2778
  %v2780 = vand.u32 %v2779, 4294901760
  %v2781 = vsub.f32 %v2779, %v2780
  %v2782 = vand.u32 %v2781, 4294901760
  %2783 = vmatpush.msra.mxu0 %v2782
  %v2784 = vand.u32 %v62, 4294901760
  %2785 = vmatmul.f32.gmra.mxu0 %v2784
  %v2786 = vpop.f32.mrf.mxu0
  %v2787 = vadd.f32 %v2686, %v2786
  %2788 = vdwg.mxu0
  %v2789 = vand.u32 %v194, 4294901760
  %v2790 = vsub.f32 %v194, %v2789
  %2791 = vmatpush.msra.mxu0 %v2790
  %v2792 = vand.u32 %v193, 4294901760
  %v2793 = vsub.f32 %v193, %v2792
  %2794 = vmatpush.msra.mxu0 %v2793
  %v2795 = vand.u32 %v192, 4294901760
  %v2796 = vsub.f32 %v192, %v2795
  %2797 = vmatpush.msra.mxu0 %v2796
  %v2798 = vand.u32 %v191, 4294901760
  %v2799 = vsub.f32 %v191, %v2798
  %2800 = vmatpush.msra.mxu0 %v2799
  %v2801 = vand.u32 %v190, 4294901760
  %v2802 = vsub.f32 %v190, %v2801
  %2803 = vmatpush.msra.mxu0 %v2802
  %v2804 = vand.u32 %v189, 4294901760
  %v2805 = vsub.f32 %v189, %v2804
  %2806 = vmatpush.msra.mxu0 %v2805
  %v2807 = vand.u32 %v188, 4294901760
  %v2808 = vsub.f32 %v188, %v2807
  %2809 = vmatpush.msra.mxu0 %v2808
  %v2810 = vand.u32 %v187, 4294901760
  %v2811 = vsub.f32 %v187, %v2810
  %2812 = vmatpush.msra.mxu0 %v2811
  %v2813 = vand.u32 %v186, 4294901760
  %v2814 = vsub.f32 %v186, %v2813
  %2815 = vmatpush.msra.mxu0 %v2814
  %v2816 = vand.u32 %v185, 4294901760
  %v2817 = vsub.f32 %v185, %v2816
  %2818 = vmatpush.msra.mxu0 %v2817
  %v2819 = vand.u32 %v184, 4294901760
  %v2820 = vsub.f32 %v184, %v2819
  %2821 = vmatpush.msra.mxu0 %v2820
  %v2822 = vand.u32 %v183, 4294901760
  %v2823 = vsub.f32 %v183, %v2822
  %2824 = vmatpush.msra.mxu0 %v2823
  %v2825 = vand.u32 %v182, 4294901760
  %v2826 = vsub.f32 %v182, %v2825
  %2827 = vmatpush.msra.mxu0 %v2826
  %v2828 = vand.u32 %v181, 4294901760
  %v2829 = vsub.f32 %v181, %v2828
  %2830 = vmatpush.msra.mxu0 %v2829
  %v2831 = vand.u32 %v180, 4294901760
  %v2832 = vsub.f32 %v180, %v2831
  %2833 = vmatpush.msra.mxu0 %v2832
  %v2834 = vand.u32 %v179, 4294901760
  %v2835 = vsub.f32 %v179, %v2834
  %2836 = vmatpush.msra.mxu0 %v2835
  %v2837 = vand.u32 %v62, 4294901760
  %v2838 = vsub.f32 %v62, %v2837
  %2839 = vmatmul.f32.gmra.mxu0 %v2838
  %v2840 = vpop.f32.mrf.mxu0
  %v2841 = vadd.f32 %v2787, %v2840
  %2842 = vdwg.mxu0
  %v2843 = vand.u32 %v194, 4294901760
  %2844 = vmatpush.msra.mxu0 %v2843
  %v2845 = vand.u32 %v193, 4294901760
  %2846 = vmatpush.msra.mxu0 %v2845
  %v2847 = vand.u32 %v192, 4294901760
  %2848 = vmatpush.msra.mxu0 %v2847
  %v2849 = vand.u32 %v191, 4294901760
  %2850 = vmatpush.msra.mxu0 %v2849
  %v2851 = vand.u32 %v190, 4294901760
  %2852 = vmatpush.msra.mxu0 %v2851
  %v2853 = vand.u32 %v189, 4294901760
  %2854 = vmatpush.msra.mxu0 %v2853
  %v2855 = vand.u32 %v188, 4294901760
  %2856 = vmatpush.msra.mxu0 %v2855
  %v2857 = vand.u32 %v187, 4294901760
  %2858 = vmatpush.msra.mxu0 %v2857
  %v2859 = vand.u32 %v186, 4294901760
  %2860 = vmatpush.msra.mxu0 %v2859
  %v2861 = vand.u32 %v185, 4294901760
  %2862 = vmatpush.msra.mxu0 %v2861
  %v2863 = vand.u32 %v184, 4294901760
  %2864 = vmatpush.msra.mxu0 %v2863
  %v2865 = vand.u32 %v183, 4294901760
  %2866 = vmatpush.msra.mxu0 %v2865
  %v2867 = vand.u32 %v182, 4294901760
  %2868 = vmatpush.msra.mxu0 %v2867
  %v2869 = vand.u32 %v181, 4294901760
  %2870 = vmatpush.msra.mxu0 %v2869
  %v2871 = vand.u32 %v180, 4294901760
  %2872 = vmatpush.msra.mxu0 %v2871
  %v2873 = vand.u32 %v179, 4294901760
  %2874 = vmatpush.msra.mxu0 %v2873
  %v2875 = vand.u32 %v62, 4294901760
  %v2876 = vsub.f32 %v62, %v2875
  %v2877 = vand.u32 %v2876, 4294901760
  %2878 = vmatmul.f32.gmra.mxu0 %v2877
  %v2879 = vpop.f32.mrf.mxu0
  %v2880 = vadd.f32 %v2841, %v2879
  %2881 = vdwg.mxu0
  %v2882 = vand.u32 %v194, 4294901760
  %v2883 = vsub.f32 %v194, %v2882
  %v2884 = vand.u32 %v2883, 4294901760
  %2885 = vmatpush.msra.mxu0 %v2884
  %v2886 = vand.u32 %v193, 4294901760
  %v2887 = vsub.f32 %v193, %v2886
  %v2888 = vand.u32 %v2887, 4294901760
  %2889 = vmatpush.msra.mxu0 %v2888
  %v2890 = vand.u32 %v192, 4294901760
  %v2891 = vsub.f32 %v192, %v2890
  %v2892 = vand.u32 %v2891, 4294901760
  %2893 = vmatpush.msra.mxu0 %v2892
  %v2894 = vand.u32 %v191, 4294901760
  %v2895 = vsub.f32 %v191, %v2894
  %v2896 = vand.u32 %v2895, 4294901760
  %2897 = vmatpush.msra.mxu0 %v2896
  %v2898 = vand.u32 %v190, 4294901760
  %v2899 = vsub.f32 %v190, %v2898
  %v2900 = vand.u32 %v2899, 4294901760
  %2901 = vmatpush.msra.mxu0 %v2900
  %v2902 = vand.u32 %v189, 4294901760
  %v2903 = vsub.f32 %v189, %v2902
  %v2904 = vand.u32 %v2903, 4294901760
  %2905 = vmatpush.msra.mxu0 %v2904
  %v2906 = vand.u32 %v188, 4294901760
  %v2907 = vsub.f32 %v188, %v2906
  %v2908 = vand.u32 %v2907, 4294901760
  %2909 = vmatpush.msra.mxu0 %v2908
  %v2910 = vand.u32 %v187, 4294901760
  %v2911 = vsub.f32 %v187, %v2910
  %v2912 = vand.u32 %v2911, 4294901760
  %2913 = vmatpush.msra.mxu0 %v2912
  %v2914 = vand.u32 %v186, 4294901760
  %v2915 = vsub.f32 %v186, %v2914
  %v2916 = vand.u32 %v2915, 4294901760
  %2917 = vmatpush.msra.mxu0 %v2916
  %v2918 = vand.u32 %v185, 4294901760
  %v2919 = vsub.f32 %v185, %v2918
  %v2920 = vand.u32 %v2919, 4294901760
  %2921 = vmatpush.msra.mxu0 %v2920
  %v2922 = vand.u32 %v184, 4294901760
  %v2923 = vsub.f32 %v184, %v2922
  %v2924 = vand.u32 %v2923, 4294901760
  %2925 = vmatpush.msra.mxu0 %v2924
  %v2926 = vand.u32 %v183, 4294901760
  %v2927 = vsub.f32 %v183, %v2926
  %v2928 = vand.u32 %v2927, 4294901760
  %2929 = vmatpush.msra.mxu0 %v2928
  %v2930 = vand.u32 %v182, 4294901760
  %v2931 = vsub.f32 %v182, %v2930
  %v2932 = vand.u32 %v2931, 4294901760
  %2933 = vmatpush.msra.mxu0 %v2932
  %v2934 = vand.u32 %v181, 4294901760
  %v2935 = vsub.f32 %v181, %v2934
  %v2936 = vand.u32 %v2935, 4294901760
  %2937 = vmatpush.msra.mxu0 %v2936
  %v2938 = vand.u32 %v180, 4294901760
  %v2939 = vsub.f32 %v180, %v2938
  %v2940 = vand.u32 %v2939, 4294901760
  %2941 = vmatpush.msra.mxu0 %v2940
  %v2942 = vand.u32 %v179, 4294901760
  %v2943 = vsub.f32 %v179, %v2942
  %v2944 = vand.u32 %v2943, 4294901760
  %2945 = vmatpush.msra.mxu0 %v2944
  %v2946 = vand.u32 %v62, 4294901760
  %2947 = vmatmul.f32.gmra.mxu0 %v2946
  %v2948 = vpop.f32.mrf.mxu0
  %v2949 = vadd.f32 %v2880, %v2948
  %2950 = vdwg.mxu0
  %v2951 = vand.u32 %v194, 4294901760
  %2952 = vmatpush.msra.mxu0 %v2951
  %v2953 = vand.u32 %v193, 4294901760
  %2954 = vmatpush.msra.mxu0 %v2953
  %v2955 = vand.u32 %v192, 4294901760
  %2956 = vmatpush.msra.mxu0 %v2955
  %v2957 = vand.u32 %v191, 4294901760
  %2958 = vmatpush.msra.mxu0 %v2957
  %v2959 = vand.u32 %v190, 4294901760
  %2960 = vmatpush.msra.mxu0 %v2959
  %v2961 = vand.u32 %v189, 4294901760
  %2962 = vmatpush.msra.mxu0 %v2961
  %v2963 = vand.u32 %v188, 4294901760
  %2964 = vmatpush.msra.mxu0 %v2963
  %v2965 = vand.u32 %v187, 4294901760
  %2966 = vmatpush.msra.mxu0 %v2965
  %v2967 = vand.u32 %v186, 4294901760
  %2968 = vmatpush.msra.mxu0 %v2967
  %v2969 = vand.u32 %v185, 4294901760
  %2970 = vmatpush.msra.mxu0 %v2969
  %v2971 = vand.u32 %v184, 4294901760
  %2972 = vmatpush.msra.mxu0 %v2971
  %v2973 = vand.u32 %v183, 4294901760
  %2974 = vmatpush.msra.mxu0 %v2973
  %v2975 = vand.u32 %v182, 4294901760
  %2976 = vmatpush.msra.mxu0 %v2975
  %v2977 = vand.u32 %v181, 4294901760
  %2978 = vmatpush.msra.mxu0 %v2977
  %v2979 = vand.u32 %v180, 4294901760
  %2980 = vmatpush.msra.mxu0 %v2979
  %v2981 = vand.u32 %v179, 4294901760
  %2982 = vmatpush.msra.mxu0 %v2981
  %v2983 = vand.u32 %v62, 4294901760
  %2984 = vmatmul.f32.gmra.mxu0 %v2983
  %v2985 = vpop.f32.mrf.mxu0
  %v2986 = vadd.f32 %v2949, %v2985
  %2987 = vdwg.mxu0
  %v2988 = vand.u32 %v210, 4294901760
  %2989 = vmatpush.msra.mxu0 %v2988
  %v2990 = vand.u32 %v209, 4294901760
  %2991 = vmatpush.msra.mxu0 %v2990
  %v2992 = vand.u32 %v208, 4294901760
  %2993 = vmatpush.msra.mxu0 %v2992
  %v2994 = vand.u32 %v207, 4294901760
  %2995 = vmatpush.msra.mxu0 %v2994
  %v2996 = vand.u32 %v206, 4294901760
  %2997 = vmatpush.msra.mxu0 %v2996
  %v2998 = vand.u32 %v205, 4294901760
  %2999 = vmatpush.msra.mxu0 %v2998
  %v3000 = vand.u32 %v204, 4294901760
  %3001 = vmatpush.msra.mxu0 %v3000
  %v3002 = vand.u32 %v203, 4294901760
  %3003 = vmatpush.msra.mxu0 %v3002
  %v3004 = vand.u32 %v202, 4294901760
  %3005 = vmatpush.msra.mxu0 %v3004
  %v3006 = vand.u32 %v201, 4294901760
  %3007 = vmatpush.msra.mxu0 %v3006
  %v3008 = vand.u32 %v200, 4294901760
  %3009 = vmatpush.msra.mxu0 %v3008
  %v3010 = vand.u32 %v199, 4294901760
  %3011 = vmatpush.msra.mxu0 %v3010
  %v3012 = vand.u32 %v198, 4294901760
  %3013 = vmatpush.msra.mxu0 %v3012
  %v3014 = vand.u32 %v197, 4294901760
  %3015 = vmatpush.msra.mxu0 %v3014
  %v3016 = vand.u32 %v196, 4294901760
  %3017 = vmatpush.msra.mxu0 %v3016
  %v3018 = vand.u32 %v195, 4294901760
  %3019 = vmatpush.msra.mxu0 %v3018
  %v3020 = vand.u32 %v63, 4294901760
  %v3021 = vsub.f32 %v63, %v3020
  %v3022 = vand.u32 %v3021, 4294901760
  %v3023 = vsub.f32 %v3021, %v3022
  %v3024 = vand.u32 %v3023, 4294901760
  %3025 = vmatmul.f32.gmra.mxu0 %v3024
  %v3026 = vpop.f32.mrf.mxu0
  %v3027 = vadd.f32 %v2986, %v3026
  %3028 = vdwg.mxu0
  %v3029 = vand.u32 %v210, 4294901760
  %v3030 = vsub.f32 %v210, %v3029
  %v3031 = vand.u32 %v3030, 4294901760
  %v3032 = vsub.f32 %v3030, %v3031
  %v3033 = vand.u32 %v3032, 4294901760
  %3034 = vmatpush.msra.mxu0 %v3033
  %v3035 = vand.u32 %v209, 4294901760
  %v3036 = vsub.f32 %v209, %v3035
  %v3037 = vand.u32 %v3036, 4294901760
  %v3038 = vsub.f32 %v3036, %v3037
  %v3039 = vand.u32 %v3038, 4294901760
  %3040 = vmatpush.msra.mxu0 %v3039
  %v3041 = vand.u32 %v208, 4294901760
  %v3042 = vsub.f32 %v208, %v3041
  %v3043 = vand.u32 %v3042, 4294901760
  %v3044 = vsub.f32 %v3042, %v3043
  %v3045 = vand.u32 %v3044, 4294901760
  %3046 = vmatpush.msra.mxu0 %v3045
  %v3047 = vand.u32 %v207, 4294901760
  %v3048 = vsub.f32 %v207, %v3047
  %v3049 = vand.u32 %v3048, 4294901760
  %v3050 = vsub.f32 %v3048, %v3049
  %v3051 = vand.u32 %v3050, 4294901760
  %3052 = vmatpush.msra.mxu0 %v3051
  %v3053 = vand.u32 %v206, 4294901760
  %v3054 = vsub.f32 %v206, %v3053
  %v3055 = vand.u32 %v3054, 4294901760
  %v3056 = vsub.f32 %v3054, %v3055
  %v3057 = vand.u32 %v3056, 4294901760
  %3058 = vmatpush.msra.mxu0 %v3057
  %v3059 = vand.u32 %v205, 4294901760
  %v3060 = vsub.f32 %v205, %v3059
  %v3061 = vand.u32 %v3060, 4294901760
  %v3062 = vsub.f32 %v3060, %v3061
  %v3063 = vand.u32 %v3062, 4294901760
  %3064 = vmatpush.msra.mxu0 %v3063
  %v3065 = vand.u32 %v204, 4294901760
  %v3066 = vsub.f32 %v204, %v3065
  %v3067 = vand.u32 %v3066, 4294901760
  %v3068 = vsub.f32 %v3066, %v3067
  %v3069 = vand.u32 %v3068, 4294901760
  %3070 = vmatpush.msra.mxu0 %v3069
  %v3071 = vand.u32 %v203, 4294901760
  %v3072 = vsub.f32 %v203, %v3071
  %v3073 = vand.u32 %v3072, 4294901760
  %v3074 = vsub.f32 %v3072, %v3073
  %v3075 = vand.u32 %v3074, 4294901760
  %3076 = vmatpush.msra.mxu0 %v3075
  %v3077 = vand.u32 %v202, 4294901760
  %v3078 = vsub.f32 %v202, %v3077
  %v3079 = vand.u32 %v3078, 4294901760
  %v3080 = vsub.f32 %v3078, %v3079
  %v3081 = vand.u32 %v3080, 4294901760
  %3082 = vmatpush.msra.mxu0 %v3081
  %v3083 = vand.u32 %v201, 4294901760
  %v3084 = vsub.f32 %v201, %v3083
  %v3085 = vand.u32 %v3084, 4294901760
  %v3086 = vsub.f32 %v3084, %v3085
  %v3087 = vand.u32 %v3086, 4294901760
  %3088 = vmatpush.msra.mxu0 %v3087
  %v3089 = vand.u32 %v200, 4294901760
  %v3090 = vsub.f32 %v200, %v3089
  %v3091 = vand.u32 %v3090, 4294901760
  %v3092 = vsub.f32 %v3090, %v3091
  %v3093 = vand.u32 %v3092, 4294901760
  %3094 = vmatpush.msra.mxu0 %v3093
  %v3095 = vand.u32 %v199, 4294901760
  %v3096 = vsub.f32 %v199, %v3095
  %v3097 = vand.u32 %v3096, 4294901760
  %v3098 = vsub.f32 %v3096, %v3097
  %v3099 = vand.u32 %v3098, 4294901760
  %3100 = vmatpush.msra.mxu0 %v3099
  %v3101 = vand.u32 %v198, 4294901760
  %v3102 = vsub.f32 %v198, %v3101
  %v3103 = vand.u32 %v3102, 4294901760
  %v3104 = vsub.f32 %v3102, %v3103
  %v3105 = vand.u32 %v3104, 4294901760
  %3106 = vmatpush.msra.mxu0 %v3105
  %v3107 = vand.u32 %v197, 4294901760
  %v3108 = vsub.f32 %v197, %v3107
  %v3109 = vand.u32 %v3108, 4294901760
  %v3110 = vsub.f32 %v3108, %v3109
  %v3111 = vand.u32 %v3110, 4294901760
  %3112 = vmatpush.msra.mxu0 %v3111
  %v3113 = vand.u32 %v196, 4294901760
  %v3114 = vsub.f32 %v196, %v3113
  %v3115 = vand.u32 %v3114, 4294901760
  %v3116 = vsub.f32 %v3114, %v3115
  %v3117 = vand.u32 %v3116, 4294901760
  %3118 = vmatpush.msra.mxu0 %v3117
  %v3119 = vand.u32 %v195, 4294901760
  %v3120 = vsub.f32 %v195, %v3119
  %v3121 = vand.u32 %v3120, 4294901760
  %v3122 = vsub.f32 %v3120, %v3121
  %v3123 = vand.u32 %v3122, 4294901760
  %3124 = vmatpush.msra.mxu0 %v3123
  %v3125 = vand.u32 %v63, 4294901760
  %3126 = vmatmul.f32.gmra.mxu0 %v3125
  %v3127 = vpop.f32.mrf.mxu0
  %v3128 = vadd.f32 %v3027, %v3127
  %3129 = vdwg.mxu0
  %v3130 = vand.u32 %v210, 4294901760
  %v3131 = vsub.f32 %v210, %v3130
  %3132 = vmatpush.msra.mxu0 %v3131
  %v3133 = vand.u32 %v209, 4294901760
  %v3134 = vsub.f32 %v209, %v3133
  %3135 = vmatpush.msra.mxu0 %v3134
  %v3136 = vand.u32 %v208, 4294901760
  %v3137 = vsub.f32 %v208, %v3136
  %3138 = vmatpush.msra.mxu0 %v3137
  %v3139 = vand.u32 %v207, 4294901760
  %v3140 = vsub.f32 %v207, %v3139
  %3141 = vmatpush.msra.mxu0 %v3140
  %v3142 = vand.u32 %v206, 4294901760
  %v3143 = vsub.f32 %v206, %v3142
  %3144 = vmatpush.msra.mxu0 %v3143
  %v3145 = vand.u32 %v205, 4294901760
  %v3146 = vsub.f32 %v205, %v3145
  %3147 = vmatpush.msra.mxu0 %v3146
  %v3148 = vand.u32 %v204, 4294901760
  %v3149 = vsub.f32 %v204, %v3148
  %3150 = vmatpush.msra.mxu0 %v3149
  %v3151 = vand.u32 %v203, 4294901760
  %v3152 = vsub.f32 %v203, %v3151
  %3153 = vmatpush.msra.mxu0 %v3152
  %v3154 = vand.u32 %v202, 4294901760
  %v3155 = vsub.f32 %v202, %v3154
  %3156 = vmatpush.msra.mxu0 %v3155
  %v3157 = vand.u32 %v201, 4294901760
  %v3158 = vsub.f32 %v201, %v3157
  %3159 = vmatpush.msra.mxu0 %v3158
  %v3160 = vand.u32 %v200, 4294901760
  %v3161 = vsub.f32 %v200, %v3160
  %3162 = vmatpush.msra.mxu0 %v3161
  %v3163 = vand.u32 %v199, 4294901760
  %v3164 = vsub.f32 %v199, %v3163
  %3165 = vmatpush.msra.mxu0 %v3164
  %v3166 = vand.u32 %v198, 4294901760
  %v3167 = vsub.f32 %v198, %v3166
  %3168 = vmatpush.msra.mxu0 %v3167
  %v3169 = vand.u32 %v197, 4294901760
  %v3170 = vsub.f32 %v197, %v3169
  %3171 = vmatpush.msra.mxu0 %v3170
  %v3172 = vand.u32 %v196, 4294901760
  %v3173 = vsub.f32 %v196, %v3172
  %3174 = vmatpush.msra.mxu0 %v3173
  %v3175 = vand.u32 %v195, 4294901760
  %v3176 = vsub.f32 %v195, %v3175
  %3177 = vmatpush.msra.mxu0 %v3176
  %v3178 = vand.u32 %v63, 4294901760
  %v3179 = vsub.f32 %v63, %v3178
  %3180 = vmatmul.f32.gmra.mxu0 %v3179
  %v3181 = vpop.f32.mrf.mxu0
  %v3182 = vadd.f32 %v3128, %v3181
  %3183 = vdwg.mxu0
  %v3184 = vand.u32 %v210, 4294901760
  %3185 = vmatpush.msra.mxu0 %v3184
  %v3186 = vand.u32 %v209, 4294901760
  %3187 = vmatpush.msra.mxu0 %v3186
  %v3188 = vand.u32 %v208, 4294901760
  %3189 = vmatpush.msra.mxu0 %v3188
  %v3190 = vand.u32 %v207, 4294901760
  %3191 = vmatpush.msra.mxu0 %v3190
  %v3192 = vand.u32 %v206, 4294901760
  %3193 = vmatpush.msra.mxu0 %v3192
  %v3194 = vand.u32 %v205, 4294901760
  %3195 = vmatpush.msra.mxu0 %v3194
  %v3196 = vand.u32 %v204, 4294901760
  %3197 = vmatpush.msra.mxu0 %v3196
  %v3198 = vand.u32 %v203, 4294901760
  %3199 = vmatpush.msra.mxu0 %v3198
  %v3200 = vand.u32 %v202, 4294901760
  %3201 = vmatpush.msra.mxu0 %v3200
  %v3202 = vand.u32 %v201, 4294901760
  %3203 = vmatpush.msra.mxu0 %v3202
  %v3204 = vand.u32 %v200, 4294901760
  %3205 = vmatpush.msra.mxu0 %v3204
  %v3206 = vand.u32 %v199, 4294901760
  %3207 = vmatpush.msra.mxu0 %v3206
  %v3208 = vand.u32 %v198, 4294901760
  %3209 = vmatpush.msra.mxu0 %v3208
  %v3210 = vand.u32 %v197, 4294901760
  %3211 = vmatpush.msra.mxu0 %v3210
  %v3212 = vand.u32 %v196, 4294901760
  %3213 = vmatpush.msra.mxu0 %v3212
  %v3214 = vand.u32 %v195, 4294901760
  %3215 = vmatpush.msra.mxu0 %v3214
  %v3216 = vand.u32 %v63, 4294901760
  %v3217 = vsub.f32 %v63, %v3216
  %v3218 = vand.u32 %v3217, 4294901760
  %3219 = vmatmul.f32.gmra.mxu0 %v3218
  %v3220 = vpop.f32.mrf.mxu0
  %v3221 = vadd.f32 %v3182, %v3220
  %3222 = vdwg.mxu0
  %v3223 = vand.u32 %v210, 4294901760
  %v3224 = vsub.f32 %v210, %v3223
  %v3225 = vand.u32 %v3224, 4294901760
  %3226 = vmatpush.msra.mxu0 %v3225
  %v3227 = vand.u32 %v209, 4294901760
  %v3228 = vsub.f32 %v209, %v3227
  %v3229 = vand.u32 %v3228, 4294901760
  %3230 = vmatpush.msra.mxu0 %v3229
  %v3231 = vand.u32 %v208, 4294901760
  %v3232 = vsub.f32 %v208, %v3231
  %v3233 = vand.u32 %v3232, 4294901760
  %3234 = vmatpush.msra.mxu0 %v3233
  %v3235 = vand.u32 %v207, 4294901760
  %v3236 = vsub.f32 %v207, %v3235
  %v3237 = vand.u32 %v3236, 4294901760
  %3238 = vmatpush.msra.mxu0 %v3237
  %v3239 = vand.u32 %v206, 4294901760
  %v3240 = vsub.f32 %v206, %v3239
  %v3241 = vand.u32 %v3240, 4294901760
  %3242 = vmatpush.msra.mxu0 %v3241
  %v3243 = vand.u32 %v205, 4294901760
  %v3244 = vsub.f32 %v205, %v3243
  %v3245 = vand.u32 %v3244, 4294901760
  %3246 = vmatpush.msra.mxu0 %v3245
  %v3247 = vand.u32 %v204, 4294901760
  %v3248 = vsub.f32 %v204, %v3247
  %v3249 = vand.u32 %v3248, 4294901760
  %3250 = vmatpush.msra.mxu0 %v3249
  %v3251 = vand.u32 %v203, 4294901760
  %v3252 = vsub.f32 %v203, %v3251
  %v3253 = vand.u32 %v3252, 4294901760
  %3254 = vmatpush.msra.mxu0 %v3253
  %v3255 = vand.u32 %v202, 4294901760
  %v3256 = vsub.f32 %v202, %v3255
  %v3257 = vand.u32 %v3256, 4294901760
  %3258 = vmatpush.msra.mxu0 %v3257
  %v3259 = vand.u32 %v201, 4294901760
  %v3260 = vsub.f32 %v201, %v3259
  %v3261 = vand.u32 %v3260, 4294901760
  %3262 = vmatpush.msra.mxu0 %v3261
  %v3263 = vand.u32 %v200, 4294901760
  %v3264 = vsub.f32 %v200, %v3263
  %v3265 = vand.u32 %v3264, 4294901760
  %3266 = vmatpush.msra.mxu0 %v3265
  %v3267 = vand.u32 %v199, 4294901760
  %v3268 = vsub.f32 %v199, %v3267
  %v3269 = vand.u32 %v3268, 4294901760
  %3270 = vmatpush.msra.mxu0 %v3269
  %v3271 = vand.u32 %v198, 4294901760
  %v3272 = vsub.f32 %v198, %v3271
  %v3273 = vand.u32 %v3272, 4294901760
  %3274 = vmatpush.msra.mxu0 %v3273
  %v3275 = vand.u32 %v197, 4294901760
  %v3276 = vsub.f32 %v197, %v3275
  %v3277 = vand.u32 %v3276, 4294901760
  %3278 = vmatpush.msra.mxu0 %v3277
  %v3279 = vand.u32 %v196, 4294901760
  %v3280 = vsub.f32 %v196, %v3279
  %v3281 = vand.u32 %v3280, 4294901760
  %3282 = vmatpush.msra.mxu0 %v3281
  %v3283 = vand.u32 %v195, 4294901760
  %v3284 = vsub.f32 %v195, %v3283
  %v3285 = vand.u32 %v3284, 4294901760
  %3286 = vmatpush.msra.mxu0 %v3285
  %v3287 = vand.u32 %v63, 4294901760
  %3288 = vmatmul.f32.gmra.mxu0 %v3287
  %v3289 = vpop.f32.mrf.mxu0
  %v3290 = vadd.f32 %v3221, %v3289
  %3291 = vdwg.mxu0
  %v3292 = vand.u32 %v210, 4294901760
  %3293 = vmatpush.msra.mxu0 %v3292
  %v3294 = vand.u32 %v209, 4294901760
  %3295 = vmatpush.msra.mxu0 %v3294
  %v3296 = vand.u32 %v208, 4294901760
  %3297 = vmatpush.msra.mxu0 %v3296
  %v3298 = vand.u32 %v207, 4294901760
  %3299 = vmatpush.msra.mxu0 %v3298
  %v3300 = vand.u32 %v206, 4294901760
  %3301 = vmatpush.msra.mxu0 %v3300
  %v3302 = vand.u32 %v205, 4294901760
  %3303 = vmatpush.msra.mxu0 %v3302
  %v3304 = vand.u32 %v204, 4294901760
  %3305 = vmatpush.msra.mxu0 %v3304
  %v3306 = vand.u32 %v203, 4294901760
  %3307 = vmatpush.msra.mxu0 %v3306
  %v3308 = vand.u32 %v202, 4294901760
  %3309 = vmatpush.msra.mxu0 %v3308
  %v3310 = vand.u32 %v201, 4294901760
  %3311 = vmatpush.msra.mxu0 %v3310
  %v3312 = vand.u32 %v200, 4294901760
  %3313 = vmatpush.msra.mxu0 %v3312
  %v3314 = vand.u32 %v199, 4294901760
  %3315 = vmatpush.msra.mxu0 %v3314
  %v3316 = vand.u32 %v198, 4294901760
  %3317 = vmatpush.msra.mxu0 %v3316
  %v3318 = vand.u32 %v197, 4294901760
  %3319 = vmatpush.msra.mxu0 %v3318
  %v3320 = vand.u32 %v196, 4294901760
  %3321 = vmatpush.msra.mxu0 %v3320
  %v3322 = vand.u32 %v195, 4294901760
  %3323 = vmatpush.msra.mxu0 %v3322
  %v3324 = vand.u32 %v63, 4294901760
  %3325 = vmatmul.f32.gmra.mxu0 %v3324
  %v3326 = vpop.f32.mrf.mxu0
  %v3327 = vadd.f32 %v3290, %v3326
  %3328 = vdwg.mxu0
  %v3329 = vand.u32 %v226, 4294901760
  %3330 = vmatpush.msra.mxu0 %v3329
  %v3331 = vand.u32 %v225, 4294901760
  %3332 = vmatpush.msra.mxu0 %v3331
  %v3333 = vand.u32 %v224, 4294901760
  %3334 = vmatpush.msra.mxu0 %v3333
  %v3335 = vand.u32 %v223, 4294901760
  %3336 = vmatpush.msra.mxu0 %v3335
  %v3337 = vand.u32 %v222, 4294901760
  %3338 = vmatpush.msra.mxu0 %v3337
  %v3339 = vand.u32 %v221, 4294901760
  %3340 = vmatpush.msra.mxu0 %v3339
  %v3341 = vand.u32 %v220, 4294901760
  %3342 = vmatpush.msra.mxu0 %v3341
  %v3343 = vand.u32 %v219, 4294901760
  %3344 = vmatpush.msra.mxu0 %v3343
  %v3345 = vand.u32 %v218, 4294901760
  %3346 = vmatpush.msra.mxu0 %v3345
  %v3347 = vand.u32 %v217, 4294901760
  %3348 = vmatpush.msra.mxu0 %v3347
  %v3349 = vand.u32 %v216, 4294901760
  %3350 = vmatpush.msra.mxu0 %v3349
  %v3351 = vand.u32 %v215, 4294901760
  %3352 = vmatpush.msra.mxu0 %v3351
  %v3353 = vand.u32 %v214, 4294901760
  %3354 = vmatpush.msra.mxu0 %v3353
  %v3355 = vand.u32 %v213, 4294901760
  %3356 = vmatpush.msra.mxu0 %v3355
  %v3357 = vand.u32 %v212, 4294901760
  %3358 = vmatpush.msra.mxu0 %v3357
  %v3359 = vand.u32 %v211, 4294901760
  %3360 = vmatpush.msra.mxu0 %v3359
  %v3361 = vand.u32 %v64, 4294901760
  %v3362 = vsub.f32 %v64, %v3361
  %v3363 = vand.u32 %v3362, 4294901760
  %v3364 = vsub.f32 %v3362, %v3363
  %v3365 = vand.u32 %v3364, 4294901760
  %3366 = vmatmul.f32.gmra.mxu0 %v3365
  %v3367 = vpop.f32.mrf.mxu0
  %v3368 = vadd.f32 %v3327, %v3367
  %3369 = vdwg.mxu0
  %v3370 = vand.u32 %v226, 4294901760
  %v3371 = vsub.f32 %v226, %v3370
  %v3372 = vand.u32 %v3371, 4294901760
  %v3373 = vsub.f32 %v3371, %v3372
  %v3374 = vand.u32 %v3373, 4294901760
  %3375 = vmatpush.msra.mxu0 %v3374
  %v3376 = vand.u32 %v225, 4294901760
  %v3377 = vsub.f32 %v225, %v3376
  %v3378 = vand.u32 %v3377, 4294901760
  %v3379 = vsub.f32 %v3377, %v3378
  %v3380 = vand.u32 %v3379, 4294901760
  %3381 = vmatpush.msra.mxu0 %v3380
  %v3382 = vand.u32 %v224, 4294901760
  %v3383 = vsub.f32 %v224, %v3382
  %v3384 = vand.u32 %v3383, 4294901760
  %v3385 = vsub.f32 %v3383, %v3384
  %v3386 = vand.u32 %v3385, 4294901760
  %3387 = vmatpush.msra.mxu0 %v3386
  %v3388 = vand.u32 %v223, 4294901760
  %v3389 = vsub.f32 %v223, %v3388
  %v3390 = vand.u32 %v3389, 4294901760
  %v3391 = vsub.f32 %v3389, %v3390
  %v3392 = vand.u32 %v3391, 4294901760
  %3393 = vmatpush.msra.mxu0 %v3392
  %v3394 = vand.u32 %v222, 4294901760
  %v3395 = vsub.f32 %v222, %v3394
  %v3396 = vand.u32 %v3395, 4294901760
  %v3397 = vsub.f32 %v3395, %v3396
  %v3398 = vand.u32 %v3397, 4294901760
  %3399 = vmatpush.msra.mxu0 %v3398
  %v3400 = vand.u32 %v221, 4294901760
  %v3401 = vsub.f32 %v221, %v3400
  %v3402 = vand.u32 %v3401, 4294901760
  %v3403 = vsub.f32 %v3401, %v3402
  %v3404 = vand.u32 %v3403, 4294901760
  %3405 = vmatpush.msra.mxu0 %v3404
  %v3406 = vand.u32 %v220, 4294901760
  %v3407 = vsub.f32 %v220, %v3406
  %v3408 = vand.u32 %v3407, 4294901760
  %v3409 = vsub.f32 %v3407, %v3408
  %v3410 = vand.u32 %v3409, 4294901760
  %3411 = vmatpush.msra.mxu0 %v3410
  %v3412 = vand.u32 %v219, 4294901760
  %v3413 = vsub.f32 %v219, %v3412
  %v3414 = vand.u32 %v3413, 4294901760
  %v3415 = vsub.f32 %v3413, %v3414
  %v3416 = vand.u32 %v3415, 4294901760
  %3417 = vmatpush.msra.mxu0 %v3416
  %v3418 = vand.u32 %v218, 4294901760
  %v3419 = vsub.f32 %v218, %v3418
  %v3420 = vand.u32 %v3419, 4294901760
  %v3421 = vsub.f32 %v3419, %v3420
  %v3422 = vand.u32 %v3421, 4294901760
  %3423 = vmatpush.msra.mxu0 %v3422
  %v3424 = vand.u32 %v217, 4294901760
  %v3425 = vsub.f32 %v217, %v3424
  %v3426 = vand.u32 %v3425, 4294901760
  %v3427 = vsub.f32 %v3425, %v3426
  %v3428 = vand.u32 %v3427, 4294901760
  %3429 = vmatpush.msra.mxu0 %v3428
  %v3430 = vand.u32 %v216, 4294901760
  %v3431 = vsub.f32 %v216, %v3430
  %v3432 = vand.u32 %v3431, 4294901760
  %v3433 = vsub.f32 %v3431, %v3432
  %v3434 = vand.u32 %v3433, 4294901760
  %3435 = vmatpush.msra.mxu0 %v3434
  %v3436 = vand.u32 %v215, 4294901760
  %v3437 = vsub.f32 %v215, %v3436
  %v3438 = vand.u32 %v3437, 4294901760
  %v3439 = vsub.f32 %v3437, %v3438
  %v3440 = vand.u32 %v3439, 4294901760
  %3441 = vmatpush.msra.mxu0 %v3440
  %v3442 = vand.u32 %v214, 4294901760
  %v3443 = vsub.f32 %v214, %v3442
  %v3444 = vand.u32 %v3443, 4294901760
  %v3445 = vsub.f32 %v3443, %v3444
  %v3446 = vand.u32 %v3445, 4294901760
  %3447 = vmatpush.msra.mxu0 %v3446
  %v3448 = vand.u32 %v213, 4294901760
  %v3449 = vsub.f32 %v213, %v3448
  %v3450 = vand.u32 %v3449, 4294901760
  %v3451 = vsub.f32 %v3449, %v3450
  %v3452 = vand.u32 %v3451, 4294901760
  %3453 = vmatpush.msra.mxu0 %v3452
  %v3454 = vand.u32 %v212, 4294901760
  %v3455 = vsub.f32 %v212, %v3454
  %v3456 = vand.u32 %v3455, 4294901760
  %v3457 = vsub.f32 %v3455, %v3456
  %v3458 = vand.u32 %v3457, 4294901760
  %3459 = vmatpush.msra.mxu0 %v3458
  %v3460 = vand.u32 %v211, 4294901760
  %v3461 = vsub.f32 %v211, %v3460
  %v3462 = vand.u32 %v3461, 4294901760
  %v3463 = vsub.f32 %v3461, %v3462
  %v3464 = vand.u32 %v3463, 4294901760
  %3465 = vmatpush.msra.mxu0 %v3464
  %v3466 = vand.u32 %v64, 4294901760
  %3467 = vmatmul.f32.gmra.mxu0 %v3466
  %v3468 = vpop.f32.mrf.mxu0
  %v3469 = vadd.f32 %v3368, %v3468
  %3470 = vdwg.mxu0
  %v3471 = vand.u32 %v226, 4294901760
  %v3472 = vsub.f32 %v226, %v3471
  %3473 = vmatpush.msra.mxu0 %v3472
  %v3474 = vand.u32 %v225, 4294901760
  %v3475 = vsub.f32 %v225, %v3474
  %3476 = vmatpush.msra.mxu0 %v3475
  %v3477 = vand.u32 %v224, 4294901760
  %v3478 = vsub.f32 %v224, %v3477
  %3479 = vmatpush.msra.mxu0 %v3478
  %v3480 = vand.u32 %v223, 4294901760
  %v3481 = vsub.f32 %v223, %v3480
  %3482 = vmatpush.msra.mxu0 %v3481
  %v3483 = vand.u32 %v222, 4294901760
  %v3484 = vsub.f32 %v222, %v3483
  %3485 = vmatpush.msra.mxu0 %v3484
  %v3486 = vand.u32 %v221, 4294901760
  %v3487 = vsub.f32 %v221, %v3486
  %3488 = vmatpush.msra.mxu0 %v3487
  %v3489 = vand.u32 %v220, 4294901760
  %v3490 = vsub.f32 %v220, %v3489
  %3491 = vmatpush.msra.mxu0 %v3490
  %v3492 = vand.u32 %v219, 4294901760
  %v3493 = vsub.f32 %v219, %v3492
  %3494 = vmatpush.msra.mxu0 %v3493
  %v3495 = vand.u32 %v218, 4294901760
  %v3496 = vsub.f32 %v218, %v3495
  %3497 = vmatpush.msra.mxu0 %v3496
  %v3498 = vand.u32 %v217, 4294901760
  %v3499 = vsub.f32 %v217, %v3498
  %3500 = vmatpush.msra.mxu0 %v3499
  %v3501 = vand.u32 %v216, 4294901760
  %v3502 = vsub.f32 %v216, %v3501
  %3503 = vmatpush.msra.mxu0 %v3502
  %v3504 = vand.u32 %v215, 4294901760
  %v3505 = vsub.f32 %v215, %v3504
  %3506 = vmatpush.msra.mxu0 %v3505
  %v3507 = vand.u32 %v214, 4294901760
  %v3508 = vsub.f32 %v214, %v3507
  %3509 = vmatpush.msra.mxu0 %v3508
  %v3510 = vand.u32 %v213, 4294901760
  %v3511 = vsub.f32 %v213, %v3510
  %3512 = vmatpush.msra.mxu0 %v3511
  %v3513 = vand.u32 %v212, 4294901760
  %v3514 = vsub.f32 %v212, %v3513
  %3515 = vmatpush.msra.mxu0 %v3514
  %v3516 = vand.u32 %v211, 4294901760
  %v3517 = vsub.f32 %v211, %v3516
  %3518 = vmatpush.msra.mxu0 %v3517
  %v3519 = vand.u32 %v64, 4294901760
  %v3520 = vsub.f32 %v64, %v3519
  %3521 = vmatmul.f32.gmra.mxu0 %v3520
  %v3522 = vpop.f32.mrf.mxu0
  %v3523 = vadd.f32 %v3469, %v3522
  %3524 = vdwg.mxu0
  %v3525 = vand.u32 %v226, 4294901760
  %3526 = vmatpush.msra.mxu0 %v3525
  %v3527 = vand.u32 %v225, 4294901760
  %3528 = vmatpush.msra.mxu0 %v3527
  %v3529 = vand.u32 %v224, 4294901760
  %3530 = vmatpush.msra.mxu0 %v3529
  %v3531 = vand.u32 %v223, 4294901760
  %3532 = vmatpush.msra.mxu0 %v3531
  %v3533 = vand.u32 %v222, 4294901760
  %3534 = vmatpush.msra.mxu0 %v3533
  %v3535 = vand.u32 %v221, 4294901760
  %3536 = vmatpush.msra.mxu0 %v3535
  %v3537 = vand.u32 %v220, 4294901760
  %3538 = vmatpush.msra.mxu0 %v3537
  %v3539 = vand.u32 %v219, 4294901760
  %3540 = vmatpush.msra.mxu0 %v3539
  %v3541 = vand.u32 %v218, 4294901760
  %3542 = vmatpush.msra.mxu0 %v3541
  %v3543 = vand.u32 %v217, 4294901760
  %3544 = vmatpush.msra.mxu0 %v3543
  %v3545 = vand.u32 %v216, 4294901760
  %3546 = vmatpush.msra.mxu0 %v3545
  %v3547 = vand.u32 %v215, 4294901760
  %3548 = vmatpush.msra.mxu0 %v3547
  %v3549 = vand.u32 %v214, 4294901760
  %3550 = vmatpush.msra.mxu0 %v3549
  %v3551 = vand.u32 %v213, 4294901760
  %3552 = vmatpush.msra.mxu0 %v3551
  %v3553 = vand.u32 %v212, 4294901760
  %3554 = vmatpush.msra.mxu0 %v3553
  %v3555 = vand.u32 %v211, 4294901760
  %3556 = vmatpush.msra.mxu0 %v3555
  %v3557 = vand.u32 %v64, 4294901760
  %v3558 = vsub.f32 %v64, %v3557
  %v3559 = vand.u32 %v3558, 4294901760
  %3560 = vmatmul.f32.gmra.mxu0 %v3559
  %v3561 = vpop.f32.mrf.mxu0
  %v3562 = vadd.f32 %v3523, %v3561
  %3563 = vdwg.mxu0
  %v3564 = vand.u32 %v226, 4294901760
  %v3565 = vsub.f32 %v226, %v3564
  %v3566 = vand.u32 %v3565, 4294901760
  %3567 = vmatpush.msra.mxu0 %v3566
  %v3568 = vand.u32 %v225, 4294901760
  %v3569 = vsub.f32 %v225, %v3568
  %v3570 = vand.u32 %v3569, 4294901760
  %3571 = vmatpush.msra.mxu0 %v3570
  %v3572 = vand.u32 %v224, 4294901760
  %v3573 = vsub.f32 %v224, %v3572
  %v3574 = vand.u32 %v3573, 4294901760
  %3575 = vmatpush.msra.mxu0 %v3574
  %v3576 = vand.u32 %v223, 4294901760
  %v3577 = vsub.f32 %v223, %v3576
  %v3578 = vand.u32 %v3577, 4294901760
  %3579 = vmatpush.msra.mxu0 %v3578
  %v3580 = vand.u32 %v222, 4294901760
  %v3581 = vsub.f32 %v222, %v3580
  %v3582 = vand.u32 %v3581, 4294901760
  %3583 = vmatpush.msra.mxu0 %v3582
  %v3584 = vand.u32 %v221, 4294901760
  %v3585 = vsub.f32 %v221, %v3584
  %v3586 = vand.u32 %v3585, 4294901760
  %3587 = vmatpush.msra.mxu0 %v3586
  %v3588 = vand.u32 %v220, 4294901760
  %v3589 = vsub.f32 %v220, %v3588
  %v3590 = vand.u32 %v3589, 4294901760
  %3591 = vmatpush.msra.mxu0 %v3590
  %v3592 = vand.u32 %v219, 4294901760
  %v3593 = vsub.f32 %v219, %v3592
  %v3594 = vand.u32 %v3593, 4294901760
  %3595 = vmatpush.msra.mxu0 %v3594
  %v3596 = vand.u32 %v218, 4294901760
  %v3597 = vsub.f32 %v218, %v3596
  %v3598 = vand.u32 %v3597, 4294901760
  %3599 = vmatpush.msra.mxu0 %v3598
  %v3600 = vand.u32 %v217, 4294901760
  %v3601 = vsub.f32 %v217, %v3600
  %v3602 = vand.u32 %v3601, 4294901760
  %3603 = vmatpush.msra.mxu0 %v3602
  %v3604 = vand.u32 %v216, 4294901760
  %v3605 = vsub.f32 %v216, %v3604
  %v3606 = vand.u32 %v3605, 4294901760
  %3607 = vmatpush.msra.mxu0 %v3606
  %v3608 = vand.u32 %v215, 4294901760
  %v3609 = vsub.f32 %v215, %v3608
  %v3610 = vand.u32 %v3609, 4294901760
  %3611 = vmatpush.msra.mxu0 %v3610
  %v3612 = vand.u32 %v214, 4294901760
  %v3613 = vsub.f32 %v214, %v3612
  %v3614 = vand.u32 %v3613, 4294901760
  %3615 = vmatpush.msra.mxu0 %v3614
  %v3616 = vand.u32 %v213, 4294901760
  %v3617 = vsub.f32 %v213, %v3616
  %v3618 = vand.u32 %v3617, 4294901760
  %3619 = vmatpush.msra.mxu0 %v3618
  %v3620 = vand.u32 %v212, 4294901760
  %v3621 = vsub.f32 %v212, %v3620
  %v3622 = vand.u32 %v3621, 4294901760
  %3623 = vmatpush.msra.mxu0 %v3622
  %v3624 = vand.u32 %v211, 4294901760
  %v3625 = vsub.f32 %v211, %v3624
  %v3626 = vand.u32 %v3625, 4294901760
  %3627 = vmatpush.msra.mxu0 %v3626
  %v3628 = vand.u32 %v64, 4294901760
  %3629 = vmatmul.f32.gmra.mxu0 %v3628
  %v3630 = vpop.f32.mrf.mxu0
  %v3631 = vadd.f32 %v3562, %v3630
  %3632 = vdwg.mxu0
  %v3633 = vand.u32 %v226, 4294901760
  %3634 = vmatpush.msra.mxu0 %v3633
  %v3635 = vand.u32 %v225, 4294901760
  %3636 = vmatpush.msra.mxu0 %v3635
  %v3637 = vand.u32 %v224, 4294901760
  %3638 = vmatpush.msra.mxu0 %v3637
  %v3639 = vand.u32 %v223, 4294901760
  %3640 = vmatpush.msra.mxu0 %v3639
  %v3641 = vand.u32 %v222, 4294901760
  %3642 = vmatpush.msra.mxu0 %v3641
  %v3643 = vand.u32 %v221, 4294901760
  %3644 = vmatpush.msra.mxu0 %v3643
  %v3645 = vand.u32 %v220, 4294901760
  %3646 = vmatpush.msra.mxu0 %v3645
  %v3647 = vand.u32 %v219, 4294901760
  %3648 = vmatpush.msra.mxu0 %v3647
  %v3649 = vand.u32 %v218, 4294901760
  %3650 = vmatpush.msra.mxu0 %v3649
  %v3651 = vand.u32 %v217, 4294901760
  %3652 = vmatpush.msra.mxu0 %v3651
  %v3653 = vand.u32 %v216, 4294901760
  %3654 = vmatpush.msra.mxu0 %v3653
  %v3655 = vand.u32 %v215, 4294901760
  %3656 = vmatpush.msra.mxu0 %v3655
  %v3657 = vand.u32 %v214, 4294901760
  %3658 = vmatpush.msra.mxu0 %v3657
  %v3659 = vand.u32 %v213, 4294901760
  %3660 = vmatpush.msra.mxu0 %v3659
  %v3661 = vand.u32 %v212, 4294901760
  %3662 = vmatpush.msra.mxu0 %v3661
  %v3663 = vand.u32 %v211, 4294901760
  %3664 = vmatpush.msra.mxu0 %v3663
  %v3665 = vand.u32 %v64, 4294901760
  %3666 = vmatmul.f32.gmra.mxu0 %v3665
  %v3667 = vpop.f32.mrf.mxu0
  %v3668 = vadd.f32 %v3631, %v3667
  %3669 = vdwg.mxu0
  %v3670 = vand.u32 %v242, 4294901760
  %3671 = vmatpush.msra.mxu0 %v3670
  %v3672 = vand.u32 %v241, 4294901760
  %3673 = vmatpush.msra.mxu0 %v3672
  %v3674 = vand.u32 %v240, 4294901760
  %3675 = vmatpush.msra.mxu0 %v3674
  %v3676 = vand.u32 %v239, 4294901760
  %3677 = vmatpush.msra.mxu0 %v3676
  %v3678 = vand.u32 %v238, 4294901760
  %3679 = vmatpush.msra.mxu0 %v3678
  %v3680 = vand.u32 %v237, 4294901760
  %3681 = vmatpush.msra.mxu0 %v3680
  %v3682 = vand.u32 %v236, 4294901760
  %3683 = vmatpush.msra.mxu0 %v3682
  %v3684 = vand.u32 %v235, 4294901760
  %3685 = vmatpush.msra.mxu0 %v3684
  %v3686 = vand.u32 %v234, 4294901760
  %3687 = vmatpush.msra.mxu0 %v3686
  %v3688 = vand.u32 %v233, 4294901760
  %3689 = vmatpush.msra.mxu0 %v3688
  %v3690 = vand.u32 %v232, 4294901760
  %3691 = vmatpush.msra.mxu0 %v3690
  %v3692 = vand.u32 %v231, 4294901760
  %3693 = vmatpush.msra.mxu0 %v3692
  %v3694 = vand.u32 %v230, 4294901760
  %3695 = vmatpush.msra.mxu0 %v3694
  %v3696 = vand.u32 %v229, 4294901760
  %3697 = vmatpush.msra.mxu0 %v3696
  %v3698 = vand.u32 %v228, 4294901760
  %3699 = vmatpush.msra.mxu0 %v3698
  %v3700 = vand.u32 %v227, 4294901760
  %3701 = vmatpush.msra.mxu0 %v3700
  %v3702 = vand.u32 %v65, 4294901760
  %v3703 = vsub.f32 %v65, %v3702
  %v3704 = vand.u32 %v3703, 4294901760
  %v3705 = vsub.f32 %v3703, %v3704
  %v3706 = vand.u32 %v3705, 4294901760
  %3707 = vmatmul.f32.gmra.mxu0 %v3706
  %v3708 = vpop.f32.mrf.mxu0
  %v3709 = vadd.f32 %v3668, %v3708
  %3710 = vdwg.mxu0
  %v3711 = vand.u32 %v242, 4294901760
  %v3712 = vsub.f32 %v242, %v3711
  %v3713 = vand.u32 %v3712, 4294901760
  %v3714 = vsub.f32 %v3712, %v3713
  %v3715 = vand.u32 %v3714, 4294901760
  %3716 = vmatpush.msra.mxu0 %v3715
  %v3717 = vand.u32 %v241, 4294901760
  %v3718 = vsub.f32 %v241, %v3717
  %v3719 = vand.u32 %v3718, 4294901760
  %v3720 = vsub.f32 %v3718, %v3719
  %v3721 = vand.u32 %v3720, 4294901760
  %3722 = vmatpush.msra.mxu0 %v3721
  %v3723 = vand.u32 %v240, 4294901760
  %v3724 = vsub.f32 %v240, %v3723
  %v3725 = vand.u32 %v3724, 4294901760
  %v3726 = vsub.f32 %v3724, %v3725
  %v3727 = vand.u32 %v3726, 4294901760
  %3728 = vmatpush.msra.mxu0 %v3727
  %v3729 = vand.u32 %v239, 4294901760
  %v3730 = vsub.f32 %v239, %v3729
  %v3731 = vand.u32 %v3730, 4294901760
  %v3732 = vsub.f32 %v3730, %v3731
  %v3733 = vand.u32 %v3732, 4294901760
  %3734 = vmatpush.msra.mxu0 %v3733
  %v3735 = vand.u32 %v238, 4294901760
  %v3736 = vsub.f32 %v238, %v3735
  %v3737 = vand.u32 %v3736, 4294901760
  %v3738 = vsub.f32 %v3736, %v3737
  %v3739 = vand.u32 %v3738, 4294901760
  %3740 = vmatpush.msra.mxu0 %v3739
  %v3741 = vand.u32 %v237, 4294901760
  %v3742 = vsub.f32 %v237, %v3741
  %v3743 = vand.u32 %v3742, 4294901760
  %v3744 = vsub.f32 %v3742, %v3743
  %v3745 = vand.u32 %v3744, 4294901760
  %3746 = vmatpush.msra.mxu0 %v3745
  %v3747 = vand.u32 %v236, 4294901760
  %v3748 = vsub.f32 %v236, %v3747
  %v3749 = vand.u32 %v3748, 4294901760
  %v3750 = vsub.f32 %v3748, %v3749
  %v3751 = vand.u32 %v3750, 4294901760
  %3752 = vmatpush.msra.mxu0 %v3751
  %v3753 = vand.u32 %v235, 4294901760
  %v3754 = vsub.f32 %v235, %v3753
  %v3755 = vand.u32 %v3754, 4294901760
  %v3756 = vsub.f32 %v3754, %v3755
  %v3757 = vand.u32 %v3756, 4294901760
  %3758 = vmatpush.msra.mxu0 %v3757
  %v3759 = vand.u32 %v234, 4294901760
  %v3760 = vsub.f32 %v234, %v3759
  %v3761 = vand.u32 %v3760, 4294901760
  %v3762 = vsub.f32 %v3760, %v3761
  %v3763 = vand.u32 %v3762, 4294901760
  %3764 = vmatpush.msra.mxu0 %v3763
  %v3765 = vand.u32 %v233, 4294901760
  %v3766 = vsub.f32 %v233, %v3765
  %v3767 = vand.u32 %v3766, 4294901760
  %v3768 = vsub.f32 %v3766, %v3767
  %v3769 = vand.u32 %v3768, 4294901760
  %3770 = vmatpush.msra.mxu0 %v3769
  %v3771 = vand.u32 %v232, 4294901760
  %v3772 = vsub.f32 %v232, %v3771
  %v3773 = vand.u32 %v3772, 4294901760
  %v3774 = vsub.f32 %v3772, %v3773
  %v3775 = vand.u32 %v3774, 4294901760
  %3776 = vmatpush.msra.mxu0 %v3775
  %v3777 = vand.u32 %v231, 4294901760
  %v3778 = vsub.f32 %v231, %v3777
  %v3779 = vand.u32 %v3778, 4294901760
  %v3780 = vsub.f32 %v3778, %v3779
  %v3781 = vand.u32 %v3780, 4294901760
  %3782 = vmatpush.msra.mxu0 %v3781
  %v3783 = vand.u32 %v230, 4294901760
  %v3784 = vsub.f32 %v230, %v3783
  %v3785 = vand.u32 %v3784, 4294901760
  %v3786 = vsub.f32 %v3784, %v3785
  %v3787 = vand.u32 %v3786, 4294901760
  %3788 = vmatpush.msra.mxu0 %v3787
  %v3789 = vand.u32 %v229, 4294901760
  %v3790 = vsub.f32 %v229, %v3789
  %v3791 = vand.u32 %v3790, 4294901760
  %v3792 = vsub.f32 %v3790, %v3791
  %v3793 = vand.u32 %v3792, 4294901760
  %3794 = vmatpush.msra.mxu0 %v3793
  %v3795 = vand.u32 %v228, 4294901760
  %v3796 = vsub.f32 %v228, %v3795
  %v3797 = vand.u32 %v3796, 4294901760
  %v3798 = vsub.f32 %v3796, %v3797
  %v3799 = vand.u32 %v3798, 4294901760
  %3800 = vmatpush.msra.mxu0 %v3799
  %v3801 = vand.u32 %v227, 4294901760
  %v3802 = vsub.f32 %v227, %v3801
  %v3803 = vand.u32 %v3802, 4294901760
  %v3804 = vsub.f32 %v3802, %v3803
  %v3805 = vand.u32 %v3804, 4294901760
  %3806 = vmatpush.msra.mxu0 %v3805
  %v3807 = vand.u32 %v65, 4294901760
  %3808 = vmatmul.f32.gmra.mxu0 %v3807
  %v3809 = vpop.f32.mrf.mxu0
  %v3810 = vadd.f32 %v3709, %v3809
  %3811 = vdwg.mxu0
  %v3812 = vand.u32 %v242, 4294901760
  %v3813 = vsub.f32 %v242, %v3812
  %3814 = vmatpush.msra.mxu0 %v3813
  %v3815 = vand.u32 %v241, 4294901760
  %v3816 = vsub.f32 %v241, %v3815
  %3817 = vmatpush.msra.mxu0 %v3816
  %v3818 = vand.u32 %v240, 4294901760
  %v3819 = vsub.f32 %v240, %v3818
  %3820 = vmatpush.msra.mxu0 %v3819
  %v3821 = vand.u32 %v239, 4294901760
  %v3822 = vsub.f32 %v239, %v3821
  %3823 = vmatpush.msra.mxu0 %v3822
  %v3824 = vand.u32 %v238, 4294901760
  %v3825 = vsub.f32 %v238, %v3824
  %3826 = vmatpush.msra.mxu0 %v3825
  %v3827 = vand.u32 %v237, 4294901760
  %v3828 = vsub.f32 %v237, %v3827
  %3829 = vmatpush.msra.mxu0 %v3828
  %v3830 = vand.u32 %v236, 4294901760
  %v3831 = vsub.f32 %v236, %v3830
  %3832 = vmatpush.msra.mxu0 %v3831
  %v3833 = vand.u32 %v235, 4294901760
  %v3834 = vsub.f32 %v235, %v3833
  %3835 = vmatpush.msra.mxu0 %v3834
  %v3836 = vand.u32 %v234, 4294901760
  %v3837 = vsub.f32 %v234, %v3836
  %3838 = vmatpush.msra.mxu0 %v3837
  %v3839 = vand.u32 %v233, 4294901760
  %v3840 = vsub.f32 %v233, %v3839
  %3841 = vmatpush.msra.mxu0 %v3840
  %v3842 = vand.u32 %v232, 4294901760
  %v3843 = vsub.f32 %v232, %v3842
  %3844 = vmatpush.msra.mxu0 %v3843
  %v3845 = vand.u32 %v231, 4294901760
  %v3846 = vsub.f32 %v231, %v3845
  %3847 = vmatpush.msra.mxu0 %v3846
  %v3848 = vand.u32 %v230, 4294901760
  %v3849 = vsub.f32 %v230, %v3848
  %3850 = vmatpush.msra.mxu0 %v3849
  %v3851 = vand.u32 %v229, 4294901760
  %v3852 = vsub.f32 %v229, %v3851
  %3853 = vmatpush.msra.mxu0 %v3852
  %v3854 = vand.u32 %v228, 4294901760
  %v3855 = vsub.f32 %v228, %v3854
  %3856 = vmatpush.msra.mxu0 %v3855
  %v3857 = vand.u32 %v227, 4294901760
  %v3858 = vsub.f32 %v227, %v3857
  %3859 = vmatpush.msra.mxu0 %v3858
  %v3860 = vand.u32 %v65, 4294901760
  %v3861 = vsub.f32 %v65, %v3860
  %3862 = vmatmul.f32.gmra.mxu0 %v3861
  %v3863 = vpop.f32.mrf.mxu0
  %v3864 = vadd.f32 %v3810, %v3863
  %3865 = vdwg.mxu0
  %v3866 = vand.u32 %v242, 4294901760
  %3867 = vmatpush.msra.mxu0 %v3866
  %v3868 = vand.u32 %v241, 4294901760
  %3869 = vmatpush.msra.mxu0 %v3868
  %v3870 = vand.u32 %v240, 4294901760
  %3871 = vmatpush.msra.mxu0 %v3870
  %v3872 = vand.u32 %v239, 4294901760
  %3873 = vmatpush.msra.mxu0 %v3872
  %v3874 = vand.u32 %v238, 4294901760
  %3875 = vmatpush.msra.mxu0 %v3874
  %v3876 = vand.u32 %v237, 4294901760
  %3877 = vmatpush.msra.mxu0 %v3876
  %v3878 = vand.u32 %v236, 4294901760
  %3879 = vmatpush.msra.mxu0 %v3878
  %v3880 = vand.u32 %v235, 4294901760
  %3881 = vmatpush.msra.mxu0 %v3880
  %v3882 = vand.u32 %v234, 4294901760
  %3883 = vmatpush.msra.mxu0 %v3882
  %v3884 = vand.u32 %v233, 4294901760
  %3885 = vmatpush.msra.mxu0 %v3884
  %v3886 = vand.u32 %v232, 4294901760
  %3887 = vmatpush.msra.mxu0 %v3886
  %v3888 = vand.u32 %v231, 4294901760
  %3889 = vmatpush.msra.mxu0 %v3888
  %v3890 = vand.u32 %v230, 4294901760
  %3891 = vmatpush.msra.mxu0 %v3890
  %v3892 = vand.u32 %v229, 4294901760
  %3893 = vmatpush.msra.mxu0 %v3892
  %v3894 = vand.u32 %v228, 4294901760
  %3895 = vmatpush.msra.mxu0 %v3894
  %v3896 = vand.u32 %v227, 4294901760
  %3897 = vmatpush.msra.mxu0 %v3896
  %v3898 = vand.u32 %v65, 4294901760
  %v3899 = vsub.f32 %v65, %v3898
  %v3900 = vand.u32 %v3899, 4294901760
  %3901 = vmatmul.f32.gmra.mxu0 %v3900
  %v3902 = vpop.f32.mrf.mxu0
  %v3903 = vadd.f32 %v3864, %v3902
  %3904 = vdwg.mxu0
  %v3905 = vand.u32 %v242, 4294901760
  %v3906 = vsub.f32 %v242, %v3905
  %v3907 = vand.u32 %v3906, 4294901760
  %3908 = vmatpush.msra.mxu0 %v3907
  %v3909 = vand.u32 %v241, 4294901760
  %v3910 = vsub.f32 %v241, %v3909
  %v3911 = vand.u32 %v3910, 4294901760
  %3912 = vmatpush.msra.mxu0 %v3911
  %v3913 = vand.u32 %v240, 4294901760
  %v3914 = vsub.f32 %v240, %v3913
  %v3915 = vand.u32 %v3914, 4294901760
  %3916 = vmatpush.msra.mxu0 %v3915
  %v3917 = vand.u32 %v239, 4294901760
  %v3918 = vsub.f32 %v239, %v3917
  %v3919 = vand.u32 %v3918, 4294901760
  %3920 = vmatpush.msra.mxu0 %v3919
  %v3921 = vand.u32 %v238, 4294901760
  %v3922 = vsub.f32 %v238, %v3921
  %v3923 = vand.u32 %v3922, 4294901760
  %3924 = vmatpush.msra.mxu0 %v3923
  %v3925 = vand.u32 %v237, 4294901760
  %v3926 = vsub.f32 %v237, %v3925
  %v3927 = vand.u32 %v3926, 4294901760
  %3928 = vmatpush.msra.mxu0 %v3927
  %v3929 = vand.u32 %v236, 4294901760
  %v3930 = vsub.f32 %v236, %v3929
  %v3931 = vand.u32 %v3930, 4294901760
  %3932 = vmatpush.msra.mxu0 %v3931
  %v3933 = vand.u32 %v235, 4294901760
  %v3934 = vsub.f32 %v235, %v3933
  %v3935 = vand.u32 %v3934, 4294901760
  %3936 = vmatpush.msra.mxu0 %v3935
  %v3937 = vand.u32 %v234, 4294901760
  %v3938 = vsub.f32 %v234, %v3937
  %v3939 = vand.u32 %v3938, 4294901760
  %3940 = vmatpush.msra.mxu0 %v3939
  %v3941 = vand.u32 %v233, 4294901760
  %v3942 = vsub.f32 %v233, %v3941
  %v3943 = vand.u32 %v3942, 4294901760
  %3944 = vmatpush.msra.mxu0 %v3943
  %v3945 = vand.u32 %v232, 4294901760
  %v3946 = vsub.f32 %v232, %v3945
  %v3947 = vand.u32 %v3946, 4294901760
  %3948 = vmatpush.msra.mxu0 %v3947
  %v3949 = vand.u32 %v231, 4294901760
  %v3950 = vsub.f32 %v231, %v3949
  %v3951 = vand.u32 %v3950, 4294901760
  %3952 = vmatpush.msra.mxu0 %v3951
  %v3953 = vand.u32 %v230, 4294901760
  %v3954 = vsub.f32 %v230, %v3953
  %v3955 = vand.u32 %v3954, 4294901760
  %3956 = vmatpush.msra.mxu0 %v3955
  %v3957 = vand.u32 %v229, 4294901760
  %v3958 = vsub.f32 %v229, %v3957
  %v3959 = vand.u32 %v3958, 4294901760
  %3960 = vmatpush.msra.mxu0 %v3959
  %v3961 = vand.u32 %v228, 4294901760
  %v3962 = vsub.f32 %v228, %v3961
  %v3963 = vand.u32 %v3962, 4294901760
  %3964 = vmatpush.msra.mxu0 %v3963
  %v3965 = vand.u32 %v227, 4294901760
  %v3966 = vsub.f32 %v227, %v3965
  %v3967 = vand.u32 %v3966, 4294901760
  %3968 = vmatpush.msra.mxu0 %v3967
  %v3969 = vand.u32 %v65, 4294901760
  %3970 = vmatmul.f32.gmra.mxu0 %v3969
  %v3971 = vpop.f32.mrf.mxu0
  %v3972 = vadd.f32 %v3903, %v3971
  %3973 = vdwg.mxu0
  %v3974 = vand.u32 %v242, 4294901760
  %3975 = vmatpush.msra.mxu0 %v3974
  %v3976 = vand.u32 %v241, 4294901760
  %3977 = vmatpush.msra.mxu0 %v3976
  %v3978 = vand.u32 %v240, 4294901760
  %3979 = vmatpush.msra.mxu0 %v3978
  %v3980 = vand.u32 %v239, 4294901760
  %3981 = vmatpush.msra.mxu0 %v3980
  %v3982 = vand.u32 %v238, 4294901760
  %3983 = vmatpush.msra.mxu0 %v3982
  %v3984 = vand.u32 %v237, 4294901760
  %3985 = vmatpush.msra.mxu0 %v3984
  %v3986 = vand.u32 %v236, 4294901760
  %3987 = vmatpush.msra.mxu0 %v3986
  %v3988 = vand.u32 %v235, 4294901760
  %3989 = vmatpush.msra.mxu0 %v3988
  %v3990 = vand.u32 %v234, 4294901760
  %3991 = vmatpush.msra.mxu0 %v3990
  %v3992 = vand.u32 %v233, 4294901760
  %3993 = vmatpush.msra.mxu0 %v3992
  %v3994 = vand.u32 %v232, 4294901760
  %3995 = vmatpush.msra.mxu0 %v3994
  %v3996 = vand.u32 %v231, 4294901760
  %3997 = vmatpush.msra.mxu0 %v3996
  %v3998 = vand.u32 %v230, 4294901760
  %3999 = vmatpush.msra.mxu0 %v3998
  %v4000 = vand.u32 %v229, 4294901760
  %4001 = vmatpush.msra.mxu0 %v4000
  %v4002 = vand.u32 %v228, 4294901760
  %4003 = vmatpush.msra.mxu0 %v4002
  %v4004 = vand.u32 %v227, 4294901760
  %4005 = vmatpush.msra.mxu0 %v4004
  %v4006 = vand.u32 %v65, 4294901760
  %4007 = vmatmul.f32.gmra.mxu0 %v4006
  %v4008 = vpop.f32.mrf.mxu0
  %v4009 = vadd.f32 %v3972, %v4008
  %4010 = vdwg.mxu0
  %v4011 = vand.u32 %v258, 4294901760
  %4012 = vmatpush.msra.mxu0 %v4011
  %v4013 = vand.u32 %v257, 4294901760
  %4014 = vmatpush.msra.mxu0 %v4013
  %v4015 = vand.u32 %v256, 4294901760
  %4016 = vmatpush.msra.mxu0 %v4015
  %v4017 = vand.u32 %v255, 4294901760
  %4018 = vmatpush.msra.mxu0 %v4017
  %v4019 = vand.u32 %v254, 4294901760
  %4020 = vmatpush.msra.mxu0 %v4019
  %v4021 = vand.u32 %v253, 4294901760
  %4022 = vmatpush.msra.mxu0 %v4021
  %v4023 = vand.u32 %v252, 4294901760
  %4024 = vmatpush.msra.mxu0 %v4023
  %v4025 = vand.u32 %v251, 4294901760
  %4026 = vmatpush.msra.mxu0 %v4025
  %v4027 = vand.u32 %v250, 4294901760
  %4028 = vmatpush.msra.mxu0 %v4027
  %v4029 = vand.u32 %v249, 4294901760
  %4030 = vmatpush.msra.mxu0 %v4029
  %v4031 = vand.u32 %v248, 4294901760
  %4032 = vmatpush.msra.mxu0 %v4031
  %v4033 = vand.u32 %v247, 4294901760
  %4034 = vmatpush.msra.mxu0 %v4033
  %v4035 = vand.u32 %v246, 4294901760
  %4036 = vmatpush.msra.mxu0 %v4035
  %v4037 = vand.u32 %v245, 4294901760
  %4038 = vmatpush.msra.mxu0 %v4037
  %v4039 = vand.u32 %v244, 4294901760
  %4040 = vmatpush.msra.mxu0 %v4039
  %v4041 = vand.u32 %v243, 4294901760
  %4042 = vmatpush.msra.mxu0 %v4041
  %v4043 = vand.u32 %v66, 4294901760
  %v4044 = vsub.f32 %v66, %v4043
  %v4045 = vand.u32 %v4044, 4294901760
  %v4046 = vsub.f32 %v4044, %v4045
  %v4047 = vand.u32 %v4046, 4294901760
  %4048 = vmatmul.f32.gmra.mxu0 %v4047
  %v4049 = vpop.f32.mrf.mxu0
  %v4050 = vadd.f32 %v4009, %v4049
  %4051 = vdwg.mxu0
  %v4052 = vand.u32 %v258, 4294901760
  %v4053 = vsub.f32 %v258, %v4052
  %v4054 = vand.u32 %v4053, 4294901760
  %v4055 = vsub.f32 %v4053, %v4054
  %v4056 = vand.u32 %v4055, 4294901760
  %4057 = vmatpush.msra.mxu0 %v4056
  %v4058 = vand.u32 %v257, 4294901760
  %v4059 = vsub.f32 %v257, %v4058
  %v4060 = vand.u32 %v4059, 4294901760
  %v4061 = vsub.f32 %v4059, %v4060
  %v4062 = vand.u32 %v4061, 4294901760
  %4063 = vmatpush.msra.mxu0 %v4062
  %v4064 = vand.u32 %v256, 4294901760
  %v4065 = vsub.f32 %v256, %v4064
  %v4066 = vand.u32 %v4065, 4294901760
  %v4067 = vsub.f32 %v4065, %v4066
  %v4068 = vand.u32 %v4067, 4294901760
  %4069 = vmatpush.msra.mxu0 %v4068
  %v4070 = vand.u32 %v255, 4294901760
  %v4071 = vsub.f32 %v255, %v4070
  %v4072 = vand.u32 %v4071, 4294901760
  %v4073 = vsub.f32 %v4071, %v4072
  %v4074 = vand.u32 %v4073, 4294901760
  %4075 = vmatpush.msra.mxu0 %v4074
  %v4076 = vand.u32 %v254, 4294901760
  %v4077 = vsub.f32 %v254, %v4076
  %v4078 = vand.u32 %v4077, 4294901760
  %v4079 = vsub.f32 %v4077, %v4078
  %v4080 = vand.u32 %v4079, 4294901760
  %4081 = vmatpush.msra.mxu0 %v4080
  %v4082 = vand.u32 %v253, 4294901760
  %v4083 = vsub.f32 %v253, %v4082
  %v4084 = vand.u32 %v4083, 4294901760
  %v4085 = vsub.f32 %v4083, %v4084
  %v4086 = vand.u32 %v4085, 4294901760
  %4087 = vmatpush.msra.mxu0 %v4086
  %v4088 = vand.u32 %v252, 4294901760
  %v4089 = vsub.f32 %v252, %v4088
  %v4090 = vand.u32 %v4089, 4294901760
  %v4091 = vsub.f32 %v4089, %v4090
  %v4092 = vand.u32 %v4091, 4294901760
  %4093 = vmatpush.msra.mxu0 %v4092
  %v4094 = vand.u32 %v251, 4294901760
  %v4095 = vsub.f32 %v251, %v4094
  %v4096 = vand.u32 %v4095, 4294901760
  %v4097 = vsub.f32 %v4095, %v4096
  %v4098 = vand.u32 %v4097, 4294901760
  %4099 = vmatpush.msra.mxu0 %v4098
  %v4100 = vand.u32 %v250, 4294901760
  %v4101 = vsub.f32 %v250, %v4100
  %v4102 = vand.u32 %v4101, 4294901760
  %v4103 = vsub.f32 %v4101, %v4102
  %v4104 = vand.u32 %v4103, 4294901760
  %4105 = vmatpush.msra.mxu0 %v4104
  %v4106 = vand.u32 %v249, 4294901760
  %v4107 = vsub.f32 %v249, %v4106
  %v4108 = vand.u32 %v4107, 4294901760
  %v4109 = vsub.f32 %v4107, %v4108
  %v4110 = vand.u32 %v4109, 4294901760
  %4111 = vmatpush.msra.mxu0 %v4110
  %v4112 = vand.u32 %v248, 4294901760
  %v4113 = vsub.f32 %v248, %v4112
  %v4114 = vand.u32 %v4113, 4294901760
  %v4115 = vsub.f32 %v4113, %v4114
  %v4116 = vand.u32 %v4115, 4294901760
  %4117 = vmatpush.msra.mxu0 %v4116
  %v4118 = vand.u32 %v247, 4294901760
  %v4119 = vsub.f32 %v247, %v4118
  %v4120 = vand.u32 %v4119, 4294901760
  %v4121 = vsub.f32 %v4119, %v4120
  %v4122 = vand.u32 %v4121, 4294901760
  %4123 = vmatpush.msra.mxu0 %v4122
  %v4124 = vand.u32 %v246, 4294901760
  %v4125 = vsub.f32 %v246, %v4124
  %v4126 = vand.u32 %v4125, 4294901760
  %v4127 = vsub.f32 %v4125, %v4126
  %v4128 = vand.u32 %v4127, 4294901760
  %4129 = vmatpush.msra.mxu0 %v4128
  %v4130 = vand.u32 %v245, 4294901760
  %v4131 = vsub.f32 %v245, %v4130
  %v4132 = vand.u32 %v4131, 4294901760
  %v4133 = vsub.f32 %v4131, %v4132
  %v4134 = vand.u32 %v4133, 4294901760
  %4135 = vmatpush.msra.mxu0 %v4134
  %v4136 = vand.u32 %v244, 4294901760
  %v4137 = vsub.f32 %v244, %v4136
  %v4138 = vand.u32 %v4137, 4294901760
  %v4139 = vsub.f32 %v4137, %v4138
  %v4140 = vand.u32 %v4139, 4294901760
  %4141 = vmatpush.msra.mxu0 %v4140
  %v4142 = vand.u32 %v243, 4294901760
  %v4143 = vsub.f32 %v243, %v4142
  %v4144 = vand.u32 %v4143, 4294901760
  %v4145 = vsub.f32 %v4143, %v4144
  %v4146 = vand.u32 %v4145, 4294901760
  %4147 = vmatpush.msra.mxu0 %v4146
  %v4148 = vand.u32 %v66, 4294901760
  %4149 = vmatmul.f32.gmra.mxu0 %v4148
  %v4150 = vpop.f32.mrf.mxu0
  %v4151 = vadd.f32 %v4050, %v4150
  %4152 = vdwg.mxu0
  %v4153 = vand.u32 %v258, 4294901760
  %v4154 = vsub.f32 %v258, %v4153
  %4155 = vmatpush.msra.mxu0 %v4154
  %v4156 = vand.u32 %v257, 4294901760
  %v4157 = vsub.f32 %v257, %v4156
  %4158 = vmatpush.msra.mxu0 %v4157
  %v4159 = vand.u32 %v256, 4294901760
  %v4160 = vsub.f32 %v256, %v4159
  %4161 = vmatpush.msra.mxu0 %v4160
  %v4162 = vand.u32 %v255, 4294901760
  %v4163 = vsub.f32 %v255, %v4162
  %4164 = vmatpush.msra.mxu0 %v4163
  %v4165 = vand.u32 %v254, 4294901760
  %v4166 = vsub.f32 %v254, %v4165
  %4167 = vmatpush.msra.mxu0 %v4166
  %v4168 = vand.u32 %v253, 4294901760
  %v4169 = vsub.f32 %v253, %v4168
  %4170 = vmatpush.msra.mxu0 %v4169
  %v4171 = vand.u32 %v252, 4294901760
  %v4172 = vsub.f32 %v252, %v4171
  %4173 = vmatpush.msra.mxu0 %v4172
  %v4174 = vand.u32 %v251, 4294901760
  %v4175 = vsub.f32 %v251, %v4174
  %4176 = vmatpush.msra.mxu0 %v4175
  %v4177 = vand.u32 %v250, 4294901760
  %v4178 = vsub.f32 %v250, %v4177
  %4179 = vmatpush.msra.mxu0 %v4178
  %v4180 = vand.u32 %v249, 4294901760
  %v4181 = vsub.f32 %v249, %v4180
  %4182 = vmatpush.msra.mxu0 %v4181
  %v4183 = vand.u32 %v248, 4294901760
  %v4184 = vsub.f32 %v248, %v4183
  %4185 = vmatpush.msra.mxu0 %v4184
  %v4186 = vand.u32 %v247, 4294901760
  %v4187 = vsub.f32 %v247, %v4186
  %4188 = vmatpush.msra.mxu0 %v4187
  %v4189 = vand.u32 %v246, 4294901760
  %v4190 = vsub.f32 %v246, %v4189
  %4191 = vmatpush.msra.mxu0 %v4190
  %v4192 = vand.u32 %v245, 4294901760
  %v4193 = vsub.f32 %v245, %v4192
  %4194 = vmatpush.msra.mxu0 %v4193
  %v4195 = vand.u32 %v244, 4294901760
  %v4196 = vsub.f32 %v244, %v4195
  %4197 = vmatpush.msra.mxu0 %v4196
  %v4198 = vand.u32 %v243, 4294901760
  %v4199 = vsub.f32 %v243, %v4198
  %4200 = vmatpush.msra.mxu0 %v4199
  %v4201 = vand.u32 %v66, 4294901760
  %v4202 = vsub.f32 %v66, %v4201
  %4203 = vmatmul.f32.gmra.mxu0 %v4202
  %v4204 = vpop.f32.mrf.mxu0
  %v4205 = vadd.f32 %v4151, %v4204
  %4206 = vdwg.mxu0
  %v4207 = vand.u32 %v258, 4294901760
  %4208 = vmatpush.msra.mxu0 %v4207
  %v4209 = vand.u32 %v257, 4294901760
  %4210 = vmatpush.msra.mxu0 %v4209
  %v4211 = vand.u32 %v256, 4294901760
  %4212 = vmatpush.msra.mxu0 %v4211
  %v4213 = vand.u32 %v255, 4294901760
  %4214 = vmatpush.msra.mxu0 %v4213
  %v4215 = vand.u32 %v254, 4294901760
  %4216 = vmatpush.msra.mxu0 %v4215
  %v4217 = vand.u32 %v253, 4294901760
  %4218 = vmatpush.msra.mxu0 %v4217
  %v4219 = vand.u32 %v252, 4294901760
  %4220 = vmatpush.msra.mxu0 %v4219
  %v4221 = vand.u32 %v251, 4294901760
  %4222 = vmatpush.msra.mxu0 %v4221
  %v4223 = vand.u32 %v250, 4294901760
  %4224 = vmatpush.msra.mxu0 %v4223
  %v4225 = vand.u32 %v249, 4294901760
  %4226 = vmatpush.msra.mxu0 %v4225
  %v4227 = vand.u32 %v248, 4294901760
  %4228 = vmatpush.msra.mxu0 %v4227
  %v4229 = vand.u32 %v247, 4294901760
  %4230 = vmatpush.msra.mxu0 %v4229
  %v4231 = vand.u32 %v246, 4294901760
  %4232 = vmatpush.msra.mxu0 %v4231
  %v4233 = vand.u32 %v245, 4294901760
  %4234 = vmatpush.msra.mxu0 %v4233
  %v4235 = vand.u32 %v244, 4294901760
  %4236 = vmatpush.msra.mxu0 %v4235
  %v4237 = vand.u32 %v243, 4294901760
  %4238 = vmatpush.msra.mxu0 %v4237
  %v4239 = vand.u32 %v66, 4294901760
  %v4240 = vsub.f32 %v66, %v4239
  %v4241 = vand.u32 %v4240, 4294901760
  %4242 = vmatmul.f32.gmra.mxu0 %v4241
  %v4243 = vpop.f32.mrf.mxu0
  %v4244 = vadd.f32 %v4205, %v4243
  %4245 = vdwg.mxu0
  %v4246 = vand.u32 %v258, 4294901760
  %v4247 = vsub.f32 %v258, %v4246
  %v4248 = vand.u32 %v4247, 4294901760
  %4249 = vmatpush.msra.mxu0 %v4248
  %v4250 = vand.u32 %v257, 4294901760
  %v4251 = vsub.f32 %v257, %v4250
  %v4252 = vand.u32 %v4251, 4294901760
  %4253 = vmatpush.msra.mxu0 %v4252
  %v4254 = vand.u32 %v256, 4294901760
  %v4255 = vsub.f32 %v256, %v4254
  %v4256 = vand.u32 %v4255, 4294901760
  %4257 = vmatpush.msra.mxu0 %v4256
  %v4258 = vand.u32 %v255, 4294901760
  %v4259 = vsub.f32 %v255, %v4258
  %v4260 = vand.u32 %v4259, 4294901760
  %4261 = vmatpush.msra.mxu0 %v4260
  %v4262 = vand.u32 %v254, 4294901760
  %v4263 = vsub.f32 %v254, %v4262
  %v4264 = vand.u32 %v4263, 4294901760
  %4265 = vmatpush.msra.mxu0 %v4264
  %v4266 = vand.u32 %v253, 4294901760
  %v4267 = vsub.f32 %v253, %v4266
  %v4268 = vand.u32 %v4267, 4294901760
  %4269 = vmatpush.msra.mxu0 %v4268
  %v4270 = vand.u32 %v252, 4294901760
  %v4271 = vsub.f32 %v252, %v4270
  %v4272 = vand.u32 %v4271, 4294901760
  %4273 = vmatpush.msra.mxu0 %v4272
  %v4274 = vand.u32 %v251, 4294901760
  %v4275 = vsub.f32 %v251, %v4274
  %v4276 = vand.u32 %v4275, 4294901760
  %4277 = vmatpush.msra.mxu0 %v4276
  %v4278 = vand.u32 %v250, 4294901760
  %v4279 = vsub.f32 %v250, %v4278
  %v4280 = vand.u32 %v4279, 4294901760
  %4281 = vmatpush.msra.mxu0 %v4280
  %v4282 = vand.u32 %v249, 4294901760
  %v4283 = vsub.f32 %v249, %v4282
  %v4284 = vand.u32 %v4283, 4294901760
  %4285 = vmatpush.msra.mxu0 %v4284
  %v4286 = vand.u32 %v248, 4294901760
  %v4287 = vsub.f32 %v248, %v4286
  %v4288 = vand.u32 %v4287, 4294901760
  %4289 = vmatpush.msra.mxu0 %v4288
  %v4290 = vand.u32 %v247, 4294901760
  %v4291 = vsub.f32 %v247, %v4290
  %v4292 = vand.u32 %v4291, 4294901760
  %4293 = vmatpush.msra.mxu0 %v4292
  %v4294 = vand.u32 %v246, 4294901760
  %v4295 = vsub.f32 %v246, %v4294
  %v4296 = vand.u32 %v4295, 4294901760
  %4297 = vmatpush.msra.mxu0 %v4296
  %v4298 = vand.u32 %v245, 4294901760
  %v4299 = vsub.f32 %v245, %v4298
  %v4300 = vand.u32 %v4299, 4294901760
  %4301 = vmatpush.msra.mxu0 %v4300
  %v4302 = vand.u32 %v244, 4294901760
  %v4303 = vsub.f32 %v244, %v4302
  %v4304 = vand.u32 %v4303, 4294901760
  %4305 = vmatpush.msra.mxu0 %v4304
  %v4306 = vand.u32 %v243, 4294901760
  %v4307 = vsub.f32 %v243, %v4306
  %v4308 = vand.u32 %v4307, 4294901760
  %4309 = vmatpush.msra.mxu0 %v4308
  %v4310 = vand.u32 %v66, 4294901760
  %4311 = vmatmul.f32.gmra.mxu0 %v4310
  %v4312 = vpop.f32.mrf.mxu0
  %v4313 = vadd.f32 %v4244, %v4312
  %4314 = vdwg.mxu0
  %v4315 = vand.u32 %v258, 4294901760
  %4316 = vmatpush.msra.mxu0 %v4315
  %v4317 = vand.u32 %v257, 4294901760
  %4318 = vmatpush.msra.mxu0 %v4317
  %v4319 = vand.u32 %v256, 4294901760
  %4320 = vmatpush.msra.mxu0 %v4319
  %v4321 = vand.u32 %v255, 4294901760
  %4322 = vmatpush.msra.mxu0 %v4321
  %v4323 = vand.u32 %v254, 4294901760
  %4324 = vmatpush.msra.mxu0 %v4323
  %v4325 = vand.u32 %v253, 4294901760
  %4326 = vmatpush.msra.mxu0 %v4325
  %v4327 = vand.u32 %v252, 4294901760
  %4328 = vmatpush.msra.mxu0 %v4327
  %v4329 = vand.u32 %v251, 4294901760
  %4330 = vmatpush.msra.mxu0 %v4329
  %v4331 = vand.u32 %v250, 4294901760
  %4332 = vmatpush.msra.mxu0 %v4331
  %v4333 = vand.u32 %v249, 4294901760
  %4334 = vmatpush.msra.mxu0 %v4333
  %v4335 = vand.u32 %v248, 4294901760
  %4336 = vmatpush.msra.mxu0 %v4335
  %v4337 = vand.u32 %v247, 4294901760
  %4338 = vmatpush.msra.mxu0 %v4337
  %v4339 = vand.u32 %v246, 4294901760
  %4340 = vmatpush.msra.mxu0 %v4339
  %v4341 = vand.u32 %v245, 4294901760
  %4342 = vmatpush.msra.mxu0 %v4341
  %v4343 = vand.u32 %v244, 4294901760
  %4344 = vmatpush.msra.mxu0 %v4343
  %v4345 = vand.u32 %v243, 4294901760
  %4346 = vmatpush.msra.mxu0 %v4345
  %v4347 = vand.u32 %v66, 4294901760
  %4348 = vmatmul.f32.gmra.mxu0 %v4347
  %v4349 = vpop.f32.mrf.mxu0
  %v4350 = vadd.f32 %v4313, %v4349
  %4351 = vdwg.mxu0
  %vm4352 = vcmask 64512
  %v4354 = vsel %vm4352, %v53, 0
  %4356 = vmatpush.msra.mxu0 0.0
  %4357 = vmatpush.msra.mxu0 0.0
  %4358 = vmatpush.msra.mxu0 0.0
  %4359 = vmatpush.msra.mxu0 0.0
  %4360 = vmatpush.msra.mxu0 0.0
  %4361 = vmatpush.msra.mxu0 0.0
  %4362 = vmatpush.msra.mxu0 0.0
  %4363 = vmatpush.msra.mxu0 0.0
  %4364 = vmatpush.msra.mxu0 0.0
  %4365 = vmatpush.msra.mxu0 0.0
  %4366 = vmatpush.msra.mxu0 0.0
  %4367 = vmatpush.msra.mxu0 0.0
  %4368 = vmatpush.msra.mxu0 0.0
  %4369 = vmatpush.msra.mxu0 0.0
  %4370 = vmatpush.msra.mxu0 0.0
  %v4371 = vand.u32 %v4350, 4294901760
  %4372 = vmatpush.msra.mxu0 %v4371
  %v4373 = vand.u32 %v4354, 4294901760
  %v4374 = vsub.f32 %v4354, %v4373
  %v4375 = vand.u32 %v4374, 4294901760
  %v4376 = vsub.f32 %v4374, %v4375
  %v4377 = vand.u32 %v4376, 4294901760
  %4378 = vmatmul.f32.gmra.mxu0 %v4377
  %v4379 = vpop.f32.mrf.mxu0
  %v4380 = vadd.f32 0.0, %v4379
  %4381 = vdwg.mxu0
  %4382 = vmatpush.msra.mxu0 0.0
  %4383 = vmatpush.msra.mxu0 0.0
  %4384 = vmatpush.msra.mxu0 0.0
  %4385 = vmatpush.msra.mxu0 0.0
  %4386 = vmatpush.msra.mxu0 0.0
  %4387 = vmatpush.msra.mxu0 0.0
  %4388 = vmatpush.msra.mxu0 0.0
  %4389 = vmatpush.msra.mxu0 0.0
  %4390 = vmatpush.msra.mxu0 0.0
  %4391 = vmatpush.msra.mxu0 0.0
  %4392 = vmatpush.msra.mxu0 0.0
  %4393 = vmatpush.msra.mxu0 0.0
  %4394 = vmatpush.msra.mxu0 0.0
  %4395 = vmatpush.msra.mxu0 0.0
  %4396 = vmatpush.msra.mxu0 0.0
  %v4397 = vand.u32 %v4350, 4294901760
  %v4398 = vsub.f32 %v4350, %v4397
  %v4399 = vand.u32 %v4398, 4294901760
  %v4400 = vsub.f32 %v4398, %v4399
  %v4401 = vand.u32 %v4400, 4294901760
  %4402 = vmatpush.msra.mxu0 %v4401
  %v4403 = vand.u32 %v4354, 4294901760
  %4404 = vmatmul.f32.gmra.mxu0 %v4403
  %v4405 = vpop.f32.mrf.mxu0
  %v4406 = vadd.f32 %v4380, %v4405
  %4407 = vdwg.mxu0
  %4408 = vmatpush.msra.mxu0 0.0
  %4409 = vmatpush.msra.mxu0 0.0
  %4410 = vmatpush.msra.mxu0 0.0
  %4411 = vmatpush.msra.mxu0 0.0
  %4412 = vmatpush.msra.mxu0 0.0
  %4413 = vmatpush.msra.mxu0 0.0
  %4414 = vmatpush.msra.mxu0 0.0
  %4415 = vmatpush.msra.mxu0 0.0
  %4416 = vmatpush.msra.mxu0 0.0
  %4417 = vmatpush.msra.mxu0 0.0
  %4418 = vmatpush.msra.mxu0 0.0
  %4419 = vmatpush.msra.mxu0 0.0
  %4420 = vmatpush.msra.mxu0 0.0
  %4421 = vmatpush.msra.mxu0 0.0
  %4422 = vmatpush.msra.mxu0 0.0
  %v4423 = vand.u32 %v4350, 4294901760
  %v4424 = vsub.f32 %v4350, %v4423
  %4425 = vmatpush.msra.mxu0 %v4424
  %v4426 = vand.u32 %v4354, 4294901760
  %v4427 = vsub.f32 %v4354, %v4426
  %4428 = vmatmul.f32.gmra.mxu0 %v4427
  %v4429 = vpop.f32.mrf.mxu0
  %v4430 = vadd.f32 %v4406, %v4429
  %4431 = vdwg.mxu0
  %4432 = vmatpush.msra.mxu0 0.0
  %4433 = vmatpush.msra.mxu0 0.0
  %4434 = vmatpush.msra.mxu0 0.0
  %4435 = vmatpush.msra.mxu0 0.0
  %4436 = vmatpush.msra.mxu0 0.0
  %4437 = vmatpush.msra.mxu0 0.0
  %4438 = vmatpush.msra.mxu0 0.0
  %4439 = vmatpush.msra.mxu0 0.0
  %4440 = vmatpush.msra.mxu0 0.0
  %4441 = vmatpush.msra.mxu0 0.0
  %4442 = vmatpush.msra.mxu0 0.0
  %4443 = vmatpush.msra.mxu0 0.0
  %4444 = vmatpush.msra.mxu0 0.0
  %4445 = vmatpush.msra.mxu0 0.0
  %4446 = vmatpush.msra.mxu0 0.0
  %v4447 = vand.u32 %v4350, 4294901760
  %4448 = vmatpush.msra.mxu0 %v4447
  %v4449 = vand.u32 %v4354, 4294901760
  %v4450 = vsub.f32 %v4354, %v4449
  %v4451 = vand.u32 %v4450, 4294901760
  %4452 = vmatmul.f32.gmra.mxu0 %v4451
  %v4453 = vpop.f32.mrf.mxu0
  %v4454 = vadd.f32 %v4430, %v4453
  %4455 = vdwg.mxu0
  %4456 = vmatpush.msra.mxu0 0.0
  %4457 = vmatpush.msra.mxu0 0.0
  %4458 = vmatpush.msra.mxu0 0.0
  %4459 = vmatpush.msra.mxu0 0.0
  %4460 = vmatpush.msra.mxu0 0.0
  %4461 = vmatpush.msra.mxu0 0.0
  %4462 = vmatpush.msra.mxu0 0.0
  %4463 = vmatpush.msra.mxu0 0.0
  %4464 = vmatpush.msra.mxu0 0.0
  %4465 = vmatpush.msra.mxu0 0.0
  %4466 = vmatpush.msra.mxu0 0.0
  %4467 = vmatpush.msra.mxu0 0.0
  %4468 = vmatpush.msra.mxu0 0.0
  %4469 = vmatpush.msra.mxu0 0.0
  %4470 = vmatpush.msra.mxu0 0.0
  %v4471 = vand.u32 %v4350, 4294901760
  %v4472 = vsub.f32 %v4350, %v4471
  %v4473 = vand.u32 %v4472, 4294901760
  %4474 = vmatpush.msra.mxu0 %v4473
  %v4475 = vand.u32 %v4354, 4294901760
  %4476 = vmatmul.f32.gmra.mxu0 %v4475
  %v4477 = vpop.f32.mrf.mxu0
  %v4478 = vadd.f32 %v4454, %v4477
  %4479 = vdwg.mxu0
  %4480 = vmatpush.msra.mxu0 0.0
  %4481 = vmatpush.msra.mxu0 0.0
  %4482 = vmatpush.msra.mxu0 0.0
  %4483 = vmatpush.msra.mxu0 0.0
  %4484 = vmatpush.msra.mxu0 0.0
  %4485 = vmatpush.msra.mxu0 0.0
  %4486 = vmatpush.msra.mxu0 0.0
  %4487 = vmatpush.msra.mxu0 0.0
  %4488 = vmatpush.msra.mxu0 0.0
  %4489 = vmatpush.msra.mxu0 0.0
  %4490 = vmatpush.msra.mxu0 0.0
  %4491 = vmatpush.msra.mxu0 0.0
  %4492 = vmatpush.msra.mxu0 0.0
  %4493 = vmatpush.msra.mxu0 0.0
  %4494 = vmatpush.msra.mxu0 0.0
  %v4495 = vand.u32 %v4350, 4294901760
  %4496 = vmatpush.msra.mxu0 %v4495
  %v4497 = vand.u32 %v4354, 4294901760
  %4498 = vmatmul.f32.gmra.mxu0 %v4497
  %v4499 = vpop.f32.mrf.mxu0
  %v4500 = vadd.f32 %v4478, %v4499
  %4501 = vdwg.mxu0
  %v4503 = vsel %vm4352, %v52, 0
  %4505 = vmatpush.msra.mxu0 0.0
  %4506 = vmatpush.msra.mxu0 0.0
  %4507 = vmatpush.msra.mxu0 0.0
  %4508 = vmatpush.msra.mxu0 0.0
  %4509 = vmatpush.msra.mxu0 0.0
  %4510 = vmatpush.msra.mxu0 0.0
  %4511 = vmatpush.msra.mxu0 0.0
  %4512 = vmatpush.msra.mxu0 0.0
  %4513 = vmatpush.msra.mxu0 0.0
  %4514 = vmatpush.msra.mxu0 0.0
  %4515 = vmatpush.msra.mxu0 0.0
  %4516 = vmatpush.msra.mxu0 0.0
  %4517 = vmatpush.msra.mxu0 0.0
  %4518 = vmatpush.msra.mxu0 0.0
  %4519 = vmatpush.msra.mxu0 0.0
  %v4520 = vand.u32 %v2304, 4294901760
  %4521 = vmatpush.msra.mxu0 %v4520
  %v4522 = vand.u32 %v4503, 4294901760
  %v4523 = vsub.f32 %v4503, %v4522
  %v4524 = vand.u32 %v4523, 4294901760
  %v4525 = vsub.f32 %v4523, %v4524
  %v4526 = vand.u32 %v4525, 4294901760
  %4527 = vmatmul.f32.gmra.mxu0 %v4526
  %v4528 = vpop.f32.mrf.mxu0
  %v4529 = vadd.f32 %v4500, %v4528
  %4530 = vdwg.mxu0
  %4531 = vmatpush.msra.mxu0 0.0
  %4532 = vmatpush.msra.mxu0 0.0
  %4533 = vmatpush.msra.mxu0 0.0
  %4534 = vmatpush.msra.mxu0 0.0
  %4535 = vmatpush.msra.mxu0 0.0
  %4536 = vmatpush.msra.mxu0 0.0
  %4537 = vmatpush.msra.mxu0 0.0
  %4538 = vmatpush.msra.mxu0 0.0
  %4539 = vmatpush.msra.mxu0 0.0
  %4540 = vmatpush.msra.mxu0 0.0
  %4541 = vmatpush.msra.mxu0 0.0
  %4542 = vmatpush.msra.mxu0 0.0
  %4543 = vmatpush.msra.mxu0 0.0
  %4544 = vmatpush.msra.mxu0 0.0
  %4545 = vmatpush.msra.mxu0 0.0
  %v4546 = vand.u32 %v2304, 4294901760
  %v4547 = vsub.f32 %v2304, %v4546
  %v4548 = vand.u32 %v4547, 4294901760
  %v4549 = vsub.f32 %v4547, %v4548
  %v4550 = vand.u32 %v4549, 4294901760
  %4551 = vmatpush.msra.mxu0 %v4550
  %v4552 = vand.u32 %v4503, 4294901760
  %4553 = vmatmul.f32.gmra.mxu0 %v4552
  %v4554 = vpop.f32.mrf.mxu0
  %v4555 = vadd.f32 %v4529, %v4554
  %4556 = vdwg.mxu0
  %4557 = vmatpush.msra.mxu0 0.0
  %4558 = vmatpush.msra.mxu0 0.0
  %4559 = vmatpush.msra.mxu0 0.0
  %4560 = vmatpush.msra.mxu0 0.0
  %4561 = vmatpush.msra.mxu0 0.0
  %4562 = vmatpush.msra.mxu0 0.0
  %4563 = vmatpush.msra.mxu0 0.0
  %4564 = vmatpush.msra.mxu0 0.0
  %4565 = vmatpush.msra.mxu0 0.0
  %4566 = vmatpush.msra.mxu0 0.0
  %4567 = vmatpush.msra.mxu0 0.0
  %4568 = vmatpush.msra.mxu0 0.0
  %4569 = vmatpush.msra.mxu0 0.0
  %4570 = vmatpush.msra.mxu0 0.0
  %4571 = vmatpush.msra.mxu0 0.0
  %v4572 = vand.u32 %v2304, 4294901760
  %v4573 = vsub.f32 %v2304, %v4572
  %4574 = vmatpush.msra.mxu0 %v4573
  %v4575 = vand.u32 %v4503, 4294901760
  %v4576 = vsub.f32 %v4503, %v4575
  %4577 = vmatmul.f32.gmra.mxu0 %v4576
  %v4578 = vpop.f32.mrf.mxu0
  %v4579 = vadd.f32 %v4555, %v4578
  %4580 = vdwg.mxu0
  %4581 = vmatpush.msra.mxu0 0.0
  %4582 = vmatpush.msra.mxu0 0.0
  %4583 = vmatpush.msra.mxu0 0.0
  %4584 = vmatpush.msra.mxu0 0.0
  %4585 = vmatpush.msra.mxu0 0.0
  %4586 = vmatpush.msra.mxu0 0.0
  %4587 = vmatpush.msra.mxu0 0.0
  %4588 = vmatpush.msra.mxu0 0.0
  %4589 = vmatpush.msra.mxu0 0.0
  %4590 = vmatpush.msra.mxu0 0.0
  %4591 = vmatpush.msra.mxu0 0.0
  %4592 = vmatpush.msra.mxu0 0.0
  %4593 = vmatpush.msra.mxu0 0.0
  %4594 = vmatpush.msra.mxu0 0.0
  %4595 = vmatpush.msra.mxu0 0.0
  %v4596 = vand.u32 %v2304, 4294901760
  %4597 = vmatpush.msra.mxu0 %v4596
  %v4598 = vand.u32 %v4503, 4294901760
  %v4599 = vsub.f32 %v4503, %v4598
  %v4600 = vand.u32 %v4599, 4294901760
  %4601 = vmatmul.f32.gmra.mxu0 %v4600
  %v4602 = vpop.f32.mrf.mxu0
  %v4603 = vadd.f32 %v4579, %v4602
  %4604 = vdwg.mxu0
  %4605 = vmatpush.msra.mxu0 0.0
  %4606 = vmatpush.msra.mxu0 0.0
  %4607 = vmatpush.msra.mxu0 0.0
  %4608 = vmatpush.msra.mxu0 0.0
  %4609 = vmatpush.msra.mxu0 0.0
  %4610 = vmatpush.msra.mxu0 0.0
  %4611 = vmatpush.msra.mxu0 0.0
  %4612 = vmatpush.msra.mxu0 0.0
  %4613 = vmatpush.msra.mxu0 0.0
  %4614 = vmatpush.msra.mxu0 0.0
  %4615 = vmatpush.msra.mxu0 0.0
  %4616 = vmatpush.msra.mxu0 0.0
  %4617 = vmatpush.msra.mxu0 0.0
  %4618 = vmatpush.msra.mxu0 0.0
  %4619 = vmatpush.msra.mxu0 0.0
  %v4620 = vand.u32 %v2304, 4294901760
  %v4621 = vsub.f32 %v2304, %v4620
  %v4622 = vand.u32 %v4621, 4294901760
  %4623 = vmatpush.msra.mxu0 %v4622
  %v4624 = vand.u32 %v4503, 4294901760
  %4625 = vmatmul.f32.gmra.mxu0 %v4624
  %v4626 = vpop.f32.mrf.mxu0
  %v4627 = vadd.f32 %v4603, %v4626
  %4628 = vdwg.mxu0
  %4629 = vmatpush.msra.mxu0 0.0
  %4630 = vmatpush.msra.mxu0 0.0
  %4631 = vmatpush.msra.mxu0 0.0
  %4632 = vmatpush.msra.mxu0 0.0
  %4633 = vmatpush.msra.mxu0 0.0
  %4634 = vmatpush.msra.mxu0 0.0
  %4635 = vmatpush.msra.mxu0 0.0
  %4636 = vmatpush.msra.mxu0 0.0
  %4637 = vmatpush.msra.mxu0 0.0
  %4638 = vmatpush.msra.mxu0 0.0
  %4639 = vmatpush.msra.mxu0 0.0
  %4640 = vmatpush.msra.mxu0 0.0
  %4641 = vmatpush.msra.mxu0 0.0
  %4642 = vmatpush.msra.mxu0 0.0
  %4643 = vmatpush.msra.mxu0 0.0
  %v4644 = vand.u32 %v2304, 4294901760
  %4645 = vmatpush.msra.mxu0 %v4644
  %v4646 = vand.u32 %v4503, 4294901760
  %4647 = vmatmul.f32.gmra.mxu0 %v4646
  %v4648 = vpop.f32.mrf.mxu0
  %v4649 = vadd.f32 %v4627, %v4648
  %4650 = vdwg.mxu0
  %4652 = vrot.lane.b32.xlu0 %v2304, 64
  %v4653 = vpop.permute.xlu0 %4652
  %v4655 = vadd.f32 %v4649, %v4653
  %v4657 = vperm.slane %v259, 0
  %v4659 = vadd.f32 %v4655, %v4657
  %4660 = vrot.lane.b32.xlu0 %v2304, 96
  %v4661 = vpop.permute.xlu0 %4660
  %4664 = vrot.lane.b32.xlu0 %v4350, 96
  %v4665 = vpop.permute.xlu0 %4664
  %v4668 = vsel %vm4352, %v54, 0
  %4670 = vmatpush.msra.mxu0 0.0
  %4671 = vmatpush.msra.mxu0 0.0
  %4672 = vmatpush.msra.mxu0 0.0
  %4673 = vmatpush.msra.mxu0 0.0
  %4674 = vmatpush.msra.mxu0 0.0
  %4675 = vmatpush.msra.mxu0 0.0
  %4676 = vmatpush.msra.mxu0 0.0
  %4677 = vmatpush.msra.mxu0 0.0
  %4678 = vmatpush.msra.mxu0 0.0
  %4679 = vmatpush.msra.mxu0 0.0
  %4680 = vmatpush.msra.mxu0 0.0
  %4681 = vmatpush.msra.mxu0 0.0
  %4682 = vmatpush.msra.mxu0 0.0
  %4683 = vmatpush.msra.mxu0 0.0
  %4684 = vmatpush.msra.mxu0 0.0
  %v4685 = vand.u32 %v4661, 4294901760
  %4686 = vmatpush.msra.mxu0 %v4685
  %v4687 = vand.u32 %v4668, 4294901760
  %v4688 = vsub.f32 %v4668, %v4687
  %v4689 = vand.u32 %v4688, 4294901760
  %v4690 = vsub.f32 %v4688, %v4689
  %v4691 = vand.u32 %v4690, 4294901760
  %4692 = vmatmul.f32.gmra.mxu0 %v4691
  %v4693 = vpop.f32.mrf.mxu0
  %v4694 = vadd.f32 %v4665, %v4693
  %4695 = vdwg.mxu0
  %4696 = vmatpush.msra.mxu0 0.0
  %4697 = vmatpush.msra.mxu0 0.0
  %4698 = vmatpush.msra.mxu0 0.0
  %4699 = vmatpush.msra.mxu0 0.0
  %4700 = vmatpush.msra.mxu0 0.0
  %4701 = vmatpush.msra.mxu0 0.0
  %4702 = vmatpush.msra.mxu0 0.0
  %4703 = vmatpush.msra.mxu0 0.0
  %4704 = vmatpush.msra.mxu0 0.0
  %4705 = vmatpush.msra.mxu0 0.0
  %4706 = vmatpush.msra.mxu0 0.0
  %4707 = vmatpush.msra.mxu0 0.0
  %4708 = vmatpush.msra.mxu0 0.0
  %4709 = vmatpush.msra.mxu0 0.0
  %4710 = vmatpush.msra.mxu0 0.0
  %v4711 = vand.u32 %v4661, 4294901760
  %v4712 = vsub.f32 %v4661, %v4711
  %v4713 = vand.u32 %v4712, 4294901760
  %v4714 = vsub.f32 %v4712, %v4713
  %v4715 = vand.u32 %v4714, 4294901760
  %4716 = vmatpush.msra.mxu0 %v4715
  %v4717 = vand.u32 %v4668, 4294901760
  %4718 = vmatmul.f32.gmra.mxu0 %v4717
  %v4719 = vpop.f32.mrf.mxu0
  %v4720 = vadd.f32 %v4694, %v4719
  %4721 = vdwg.mxu0
  %4722 = vmatpush.msra.mxu0 0.0
  %4723 = vmatpush.msra.mxu0 0.0
  %4724 = vmatpush.msra.mxu0 0.0
  %4725 = vmatpush.msra.mxu0 0.0
  %4726 = vmatpush.msra.mxu0 0.0
  %4727 = vmatpush.msra.mxu0 0.0
  %4728 = vmatpush.msra.mxu0 0.0
  %4729 = vmatpush.msra.mxu0 0.0
  %4730 = vmatpush.msra.mxu0 0.0
  %4731 = vmatpush.msra.mxu0 0.0
  %4732 = vmatpush.msra.mxu0 0.0
  %4733 = vmatpush.msra.mxu0 0.0
  %4734 = vmatpush.msra.mxu0 0.0
  %4735 = vmatpush.msra.mxu0 0.0
  %4736 = vmatpush.msra.mxu0 0.0
  %v4737 = vand.u32 %v4661, 4294901760
  %v4738 = vsub.f32 %v4661, %v4737
  %4739 = vmatpush.msra.mxu0 %v4738
  %v4740 = vand.u32 %v4668, 4294901760
  %v4741 = vsub.f32 %v4668, %v4740
  %4742 = vmatmul.f32.gmra.mxu0 %v4741
  %v4743 = vpop.f32.mrf.mxu0
  %v4744 = vadd.f32 %v4720, %v4743
  %4745 = vdwg.mxu0
  %4746 = vmatpush.msra.mxu0 0.0
  %4747 = vmatpush.msra.mxu0 0.0
  %4748 = vmatpush.msra.mxu0 0.0
  %4749 = vmatpush.msra.mxu0 0.0
  %4750 = vmatpush.msra.mxu0 0.0
  %4751 = vmatpush.msra.mxu0 0.0
  %4752 = vmatpush.msra.mxu0 0.0
  %4753 = vmatpush.msra.mxu0 0.0
  %4754 = vmatpush.msra.mxu0 0.0
  %4755 = vmatpush.msra.mxu0 0.0
  %4756 = vmatpush.msra.mxu0 0.0
  %4757 = vmatpush.msra.mxu0 0.0
  %4758 = vmatpush.msra.mxu0 0.0
  %4759 = vmatpush.msra.mxu0 0.0
  %4760 = vmatpush.msra.mxu0 0.0
  %v4761 = vand.u32 %v4661, 4294901760
  %4762 = vmatpush.msra.mxu0 %v4761
  %v4763 = vand.u32 %v4668, 4294901760
  %v4764 = vsub.f32 %v4668, %v4763
  %v4765 = vand.u32 %v4764, 4294901760
  %4766 = vmatmul.f32.gmra.mxu0 %v4765
  %v4767 = vpop.f32.mrf.mxu0
  %v4768 = vadd.f32 %v4744, %v4767
  %4769 = vdwg.mxu0
  %4770 = vmatpush.msra.mxu0 0.0
  %4771 = vmatpush.msra.mxu0 0.0
  %4772 = vmatpush.msra.mxu0 0.0
  %4773 = vmatpush.msra.mxu0 0.0
  %4774 = vmatpush.msra.mxu0 0.0
  %4775 = vmatpush.msra.mxu0 0.0
  %4776 = vmatpush.msra.mxu0 0.0
  %4777 = vmatpush.msra.mxu0 0.0
  %4778 = vmatpush.msra.mxu0 0.0
  %4779 = vmatpush.msra.mxu0 0.0
  %4780 = vmatpush.msra.mxu0 0.0
  %4781 = vmatpush.msra.mxu0 0.0
  %4782 = vmatpush.msra.mxu0 0.0
  %4783 = vmatpush.msra.mxu0 0.0
  %4784 = vmatpush.msra.mxu0 0.0
  %v4785 = vand.u32 %v4661, 4294901760
  %v4786 = vsub.f32 %v4661, %v4785
  %v4787 = vand.u32 %v4786, 4294901760
  %4788 = vmatpush.msra.mxu0 %v4787
  %v4789 = vand.u32 %v4668, 4294901760
  %4790 = vmatmul.f32.gmra.mxu0 %v4789
  %v4791 = vpop.f32.mrf.mxu0
  %v4792 = vadd.f32 %v4768, %v4791
  %4793 = vdwg.mxu0
  %4794 = vmatpush.msra.mxu0 0.0
  %4795 = vmatpush.msra.mxu0 0.0
  %4796 = vmatpush.msra.mxu0 0.0
  %4797 = vmatpush.msra.mxu0 0.0
  %4798 = vmatpush.msra.mxu0 0.0
  %4799 = vmatpush.msra.mxu0 0.0
  %4800 = vmatpush.msra.mxu0 0.0
  %4801 = vmatpush.msra.mxu0 0.0
  %4802 = vmatpush.msra.mxu0 0.0
  %4803 = vmatpush.msra.mxu0 0.0
  %4804 = vmatpush.msra.mxu0 0.0
  %4805 = vmatpush.msra.mxu0 0.0
  %4806 = vmatpush.msra.mxu0 0.0
  %4807 = vmatpush.msra.mxu0 0.0
  %4808 = vmatpush.msra.mxu0 0.0
  %v4809 = vand.u32 %v4661, 4294901760
  %4810 = vmatpush.msra.mxu0 %v4809
  %v4811 = vand.u32 %v4668, 4294901760
  %4812 = vmatmul.f32.gmra.mxu0 %v4811
  %v4813 = vpop.f32.mrf.mxu0
  %v4814 = vadd.f32 %v4792, %v4813
  %4815 = vdwg.mxu0
  %v4816 = vadd.f32 %v4814, %v4657
  %v4817 = vmax.f32 %v4659, 0.0
  %v4818 = vmax.f32 %v4816, 0.0
  %v4819 = vld [vmem:[%s10] sm:$0xff]
  %v4820 = vld [vmem:[%s10 + $0x8] sm:$0xff]
  %v4821 = vld [vmem:[%s10 + $0x10] sm:$0xff]
  %v4822 = vld [vmem:[%s10 + $0x18] sm:$0xff]
  %v4823 = vld [vmem:[%s11] sm:$0xff]
  %v4824 = vld [vmem:[%s11 + $0x8] sm:$0xff]
  %v4825 = vld [vmem:[%s11 + $0x10] sm:$0xff]
  %v4826 = vld [vmem:[%s11 + $0x18] sm:$0xff]
  %v4827 = vld [vmem:[%s12] sm:$0x1]
  %vm4828 = vcmask 261120
  %v4830 = vsel %vm4828, %v4817, 0
  %4832 = vmatpush.msra.mxu0 0.0
  %4833 = vmatpush.msra.mxu0 0.0
  %4834 = vmatpush.msra.mxu0 0.0
  %4835 = vmatpush.msra.mxu0 0.0
  %4836 = vmatpush.msra.mxu0 0.0
  %4837 = vmatpush.msra.mxu0 0.0
  %4838 = vmatpush.msra.mxu0 0.0
  %4839 = vmatpush.msra.mxu0 0.0
  %4840 = vmatpush.msra.mxu0 0.0
  %4841 = vmatpush.msra.mxu0 0.0
  %4842 = vmatpush.msra.mxu0 0.0
  %4843 = vmatpush.msra.mxu0 0.0
  %v4844 = vand.u32 %v4822, 4294901760
  %4845 = vmatpush.msra.mxu0 %v4844
  %v4846 = vand.u32 %v4821, 4294901760
  %4847 = vmatpush.msra.mxu0 %v4846
  %v4848 = vand.u32 %v4820, 4294901760
  %4849 = vmatpush.msra.mxu0 %v4848
  %v4850 = vand.u32 %v4819, 4294901760
  %4851 = vmatpush.msra.mxu0 %v4850
  %v4852 = vand.u32 %v4830, 4294901760
  %v4853 = vsub.f32 %v4830, %v4852
  %v4854 = vand.u32 %v4853, 4294901760
  %v4855 = vsub.f32 %v4853, %v4854
  %v4856 = vand.u32 %v4855, 4294901760
  %4857 = vmatmul.f32.gmra.mxu0 %v4856
  %v4858 = vpop.f32.mrf.mxu0
  %v4859 = vadd.f32 0.0, %v4858
  %4860 = vdwg.mxu0
  %4861 = vmatpush.msra.mxu0 0.0
  %4862 = vmatpush.msra.mxu0 0.0
  %4863 = vmatpush.msra.mxu0 0.0
  %4864 = vmatpush.msra.mxu0 0.0
  %4865 = vmatpush.msra.mxu0 0.0
  %4866 = vmatpush.msra.mxu0 0.0
  %4867 = vmatpush.msra.mxu0 0.0
  %4868 = vmatpush.msra.mxu0 0.0
  %4869 = vmatpush.msra.mxu0 0.0
  %4870 = vmatpush.msra.mxu0 0.0
  %4871 = vmatpush.msra.mxu0 0.0
  %4872 = vmatpush.msra.mxu0 0.0
  %v4873 = vand.u32 %v4822, 4294901760
  %v4874 = vsub.f32 %v4822, %v4873
  %v4875 = vand.u32 %v4874, 4294901760
  %v4876 = vsub.f32 %v4874, %v4875
  %v4877 = vand.u32 %v4876, 4294901760
  %4878 = vmatpush.msra.mxu0 %v4877
  %v4879 = vand.u32 %v4821, 4294901760
  %v4880 = vsub.f32 %v4821, %v4879
  %v4881 = vand.u32 %v4880, 4294901760
  %v4882 = vsub.f32 %v4880, %v4881
  %v4883 = vand.u32 %v4882, 4294901760
  %4884 = vmatpush.msra.mxu0 %v4883
  %v4885 = vand.u32 %v4820, 4294901760
  %v4886 = vsub.f32 %v4820, %v4885
  %v4887 = vand.u32 %v4886, 4294901760
  %v4888 = vsub.f32 %v4886, %v4887
  %v4889 = vand.u32 %v4888, 4294901760
  %4890 = vmatpush.msra.mxu0 %v4889
  %v4891 = vand.u32 %v4819, 4294901760
  %v4892 = vsub.f32 %v4819, %v4891
  %v4893 = vand.u32 %v4892, 4294901760
  %v4894 = vsub.f32 %v4892, %v4893
  %v4895 = vand.u32 %v4894, 4294901760
  %4896 = vmatpush.msra.mxu0 %v4895
  %v4897 = vand.u32 %v4830, 4294901760
  %4898 = vmatmul.f32.gmra.mxu0 %v4897
  %v4899 = vpop.f32.mrf.mxu0
  %v4900 = vadd.f32 %v4859, %v4899
  %4901 = vdwg.mxu0
  %4902 = vmatpush.msra.mxu0 0.0
  %4903 = vmatpush.msra.mxu0 0.0
  %4904 = vmatpush.msra.mxu0 0.0
  %4905 = vmatpush.msra.mxu0 0.0
  %4906 = vmatpush.msra.mxu0 0.0
  %4907 = vmatpush.msra.mxu0 0.0
  %4908 = vmatpush.msra.mxu0 0.0
  %4909 = vmatpush.msra.mxu0 0.0
  %4910 = vmatpush.msra.mxu0 0.0
  %4911 = vmatpush.msra.mxu0 0.0
  %4912 = vmatpush.msra.mxu0 0.0
  %4913 = vmatpush.msra.mxu0 0.0
  %v4914 = vand.u32 %v4822, 4294901760
  %v4915 = vsub.f32 %v4822, %v4914
  %4916 = vmatpush.msra.mxu0 %v4915
  %v4917 = vand.u32 %v4821, 4294901760
  %v4918 = vsub.f32 %v4821, %v4917
  %4919 = vmatpush.msra.mxu0 %v4918
  %v4920 = vand.u32 %v4820, 4294901760
  %v4921 = vsub.f32 %v4820, %v4920
  %4922 = vmatpush.msra.mxu0 %v4921
  %v4923 = vand.u32 %v4819, 4294901760
  %v4924 = vsub.f32 %v4819, %v4923
  %4925 = vmatpush.msra.mxu0 %v4924
  %v4926 = vand.u32 %v4830, 4294901760
  %v4927 = vsub.f32 %v4830, %v4926
  %4928 = vmatmul.f32.gmra.mxu0 %v4927
  %v4929 = vpop.f32.mrf.mxu0
  %v4930 = vadd.f32 %v4900, %v4929
  %4931 = vdwg.mxu0
  %4932 = vmatpush.msra.mxu0 0.0
  %4933 = vmatpush.msra.mxu0 0.0
  %4934 = vmatpush.msra.mxu0 0.0
  %4935 = vmatpush.msra.mxu0 0.0
  %4936 = vmatpush.msra.mxu0 0.0
  %4937 = vmatpush.msra.mxu0 0.0
  %4938 = vmatpush.msra.mxu0 0.0
  %4939 = vmatpush.msra.mxu0 0.0
  %4940 = vmatpush.msra.mxu0 0.0
  %4941 = vmatpush.msra.mxu0 0.0
  %4942 = vmatpush.msra.mxu0 0.0
  %4943 = vmatpush.msra.mxu0 0.0
  %v4944 = vand.u32 %v4822, 4294901760
  %4945 = vmatpush.msra.mxu0 %v4944
  %v4946 = vand.u32 %v4821, 4294901760
  %4947 = vmatpush.msra.mxu0 %v4946
  %v4948 = vand.u32 %v4820, 4294901760
  %4949 = vmatpush.msra.mxu0 %v4948
  %v4950 = vand.u32 %v4819, 4294901760
  %4951 = vmatpush.msra.mxu0 %v4950
  %v4952 = vand.u32 %v4830, 4294901760
  %v4953 = vsub.f32 %v4830, %v4952
  %v4954 = vand.u32 %v4953, 4294901760
  %4955 = vmatmul.f32.gmra.mxu0 %v4954
  %v4956 = vpop.f32.mrf.mxu0
  %v4957 = vadd.f32 %v4930, %v4956
  %4958 = vdwg.mxu0
  %4959 = vmatpush.msra.mxu0 0.0
  %4960 = vmatpush.msra.mxu0 0.0
  %4961 = vmatpush.msra.mxu0 0.0
  %4962 = vmatpush.msra.mxu0 0.0
  %4963 = vmatpush.msra.mxu0 0.0
  %4964 = vmatpush.msra.mxu0 0.0
  %4965 = vmatpush.msra.mxu0 0.0
  %4966 = vmatpush.msra.mxu0 0.0
  %4967 = vmatpush.msra.mxu0 0.0
  %4968 = vmatpush.msra.mxu0 0.0
  %4969 = vmatpush.msra.mxu0 0.0
  %4970 = vmatpush.msra.mxu0 0.0
  %v4971 = vand.u32 %v4822, 4294901760
  %v4972 = vsub.f32 %v4822, %v4971
  %v4973 = vand.u32 %v4972, 4294901760
  %4974 = vmatpush.msra.mxu0 %v4973
  %v4975 = vand.u32 %v4821, 4294901760
  %v4976 = vsub.f32 %v4821, %v4975
  %v4977 = vand.u32 %v4976, 4294901760
  %4978 = vmatpush.msra.mxu0 %v4977
  %v4979 = vand.u32 %v4820, 4294901760
  %v4980 = vsub.f32 %v4820, %v4979
  %v4981 = vand.u32 %v4980, 4294901760
  %4982 = vmatpush.msra.mxu0 %v4981
  %v4983 = vand.u32 %v4819, 4294901760
  %v4984 = vsub.f32 %v4819, %v4983
  %v4985 = vand.u32 %v4984, 4294901760
  %4986 = vmatpush.msra.mxu0 %v4985
  %v4987 = vand.u32 %v4830, 4294901760
  %4988 = vmatmul.f32.gmra.mxu0 %v4987
  %v4989 = vpop.f32.mrf.mxu0
  %v4990 = vadd.f32 %v4957, %v4989
  %4991 = vdwg.mxu0
  %4992 = vmatpush.msra.mxu0 0.0
  %4993 = vmatpush.msra.mxu0 0.0
  %4994 = vmatpush.msra.mxu0 0.0
  %4995 = vmatpush.msra.mxu0 0.0
  %4996 = vmatpush.msra.mxu0 0.0
  %4997 = vmatpush.msra.mxu0 0.0
  %4998 = vmatpush.msra.mxu0 0.0
  %4999 = vmatpush.msra.mxu0 0.0
  %5000 = vmatpush.msra.mxu0 0.0
  %5001 = vmatpush.msra.mxu0 0.0
  %5002 = vmatpush.msra.mxu0 0.0
  %5003 = vmatpush.msra.mxu0 0.0
  %v5004 = vand.u32 %v4822, 4294901760
  %5005 = vmatpush.msra.mxu0 %v5004
  %v5006 = vand.u32 %v4821, 4294901760
  %5007 = vmatpush.msra.mxu0 %v5006
  %v5008 = vand.u32 %v4820, 4294901760
  %5009 = vmatpush.msra.mxu0 %v5008
  %v5010 = vand.u32 %v4819, 4294901760
  %5011 = vmatpush.msra.mxu0 %v5010
  %v5012 = vand.u32 %v4830, 4294901760
  %5013 = vmatmul.f32.gmra.mxu0 %v5012
  %v5014 = vpop.f32.mrf.mxu0
  %v5015 = vadd.f32 %v4990, %v5014
  %5016 = vdwg.mxu0
  %v5018 = vsel %vm4828, %v4818, 0
  %5020 = vmatpush.msra.mxu0 0.0
  %5021 = vmatpush.msra.mxu0 0.0
  %5022 = vmatpush.msra.mxu0 0.0
  %5023 = vmatpush.msra.mxu0 0.0
  %5024 = vmatpush.msra.mxu0 0.0
  %5025 = vmatpush.msra.mxu0 0.0
  %5026 = vmatpush.msra.mxu0 0.0
  %5027 = vmatpush.msra.mxu0 0.0
  %5028 = vmatpush.msra.mxu0 0.0
  %5029 = vmatpush.msra.mxu0 0.0
  %5030 = vmatpush.msra.mxu0 0.0
  %5031 = vmatpush.msra.mxu0 0.0
  %v5032 = vand.u32 %v4826, 4294901760
  %5033 = vmatpush.msra.mxu0 %v5032
  %v5034 = vand.u32 %v4825, 4294901760
  %5035 = vmatpush.msra.mxu0 %v5034
  %v5036 = vand.u32 %v4824, 4294901760
  %5037 = vmatpush.msra.mxu0 %v5036
  %v5038 = vand.u32 %v4823, 4294901760
  %5039 = vmatpush.msra.mxu0 %v5038
  %v5040 = vand.u32 %v5018, 4294901760
  %v5041 = vsub.f32 %v5018, %v5040
  %v5042 = vand.u32 %v5041, 4294901760
  %v5043 = vsub.f32 %v5041, %v5042
  %v5044 = vand.u32 %v5043, 4294901760
  %5045 = vmatmul.f32.gmra.mxu0 %v5044
  %v5046 = vpop.f32.mrf.mxu0
  %v5047 = vadd.f32 0.0, %v5046
  %5048 = vdwg.mxu0
  %5049 = vmatpush.msra.mxu0 0.0
  %5050 = vmatpush.msra.mxu0 0.0
  %5051 = vmatpush.msra.mxu0 0.0
  %5052 = vmatpush.msra.mxu0 0.0
  %5053 = vmatpush.msra.mxu0 0.0
  %5054 = vmatpush.msra.mxu0 0.0
  %5055 = vmatpush.msra.mxu0 0.0
  %5056 = vmatpush.msra.mxu0 0.0
  %5057 = vmatpush.msra.mxu0 0.0
  %5058 = vmatpush.msra.mxu0 0.0
  %5059 = vmatpush.msra.mxu0 0.0
  %5060 = vmatpush.msra.mxu0 0.0
  %v5061 = vand.u32 %v4826, 4294901760
  %v5062 = vsub.f32 %v4826, %v5061
  %v5063 = vand.u32 %v5062, 4294901760
  %v5064 = vsub.f32 %v5062, %v5063
  %v5065 = vand.u32 %v5064, 4294901760
  %5066 = vmatpush.msra.mxu0 %v5065
  %v5067 = vand.u32 %v4825, 4294901760
  %v5068 = vsub.f32 %v4825, %v5067
  %v5069 = vand.u32 %v5068, 4294901760
  %v5070 = vsub.f32 %v5068, %v5069
  %v5071 = vand.u32 %v5070, 4294901760
  %5072 = vmatpush.msra.mxu0 %v5071
  %v5073 = vand.u32 %v4824, 4294901760
  %v5074 = vsub.f32 %v4824, %v5073
  %v5075 = vand.u32 %v5074, 4294901760
  %v5076 = vsub.f32 %v5074, %v5075
  %v5077 = vand.u32 %v5076, 4294901760
  %5078 = vmatpush.msra.mxu0 %v5077
  %v5079 = vand.u32 %v4823, 4294901760
  %v5080 = vsub.f32 %v4823, %v5079
  %v5081 = vand.u32 %v5080, 4294901760
  %v5082 = vsub.f32 %v5080, %v5081
  %v5083 = vand.u32 %v5082, 4294901760
  %5084 = vmatpush.msra.mxu0 %v5083
  %v5085 = vand.u32 %v5018, 4294901760
  %5086 = vmatmul.f32.gmra.mxu0 %v5085
  %v5087 = vpop.f32.mrf.mxu0
  %v5088 = vadd.f32 %v5047, %v5087
  %5089 = vdwg.mxu0
  %5090 = vmatpush.msra.mxu0 0.0
  %5091 = vmatpush.msra.mxu0 0.0
  %5092 = vmatpush.msra.mxu0 0.0
  %5093 = vmatpush.msra.mxu0 0.0
  %5094 = vmatpush.msra.mxu0 0.0
  %5095 = vmatpush.msra.mxu0 0.0
  %5096 = vmatpush.msra.mxu0 0.0
  %5097 = vmatpush.msra.mxu0 0.0
  %5098 = vmatpush.msra.mxu0 0.0
  %5099 = vmatpush.msra.mxu0 0.0
  %5100 = vmatpush.msra.mxu0 0.0
  %5101 = vmatpush.msra.mxu0 0.0
  %v5102 = vand.u32 %v4826, 4294901760
  %v5103 = vsub.f32 %v4826, %v5102
  %5104 = vmatpush.msra.mxu0 %v5103
  %v5105 = vand.u32 %v4825, 4294901760
  %v5106 = vsub.f32 %v4825, %v5105
  %5107 = vmatpush.msra.mxu0 %v5106
  %v5108 = vand.u32 %v4824, 4294901760
  %v5109 = vsub.f32 %v4824, %v5108
  %5110 = vmatpush.msra.mxu0 %v5109
  %v5111 = vand.u32 %v4823, 4294901760
  %v5112 = vsub.f32 %v4823, %v5111
  %5113 = vmatpush.msra.mxu0 %v5112
  %v5114 = vand.u32 %v5018, 4294901760
  %v5115 = vsub.f32 %v5018, %v5114
  %5116 = vmatmul.f32.gmra.mxu0 %v5115
  %v5117 = vpop.f32.mrf.mxu0
  %v5118 = vadd.f32 %v5088, %v5117
  %5119 = vdwg.mxu0
  %5120 = vmatpush.msra.mxu0 0.0
  %5121 = vmatpush.msra.mxu0 0.0
  %5122 = vmatpush.msra.mxu0 0.0
  %5123 = vmatpush.msra.mxu0 0.0
  %5124 = vmatpush.msra.mxu0 0.0
  %5125 = vmatpush.msra.mxu0 0.0
  %5126 = vmatpush.msra.mxu0 0.0
  %5127 = vmatpush.msra.mxu0 0.0
  %5128 = vmatpush.msra.mxu0 0.0
  %5129 = vmatpush.msra.mxu0 0.0
  %5130 = vmatpush.msra.mxu0 0.0
  %5131 = vmatpush.msra.mxu0 0.0
  %v5132 = vand.u32 %v4826, 4294901760
  %5133 = vmatpush.msra.mxu0 %v5132
  %v5134 = vand.u32 %v4825, 4294901760
  %5135 = vmatpush.msra.mxu0 %v5134
  %v5136 = vand.u32 %v4824, 4294901760
  %5137 = vmatpush.msra.mxu0 %v5136
  %v5138 = vand.u32 %v4823, 4294901760
  %5139 = vmatpush.msra.mxu0 %v5138
  %v5140 = vand.u32 %v5018, 4294901760
  %v5141 = vsub.f32 %v5018, %v5140
  %v5142 = vand.u32 %v5141, 4294901760
  %5143 = vmatmul.f32.gmra.mxu0 %v5142
  %v5144 = vpop.f32.mrf.mxu0
  %v5145 = vadd.f32 %v5118, %v5144
  %5146 = vdwg.mxu0
  %5147 = vmatpush.msra.mxu0 0.0
  %5148 = vmatpush.msra.mxu0 0.0
  %5149 = vmatpush.msra.mxu0 0.0
  %5150 = vmatpush.msra.mxu0 0.0
  %5151 = vmatpush.msra.mxu0 0.0
  %5152 = vmatpush.msra.mxu0 0.0
  %5153 = vmatpush.msra.mxu0 0.0
  %5154 = vmatpush.msra.mxu0 0.0
  %5155 = vmatpush.msra.mxu0 0.0
  %5156 = vmatpush.msra.mxu0 0.0
  %5157 = vmatpush.msra.mxu0 0.0
  %5158 = vmatpush.msra.mxu0 0.0
  %v5159 = vand.u32 %v4826, 4294901760
  %v5160 = vsub.f32 %v4826, %v5159
  %v5161 = vand.u32 %v5160, 4294901760
  %5162 = vmatpush.msra.mxu0 %v5161
  %v5163 = vand.u32 %v4825, 4294901760
  %v5164 = vsub.f32 %v4825, %v5163
  %v5165 = vand.u32 %v5164, 4294901760
  %5166 = vmatpush.msra.mxu0 %v5165
  %v5167 = vand.u32 %v4824, 4294901760
  %v5168 = vsub.f32 %v4824, %v5167
  %v5169 = vand.u32 %v5168, 4294901760
  %5170 = vmatpush.msra.mxu0 %v5169
  %v5171 = vand.u32 %v4823, 4294901760
  %v5172 = vsub.f32 %v4823, %v5171
  %v5173 = vand.u32 %v5172, 4294901760
  %5174 = vmatpush.msra.mxu0 %v5173
  %v5175 = vand.u32 %v5018, 4294901760
  %5176 = vmatmul.f32.gmra.mxu0 %v5175
  %v5177 = vpop.f32.mrf.mxu0
  %v5178 = vadd.f32 %v5145, %v5177
  %5179 = vdwg.mxu0
  %5180 = vmatpush.msra.mxu0 0.0
  %5181 = vmatpush.msra.mxu0 0.0
  %5182 = vmatpush.msra.mxu0 0.0
  %5183 = vmatpush.msra.mxu0 0.0
  %5184 = vmatpush.msra.mxu0 0.0
  %5185 = vmatpush.msra.mxu0 0.0
  %5186 = vmatpush.msra.mxu0 0.0
  %5187 = vmatpush.msra.mxu0 0.0
  %5188 = vmatpush.msra.mxu0 0.0
  %5189 = vmatpush.msra.mxu0 0.0
  %5190 = vmatpush.msra.mxu0 0.0
  %5191 = vmatpush.msra.mxu0 0.0
  %v5192 = vand.u32 %v4826, 4294901760
  %5193 = vmatpush.msra.mxu0 %v5192
  %v5194 = vand.u32 %v4825, 4294901760
  %5195 = vmatpush.msra.mxu0 %v5194
  %v5196 = vand.u32 %v4824, 4294901760
  %5197 = vmatpush.msra.mxu0 %v5196
  %v5198 = vand.u32 %v4823, 4294901760
  %5199 = vmatpush.msra.mxu0 %v5198
  %v5200 = vand.u32 %v5018, 4294901760
  %5201 = vmatmul.f32.gmra.mxu0 %v5200
  %v5202 = vpop.f32.mrf.mxu0
  %v5203 = vadd.f32 %v5178, %v5202
  %5204 = vdwg.mxu0
  %5205 = vmatpush.msra.mxu0 0.0
  %5206 = vmatpush.msra.mxu0 0.0
  %5207 = vmatpush.msra.mxu0 0.0
  %5208 = vmatpush.msra.mxu0 0.0
  %5209 = vmatpush.msra.mxu0 0.0
  %5210 = vmatpush.msra.mxu0 0.0
  %5211 = vmatpush.msra.mxu0 0.0
  %5212 = vmatpush.msra.mxu0 0.0
  %5213 = vmatpush.msra.mxu0 0.0
  %5214 = vmatpush.msra.mxu0 0.0
  %5215 = vmatpush.msra.mxu0 0.0
  %5216 = vmatpush.msra.mxu0 0.0
  %5217 = vmatpush.msra.mxu0 0.0
  %5218 = vmatpush.msra.mxu0 0.0
  %5219 = vmatpush.msra.mxu0 0.0
  %v5220 = vand.u32 %v5203, 4294901760
  %5221 = vmatpush.msra.mxu0 %v5220
  %v5222 = vand.u32 %v4354, 4294901760
  %v5223 = vsub.f32 %v4354, %v5222
  %v5224 = vand.u32 %v5223, 4294901760
  %v5225 = vsub.f32 %v5223, %v5224
  %v5226 = vand.u32 %v5225, 4294901760
  %5227 = vmatmul.f32.gmra.mxu0 %v5226
  %v5228 = vpop.f32.mrf.mxu0
  %v5229 = vadd.f32 0.0, %v5228
  %5230 = vdwg.mxu0
  %5231 = vmatpush.msra.mxu0 0.0
  %5232 = vmatpush.msra.mxu0 0.0
  %5233 = vmatpush.msra.mxu0 0.0
  %5234 = vmatpush.msra.mxu0 0.0
  %5235 = vmatpush.msra.mxu0 0.0
  %5236 = vmatpush.msra.mxu0 0.0
  %5237 = vmatpush.msra.mxu0 0.0
  %5238 = vmatpush.msra.mxu0 0.0
  %5239 = vmatpush.msra.mxu0 0.0
  %5240 = vmatpush.msra.mxu0 0.0
  %5241 = vmatpush.msra.mxu0 0.0
  %5242 = vmatpush.msra.mxu0 0.0
  %5243 = vmatpush.msra.mxu0 0.0
  %5244 = vmatpush.msra.mxu0 0.0
  %5245 = vmatpush.msra.mxu0 0.0
  %v5246 = vand.u32 %v5203, 4294901760
  %v5247 = vsub.f32 %v5203, %v5246
  %v5248 = vand.u32 %v5247, 4294901760
  %v5249 = vsub.f32 %v5247, %v5248
  %v5250 = vand.u32 %v5249, 4294901760
  %5251 = vmatpush.msra.mxu0 %v5250
  %v5252 = vand.u32 %v4354, 4294901760
  %5253 = vmatmul.f32.gmra.mxu0 %v5252
  %v5254 = vpop.f32.mrf.mxu0
  %v5255 = vadd.f32 %v5229, %v5254
  %5256 = vdwg.mxu0
  %5257 = vmatpush.msra.mxu0 0.0
  %5258 = vmatpush.msra.mxu0 0.0
  %5259 = vmatpush.msra.mxu0 0.0
  %5260 = vmatpush.msra.mxu0 0.0
  %5261 = vmatpush.msra.mxu0 0.0
  %5262 = vmatpush.msra.mxu0 0.0
  %5263 = vmatpush.msra.mxu0 0.0
  %5264 = vmatpush.msra.mxu0 0.0
  %5265 = vmatpush.msra.mxu0 0.0
  %5266 = vmatpush.msra.mxu0 0.0
  %5267 = vmatpush.msra.mxu0 0.0
  %5268 = vmatpush.msra.mxu0 0.0
  %5269 = vmatpush.msra.mxu0 0.0
  %5270 = vmatpush.msra.mxu0 0.0
  %5271 = vmatpush.msra.mxu0 0.0
  %v5272 = vand.u32 %v5203, 4294901760
  %v5273 = vsub.f32 %v5203, %v5272
  %5274 = vmatpush.msra.mxu0 %v5273
  %v5275 = vand.u32 %v4354, 4294901760
  %v5276 = vsub.f32 %v4354, %v5275
  %5277 = vmatmul.f32.gmra.mxu0 %v5276
  %v5278 = vpop.f32.mrf.mxu0
  %v5279 = vadd.f32 %v5255, %v5278
  %5280 = vdwg.mxu0
  %5281 = vmatpush.msra.mxu0 0.0
  %5282 = vmatpush.msra.mxu0 0.0
  %5283 = vmatpush.msra.mxu0 0.0
  %5284 = vmatpush.msra.mxu0 0.0
  %5285 = vmatpush.msra.mxu0 0.0
  %5286 = vmatpush.msra.mxu0 0.0
  %5287 = vmatpush.msra.mxu0 0.0
  %5288 = vmatpush.msra.mxu0 0.0
  %5289 = vmatpush.msra.mxu0 0.0
  %5290 = vmatpush.msra.mxu0 0.0
  %5291 = vmatpush.msra.mxu0 0.0
  %5292 = vmatpush.msra.mxu0 0.0
  %5293 = vmatpush.msra.mxu0 0.0
  %5294 = vmatpush.msra.mxu0 0.0
  %5295 = vmatpush.msra.mxu0 0.0
  %v5296 = vand.u32 %v5203, 4294901760
  %5297 = vmatpush.msra.mxu0 %v5296
  %v5298 = vand.u32 %v4354, 4294901760
  %v5299 = vsub.f32 %v4354, %v5298
  %v5300 = vand.u32 %v5299, 4294901760
  %5301 = vmatmul.f32.gmra.mxu0 %v5300
  %v5302 = vpop.f32.mrf.mxu0
  %v5303 = vadd.f32 %v5279, %v5302
  %5304 = vdwg.mxu0
  %5305 = vmatpush.msra.mxu0 0.0
  %5306 = vmatpush.msra.mxu0 0.0
  %5307 = vmatpush.msra.mxu0 0.0
  %5308 = vmatpush.msra.mxu0 0.0
  %5309 = vmatpush.msra.mxu0 0.0
  %5310 = vmatpush.msra.mxu0 0.0
  %5311 = vmatpush.msra.mxu0 0.0
  %5312 = vmatpush.msra.mxu0 0.0
  %5313 = vmatpush.msra.mxu0 0.0
  %5314 = vmatpush.msra.mxu0 0.0
  %5315 = vmatpush.msra.mxu0 0.0
  %5316 = vmatpush.msra.mxu0 0.0
  %5317 = vmatpush.msra.mxu0 0.0
  %5318 = vmatpush.msra.mxu0 0.0
  %5319 = vmatpush.msra.mxu0 0.0
  %v5320 = vand.u32 %v5203, 4294901760
  %v5321 = vsub.f32 %v5203, %v5320
  %v5322 = vand.u32 %v5321, 4294901760
  %5323 = vmatpush.msra.mxu0 %v5322
  %v5324 = vand.u32 %v4354, 4294901760
  %5325 = vmatmul.f32.gmra.mxu0 %v5324
  %v5326 = vpop.f32.mrf.mxu0
  %v5327 = vadd.f32 %v5303, %v5326
  %5328 = vdwg.mxu0
  %5329 = vmatpush.msra.mxu0 0.0
  %5330 = vmatpush.msra.mxu0 0.0
  %5331 = vmatpush.msra.mxu0 0.0
  %5332 = vmatpush.msra.mxu0 0.0
  %5333 = vmatpush.msra.mxu0 0.0
  %5334 = vmatpush.msra.mxu0 0.0
  %5335 = vmatpush.msra.mxu0 0.0
  %5336 = vmatpush.msra.mxu0 0.0
  %5337 = vmatpush.msra.mxu0 0.0
  %5338 = vmatpush.msra.mxu0 0.0
  %5339 = vmatpush.msra.mxu0 0.0
  %5340 = vmatpush.msra.mxu0 0.0
  %5341 = vmatpush.msra.mxu0 0.0
  %5342 = vmatpush.msra.mxu0 0.0
  %5343 = vmatpush.msra.mxu0 0.0
  %v5344 = vand.u32 %v5203, 4294901760
  %5345 = vmatpush.msra.mxu0 %v5344
  %v5346 = vand.u32 %v4354, 4294901760
  %5347 = vmatmul.f32.gmra.mxu0 %v5346
  %v5348 = vpop.f32.mrf.mxu0
  %v5349 = vadd.f32 %v5327, %v5348
  %5350 = vdwg.mxu0
  %5351 = vmatpush.msra.mxu0 0.0
  %5352 = vmatpush.msra.mxu0 0.0
  %5353 = vmatpush.msra.mxu0 0.0
  %5354 = vmatpush.msra.mxu0 0.0
  %5355 = vmatpush.msra.mxu0 0.0
  %5356 = vmatpush.msra.mxu0 0.0
  %5357 = vmatpush.msra.mxu0 0.0
  %5358 = vmatpush.msra.mxu0 0.0
  %5359 = vmatpush.msra.mxu0 0.0
  %5360 = vmatpush.msra.mxu0 0.0
  %5361 = vmatpush.msra.mxu0 0.0
  %5362 = vmatpush.msra.mxu0 0.0
  %5363 = vmatpush.msra.mxu0 0.0
  %5364 = vmatpush.msra.mxu0 0.0
  %5365 = vmatpush.msra.mxu0 0.0
  %v5366 = vand.u32 %v5015, 4294901760
  %5367 = vmatpush.msra.mxu0 %v5366
  %v5368 = vand.u32 %v4503, 4294901760
  %v5369 = vsub.f32 %v4503, %v5368
  %v5370 = vand.u32 %v5369, 4294901760
  %v5371 = vsub.f32 %v5369, %v5370
  %v5372 = vand.u32 %v5371, 4294901760
  %5373 = vmatmul.f32.gmra.mxu0 %v5372
  %v5374 = vpop.f32.mrf.mxu0
  %v5375 = vadd.f32 %v5349, %v5374
  %5376 = vdwg.mxu0
  %5377 = vmatpush.msra.mxu0 0.0
  %5378 = vmatpush.msra.mxu0 0.0
  %5379 = vmatpush.msra.mxu0 0.0
  %5380 = vmatpush.msra.mxu0 0.0
  %5381 = vmatpush.msra.mxu0 0.0
  %5382 = vmatpush.msra.mxu0 0.0
  %5383 = vmatpush.msra.mxu0 0.0
  %5384 = vmatpush.msra.mxu0 0.0
  %5385 = vmatpush.msra.mxu0 0.0
  %5386 = vmatpush.msra.mxu0 0.0
  %5387 = vmatpush.msra.mxu0 0.0
  %5388 = vmatpush.msra.mxu0 0.0
  %5389 = vmatpush.msra.mxu0 0.0
  %5390 = vmatpush.msra.mxu0 0.0
  %5391 = vmatpush.msra.mxu0 0.0
  %v5392 = vand.u32 %v5015, 4294901760
  %v5393 = vsub.f32 %v5015, %v5392
  %v5394 = vand.u32 %v5393, 4294901760
  %v5395 = vsub.f32 %v5393, %v5394
  %v5396 = vand.u32 %v5395, 4294901760
  %5397 = vmatpush.msra.mxu0 %v5396
  %v5398 = vand.u32 %v4503, 4294901760
  %5399 = vmatmul.f32.gmra.mxu0 %v5398
  %v5400 = vpop.f32.mrf.mxu0
  %v5401 = vadd.f32 %v5375, %v5400
  %5402 = vdwg.mxu0
  %5403 = vmatpush.msra.mxu0 0.0
  %5404 = vmatpush.msra.mxu0 0.0
  %5405 = vmatpush.msra.mxu0 0.0
  %5406 = vmatpush.msra.mxu0 0.0
  %5407 = vmatpush.msra.mxu0 0.0
  %5408 = vmatpush.msra.mxu0 0.0
  %5409 = vmatpush.msra.mxu0 0.0
  %5410 = vmatpush.msra.mxu0 0.0
  %5411 = vmatpush.msra.mxu0 0.0
  %5412 = vmatpush.msra.mxu0 0.0
  %5413 = vmatpush.msra.mxu0 0.0
  %5414 = vmatpush.msra.mxu0 0.0
  %5415 = vmatpush.msra.mxu0 0.0
  %5416 = vmatpush.msra.mxu0 0.0
  %5417 = vmatpush.msra.mxu0 0.0
  %v5418 = vand.u32 %v5015, 4294901760
  %v5419 = vsub.f32 %v5015, %v5418
  %5420 = vmatpush.msra.mxu0 %v5419
  %v5421 = vand.u32 %v4503, 4294901760
  %v5422 = vsub.f32 %v4503, %v5421
  %5423 = vmatmul.f32.gmra.mxu0 %v5422
  %v5424 = vpop.f32.mrf.mxu0
  %v5425 = vadd.f32 %v5401, %v5424
  %5426 = vdwg.mxu0
  %5427 = vmatpush.msra.mxu0 0.0
  %5428 = vmatpush.msra.mxu0 0.0
  %5429 = vmatpush.msra.mxu0 0.0
  %5430 = vmatpush.msra.mxu0 0.0
  %5431 = vmatpush.msra.mxu0 0.0
  %5432 = vmatpush.msra.mxu0 0.0
  %5433 = vmatpush.msra.mxu0 0.0
  %5434 = vmatpush.msra.mxu0 0.0
  %5435 = vmatpush.msra.mxu0 0.0
  %5436 = vmatpush.msra.mxu0 0.0
  %5437 = vmatpush.msra.mxu0 0.0
  %5438 = vmatpush.msra.mxu0 0.0
  %5439 = vmatpush.msra.mxu0 0.0
  %5440 = vmatpush.msra.mxu0 0.0
  %5441 = vmatpush.msra.mxu0 0.0
  %v5442 = vand.u32 %v5015, 4294901760
  %5443 = vmatpush.msra.mxu0 %v5442
  %v5444 = vand.u32 %v4503, 4294901760
  %v5445 = vsub.f32 %v4503, %v5444
  %v5446 = vand.u32 %v5445, 4294901760
  %5447 = vmatmul.f32.gmra.mxu0 %v5446
  %v5448 = vpop.f32.mrf.mxu0
  %v5449 = vadd.f32 %v5425, %v5448
  %5450 = vdwg.mxu0
  %5451 = vmatpush.msra.mxu0 0.0
  %5452 = vmatpush.msra.mxu0 0.0
  %5453 = vmatpush.msra.mxu0 0.0
  %5454 = vmatpush.msra.mxu0 0.0
  %5455 = vmatpush.msra.mxu0 0.0
  %5456 = vmatpush.msra.mxu0 0.0
  %5457 = vmatpush.msra.mxu0 0.0
  %5458 = vmatpush.msra.mxu0 0.0
  %5459 = vmatpush.msra.mxu0 0.0
  %5460 = vmatpush.msra.mxu0 0.0
  %5461 = vmatpush.msra.mxu0 0.0
  %5462 = vmatpush.msra.mxu0 0.0
  %5463 = vmatpush.msra.mxu0 0.0
  %5464 = vmatpush.msra.mxu0 0.0
  %5465 = vmatpush.msra.mxu0 0.0
  %v5466 = vand.u32 %v5015, 4294901760
  %v5467 = vsub.f32 %v5015, %v5466
  %v5468 = vand.u32 %v5467, 4294901760
  %5469 = vmatpush.msra.mxu0 %v5468
  %v5470 = vand.u32 %v4503, 4294901760
  %5471 = vmatmul.f32.gmra.mxu0 %v5470
  %v5472 = vpop.f32.mrf.mxu0
  %v5473 = vadd.f32 %v5449, %v5472
  %5474 = vdwg.mxu0
  %5475 = vmatpush.msra.mxu0 0.0
  %5476 = vmatpush.msra.mxu0 0.0
  %5477 = vmatpush.msra.mxu0 0.0
  %5478 = vmatpush.msra.mxu0 0.0
  %5479 = vmatpush.msra.mxu0 0.0
  %5480 = vmatpush.msra.mxu0 0.0
  %5481 = vmatpush.msra.mxu0 0.0
  %5482 = vmatpush.msra.mxu0 0.0
  %5483 = vmatpush.msra.mxu0 0.0
  %5484 = vmatpush.msra.mxu0 0.0
  %5485 = vmatpush.msra.mxu0 0.0
  %5486 = vmatpush.msra.mxu0 0.0
  %5487 = vmatpush.msra.mxu0 0.0
  %5488 = vmatpush.msra.mxu0 0.0
  %5489 = vmatpush.msra.mxu0 0.0
  %v5490 = vand.u32 %v5015, 4294901760
  %5491 = vmatpush.msra.mxu0 %v5490
  %v5492 = vand.u32 %v4503, 4294901760
  %5493 = vmatmul.f32.gmra.mxu0 %v5492
  %v5494 = vpop.f32.mrf.mxu0
  %v5495 = vadd.f32 %v5473, %v5494
  %5496 = vdwg.mxu0
  %5498 = vrot.lane.b32.xlu0 %v5015, 96
  %v5499 = vpop.permute.xlu0 %5498
  %v5501 = vadd.f32 %v5495, %v5499
  %v5503 = vperm.slane %v4827, 0
  %v5505 = vadd.f32 %v5501, %v5503
  %5506 = vrot.lane.b32.xlu0 %v5015, 112
  %v5507 = vpop.permute.xlu0 %5506
  %5510 = vrot.lane.b32.xlu0 %v5203, 112
  %v5511 = vpop.permute.xlu0 %5510
  %5513 = vmatpush.msra.mxu0 0.0
  %5514 = vmatpush.msra.mxu0 0.0
  %5515 = vmatpush.msra.mxu0 0.0
  %5516 = vmatpush.msra.mxu0 0.0
  %5517 = vmatpush.msra.mxu0 0.0
  %5518 = vmatpush.msra.mxu0 0.0
  %5519 = vmatpush.msra.mxu0 0.0
  %5520 = vmatpush.msra.mxu0 0.0
  %5521 = vmatpush.msra.mxu0 0.0
  %5522 = vmatpush.msra.mxu0 0.0
  %5523 = vmatpush.msra.mxu0 0.0
  %5524 = vmatpush.msra.mxu0 0.0
  %5525 = vmatpush.msra.mxu0 0.0
  %5526 = vmatpush.msra.mxu0 0.0
  %5527 = vmatpush.msra.mxu0 0.0
  %v5528 = vand.u32 %v5507, 4294901760
  %5529 = vmatpush.msra.mxu0 %v5528
  %v5530 = vand.u32 %v4668, 4294901760
  %v5531 = vsub.f32 %v4668, %v5530
  %v5532 = vand.u32 %v5531, 4294901760
  %v5533 = vsub.f32 %v5531, %v5532
  %v5534 = vand.u32 %v5533, 4294901760
  %5535 = vmatmul.f32.gmra.mxu0 %v5534
  %v5536 = vpop.f32.mrf.mxu0
  %v5537 = vadd.f32 %v5511, %v5536
  %5538 = vdwg.mxu0
  %5539 = vmatpush.msra.mxu0 0.0
  %5540 = vmatpush.msra.mxu0 0.0
  %5541 = vmatpush.msra.mxu0 0.0
  %5542 = vmatpush.msra.mxu0 0.0
  %5543 = vmatpush.msra.mxu0 0.0
  %5544 = vmatpush.msra.mxu0 0.0
  %5545 = vmatpush.msra.mxu0 0.0
  %5546 = vmatpush.msra.mxu0 0.0
  %5547 = vmatpush.msra.mxu0 0.0
  %5548 = vmatpush.msra.mxu0 0.0
  %5549 = vmatpush.msra.mxu0 0.0
  %5550 = vmatpush.msra.mxu0 0.0
  %5551 = vmatpush.msra.mxu0 0.0
  %5552 = vmatpush.msra.mxu0 0.0
  %5553 = vmatpush.msra.mxu0 0.0
  %v5554 = vand.u32 %v5507, 4294901760
  %v5555 = vsub.f32 %v5507, %v5554
  %v5556 = vand.u32 %v5555, 4294901760
  %v5557 = vsub.f32 %v5555, %v5556
  %v5558 = vand.u32 %v5557, 4294901760
  %5559 = vmatpush.msra.mxu0 %v5558
  %v5560 = vand.u32 %v4668, 4294901760
  %5561 = vmatmul.f32.gmra.mxu0 %v5560
  %v5562 = vpop.f32.mrf.mxu0
  %v5563 = vadd.f32 %v5537, %v5562
  %5564 = vdwg.mxu0
  %5565 = vmatpush.msra.mxu0 0.0
  %5566 = vmatpush.msra.mxu0 0.0
  %5567 = vmatpush.msra.mxu0 0.0
  %5568 = vmatpush.msra.mxu0 0.0
  %5569 = vmatpush.msra.mxu0 0.0
  %5570 = vmatpush.msra.mxu0 0.0
  %5571 = vmatpush.msra.mxu0 0.0
  %5572 = vmatpush.msra.mxu0 0.0
  %5573 = vmatpush.msra.mxu0 0.0
  %5574 = vmatpush.msra.mxu0 0.0
  %5575 = vmatpush.msra.mxu0 0.0
  %5576 = vmatpush.msra.mxu0 0.0
  %5577 = vmatpush.msra.mxu0 0.0
  %5578 = vmatpush.msra.mxu0 0.0
  %5579 = vmatpush.msra.mxu0 0.0
  %v5580 = vand.u32 %v5507, 4294901760
  %v5581 = vsub.f32 %v5507, %v5580
  %5582 = vmatpush.msra.mxu0 %v5581
  %v5583 = vand.u32 %v4668, 4294901760
  %v5584 = vsub.f32 %v4668, %v5583
  %5585 = vmatmul.f32.gmra.mxu0 %v5584
  %v5586 = vpop.f32.mrf.mxu0
  %v5587 = vadd.f32 %v5563, %v5586
  %5588 = vdwg.mxu0
  %5589 = vmatpush.msra.mxu0 0.0
  %5590 = vmatpush.msra.mxu0 0.0
  %5591 = vmatpush.msra.mxu0 0.0
  %5592 = vmatpush.msra.mxu0 0.0
  %5593 = vmatpush.msra.mxu0 0.0
  %5594 = vmatpush.msra.mxu0 0.0
  %5595 = vmatpush.msra.mxu0 0.0
  %5596 = vmatpush.msra.mxu0 0.0
  %5597 = vmatpush.msra.mxu0 0.0
  %5598 = vmatpush.msra.mxu0 0.0
  %5599 = vmatpush.msra.mxu0 0.0
  %5600 = vmatpush.msra.mxu0 0.0
  %5601 = vmatpush.msra.mxu0 0.0
  %5602 = vmatpush.msra.mxu0 0.0
  %5603 = vmatpush.msra.mxu0 0.0
  %v5604 = vand.u32 %v5507, 4294901760
  %5605 = vmatpush.msra.mxu0 %v5604
  %v5606 = vand.u32 %v4668, 4294901760
  %v5607 = vsub.f32 %v4668, %v5606
  %v5608 = vand.u32 %v5607, 4294901760
  %5609 = vmatmul.f32.gmra.mxu0 %v5608
  %v5610 = vpop.f32.mrf.mxu0
  %v5611 = vadd.f32 %v5587, %v5610
  %5612 = vdwg.mxu0
  %5613 = vmatpush.msra.mxu0 0.0
  %5614 = vmatpush.msra.mxu0 0.0
  %5615 = vmatpush.msra.mxu0 0.0
  %5616 = vmatpush.msra.mxu0 0.0
  %5617 = vmatpush.msra.mxu0 0.0
  %5618 = vmatpush.msra.mxu0 0.0
  %5619 = vmatpush.msra.mxu0 0.0
  %5620 = vmatpush.msra.mxu0 0.0
  %5621 = vmatpush.msra.mxu0 0.0
  %5622 = vmatpush.msra.mxu0 0.0
  %5623 = vmatpush.msra.mxu0 0.0
  %5624 = vmatpush.msra.mxu0 0.0
  %5625 = vmatpush.msra.mxu0 0.0
  %5626 = vmatpush.msra.mxu0 0.0
  %5627 = vmatpush.msra.mxu0 0.0
  %v5628 = vand.u32 %v5507, 4294901760
  %v5629 = vsub.f32 %v5507, %v5628
  %v5630 = vand.u32 %v5629, 4294901760
  %5631 = vmatpush.msra.mxu0 %v5630
  %v5632 = vand.u32 %v4668, 4294901760
  %5633 = vmatmul.f32.gmra.mxu0 %v5632
  %v5634 = vpop.f32.mrf.mxu0
  %v5635 = vadd.f32 %v5611, %v5634
  %5636 = vdwg.mxu0
  %5637 = vmatpush.msra.mxu0 0.0
  %5638 = vmatpush.msra.mxu0 0.0
  %5639 = vmatpush.msra.mxu0 0.0
  %5640 = vmatpush.msra.mxu0 0.0
  %5641 = vmatpush.msra.mxu0 0.0
  %5642 = vmatpush.msra.mxu0 0.0
  %5643 = vmatpush.msra.mxu0 0.0
  %5644 = vmatpush.msra.mxu0 0.0
  %5645 = vmatpush.msra.mxu0 0.0
  %5646 = vmatpush.msra.mxu0 0.0
  %5647 = vmatpush.msra.mxu0 0.0
  %5648 = vmatpush.msra.mxu0 0.0
  %5649 = vmatpush.msra.mxu0 0.0
  %5650 = vmatpush.msra.mxu0 0.0
  %5651 = vmatpush.msra.mxu0 0.0
  %v5652 = vand.u32 %v5507, 4294901760
  %5653 = vmatpush.msra.mxu0 %v5652
  %v5654 = vand.u32 %v4668, 4294901760
  %5655 = vmatmul.f32.gmra.mxu0 %v5654
  %v5656 = vpop.f32.mrf.mxu0
  %v5657 = vadd.f32 %v5635, %v5656
  %5658 = vdwg.mxu0
  %v5659 = vadd.f32 %v5657, %v5503
  %v5660 = vmax.f32 %v5505, 0.0
  %v5661 = vmax.f32 %v5659, 0.0
  %v5662 = vld [vmem:[%s5] sm:$0x3]
  %v5663 = vld [vmem:[%s6] sm:$0x3]
  %v5665 = vsel %vm4352, %v5663, 0
  %5667 = vmatpush.msra.mxu0 0.0
  %5668 = vmatpush.msra.mxu0 0.0
  %5669 = vmatpush.msra.mxu0 0.0
  %5670 = vmatpush.msra.mxu0 0.0
  %5671 = vmatpush.msra.mxu0 0.0
  %5672 = vmatpush.msra.mxu0 0.0
  %5673 = vmatpush.msra.mxu0 0.0
  %5674 = vmatpush.msra.mxu0 0.0
  %5675 = vmatpush.msra.mxu0 0.0
  %5676 = vmatpush.msra.mxu0 0.0
  %5677 = vmatpush.msra.mxu0 0.0
  %5678 = vmatpush.msra.mxu0 0.0
  %5679 = vmatpush.msra.mxu0 0.0
  %5680 = vmatpush.msra.mxu0 0.0
  %5681 = vmatpush.msra.mxu0 0.0
  %v5682 = vand.u32 %v5661, 4294901760
  %5683 = vmatpush.msra.mxu0 %v5682
  %v5684 = vand.u32 %v5665, 4294901760
  %v5685 = vsub.f32 %v5665, %v5684
  %v5686 = vand.u32 %v5685, 4294901760
  %v5687 = vsub.f32 %v5685, %v5686
  %v5688 = vand.u32 %v5687, 4294901760
  %5689 = vmatmul.f32.gmra.mxu0 %v5688
  %v5690 = vpop.f32.mrf.mxu0
  %v5691 = vadd.f32 0.0, %v5690
  %5692 = vdwg.mxu0
  %5693 = vmatpush.msra.mxu0 0.0
  %5694 = vmatpush.msra.mxu0 0.0
  %5695 = vmatpush.msra.mxu0 0.0
  %5696 = vmatpush.msra.mxu0 0.0
  %5697 = vmatpush.msra.mxu0 0.0
  %5698 = vmatpush.msra.mxu0 0.0
  %5699 = vmatpush.msra.mxu0 0.0
  %5700 = vmatpush.msra.mxu0 0.0
  %5701 = vmatpush.msra.mxu0 0.0
  %5702 = vmatpush.msra.mxu0 0.0
  %5703 = vmatpush.msra.mxu0 0.0
  %5704 = vmatpush.msra.mxu0 0.0
  %5705 = vmatpush.msra.mxu0 0.0
  %5706 = vmatpush.msra.mxu0 0.0
  %5707 = vmatpush.msra.mxu0 0.0
  %v5708 = vand.u32 %v5661, 4294901760
  %v5709 = vsub.f32 %v5661, %v5708
  %v5710 = vand.u32 %v5709, 4294901760
  %v5711 = vsub.f32 %v5709, %v5710
  %v5712 = vand.u32 %v5711, 4294901760
  %5713 = vmatpush.msra.mxu0 %v5712
  %v5714 = vand.u32 %v5665, 4294901760
  %5715 = vmatmul.f32.gmra.mxu0 %v5714
  %v5716 = vpop.f32.mrf.mxu0
  %v5717 = vadd.f32 %v5691, %v5716
  %5718 = vdwg.mxu0
  %5719 = vmatpush.msra.mxu0 0.0
  %5720 = vmatpush.msra.mxu0 0.0
  %5721 = vmatpush.msra.mxu0 0.0
  %5722 = vmatpush.msra.mxu0 0.0
  %5723 = vmatpush.msra.mxu0 0.0
  %5724 = vmatpush.msra.mxu0 0.0
  %5725 = vmatpush.msra.mxu0 0.0
  %5726 = vmatpush.msra.mxu0 0.0
  %5727 = vmatpush.msra.mxu0 0.0
  %5728 = vmatpush.msra.mxu0 0.0
  %5729 = vmatpush.msra.mxu0 0.0
  %5730 = vmatpush.msra.mxu0 0.0
  %5731 = vmatpush.msra.mxu0 0.0
  %5732 = vmatpush.msra.mxu0 0.0
  %5733 = vmatpush.msra.mxu0 0.0
  %v5734 = vand.u32 %v5661, 4294901760
  %v5735 = vsub.f32 %v5661, %v5734
  %5736 = vmatpush.msra.mxu0 %v5735
  %v5737 = vand.u32 %v5665, 4294901760
  %v5738 = vsub.f32 %v5665, %v5737
  %5739 = vmatmul.f32.gmra.mxu0 %v5738
  %v5740 = vpop.f32.mrf.mxu0
  %v5741 = vadd.f32 %v5717, %v5740
  %5742 = vdwg.mxu0
  %5743 = vmatpush.msra.mxu0 0.0
  %5744 = vmatpush.msra.mxu0 0.0
  %5745 = vmatpush.msra.mxu0 0.0
  %5746 = vmatpush.msra.mxu0 0.0
  %5747 = vmatpush.msra.mxu0 0.0
  %5748 = vmatpush.msra.mxu0 0.0
  %5749 = vmatpush.msra.mxu0 0.0
  %5750 = vmatpush.msra.mxu0 0.0
  %5751 = vmatpush.msra.mxu0 0.0
  %5752 = vmatpush.msra.mxu0 0.0
  %5753 = vmatpush.msra.mxu0 0.0
  %5754 = vmatpush.msra.mxu0 0.0
  %5755 = vmatpush.msra.mxu0 0.0
  %5756 = vmatpush.msra.mxu0 0.0
  %5757 = vmatpush.msra.mxu0 0.0
  %v5758 = vand.u32 %v5661, 4294901760
  %5759 = vmatpush.msra.mxu0 %v5758
  %v5760 = vand.u32 %v5665, 4294901760
  %v5761 = vsub.f32 %v5665, %v5760
  %v5762 = vand.u32 %v5761, 4294901760
  %5763 = vmatmul.f32.gmra.mxu0 %v5762
  %v5764 = vpop.f32.mrf.mxu0
  %v5765 = vadd.f32 %v5741, %v5764
  %5766 = vdwg.mxu0
  %5767 = vmatpush.msra.mxu0 0.0
  %5768 = vmatpush.msra.mxu0 0.0
  %5769 = vmatpush.msra.mxu0 0.0
  %5770 = vmatpush.msra.mxu0 0.0
  %5771 = vmatpush.msra.mxu0 0.0
  %5772 = vmatpush.msra.mxu0 0.0
  %5773 = vmatpush.msra.mxu0 0.0
  %5774 = vmatpush.msra.mxu0 0.0
  %5775 = vmatpush.msra.mxu0 0.0
  %5776 = vmatpush.msra.mxu0 0.0
  %5777 = vmatpush.msra.mxu0 0.0
  %5778 = vmatpush.msra.mxu0 0.0
  %5779 = vmatpush.msra.mxu0 0.0
  %5780 = vmatpush.msra.mxu0 0.0
  %5781 = vmatpush.msra.mxu0 0.0
  %v5782 = vand.u32 %v5661, 4294901760
  %v5783 = vsub.f32 %v5661, %v5782
  %v5784 = vand.u32 %v5783, 4294901760
  %5785 = vmatpush.msra.mxu0 %v5784
  %v5786 = vand.u32 %v5665, 4294901760
  %5787 = vmatmul.f32.gmra.mxu0 %v5786
  %v5788 = vpop.f32.mrf.mxu0
  %v5789 = vadd.f32 %v5765, %v5788
  %5790 = vdwg.mxu0
  %5791 = vmatpush.msra.mxu0 0.0
  %5792 = vmatpush.msra.mxu0 0.0
  %5793 = vmatpush.msra.mxu0 0.0
  %5794 = vmatpush.msra.mxu0 0.0
  %5795 = vmatpush.msra.mxu0 0.0
  %5796 = vmatpush.msra.mxu0 0.0
  %5797 = vmatpush.msra.mxu0 0.0
  %5798 = vmatpush.msra.mxu0 0.0
  %5799 = vmatpush.msra.mxu0 0.0
  %5800 = vmatpush.msra.mxu0 0.0
  %5801 = vmatpush.msra.mxu0 0.0
  %5802 = vmatpush.msra.mxu0 0.0
  %5803 = vmatpush.msra.mxu0 0.0
  %5804 = vmatpush.msra.mxu0 0.0
  %5805 = vmatpush.msra.mxu0 0.0
  %v5806 = vand.u32 %v5661, 4294901760
  %5807 = vmatpush.msra.mxu0 %v5806
  %v5808 = vand.u32 %v5665, 4294901760
  %5809 = vmatmul.f32.gmra.mxu0 %v5808
  %v5810 = vpop.f32.mrf.mxu0
  %v5811 = vadd.f32 %v5789, %v5810
  %5812 = vdwg.mxu0
  %v5814 = vsel %vm4352, %v5662, 0
  %5816 = vmatpush.msra.mxu0 0.0
  %5817 = vmatpush.msra.mxu0 0.0
  %5818 = vmatpush.msra.mxu0 0.0
  %5819 = vmatpush.msra.mxu0 0.0
  %5820 = vmatpush.msra.mxu0 0.0
  %5821 = vmatpush.msra.mxu0 0.0
  %5822 = vmatpush.msra.mxu0 0.0
  %5823 = vmatpush.msra.mxu0 0.0
  %5824 = vmatpush.msra.mxu0 0.0
  %5825 = vmatpush.msra.mxu0 0.0
  %5826 = vmatpush.msra.mxu0 0.0
  %5827 = vmatpush.msra.mxu0 0.0
  %5828 = vmatpush.msra.mxu0 0.0
  %5829 = vmatpush.msra.mxu0 0.0
  %5830 = vmatpush.msra.mxu0 0.0
  %v5831 = vand.u32 %v5660, 4294901760
  %5832 = vmatpush.msra.mxu0 %v5831
  %v5833 = vand.u32 %v5814, 4294901760
  %v5834 = vsub.f32 %v5814, %v5833
  %v5835 = vand.u32 %v5834, 4294901760
  %v5836 = vsub.f32 %v5834, %v5835
  %v5837 = vand.u32 %v5836, 4294901760
  %5838 = vmatmul.f32.gmra.mxu0 %v5837
  %v5839 = vpop.f32.mrf.mxu0
  %v5840 = vadd.f32 %v5811, %v5839
  %5841 = vdwg.mxu0
  %5842 = vmatpush.msra.mxu0 0.0
  %5843 = vmatpush.msra.mxu0 0.0
  %5844 = vmatpush.msra.mxu0 0.0
  %5845 = vmatpush.msra.mxu0 0.0
  %5846 = vmatpush.msra.mxu0 0.0
  %5847 = vmatpush.msra.mxu0 0.0
  %5848 = vmatpush.msra.mxu0 0.0
  %5849 = vmatpush.msra.mxu0 0.0
  %5850 = vmatpush.msra.mxu0 0.0
  %5851 = vmatpush.msra.mxu0 0.0
  %5852 = vmatpush.msra.mxu0 0.0
  %5853 = vmatpush.msra.mxu0 0.0
  %5854 = vmatpush.msra.mxu0 0.0
  %5855 = vmatpush.msra.mxu0 0.0
  %5856 = vmatpush.msra.mxu0 0.0
  %v5857 = vand.u32 %v5660, 4294901760
  %v5858 = vsub.f32 %v5660, %v5857
  %v5859 = vand.u32 %v5858, 4294901760
  %v5860 = vsub.f32 %v5858, %v5859
  %v5861 = vand.u32 %v5860, 4294901760
  %5862 = vmatpush.msra.mxu0 %v5861
  %v5863 = vand.u32 %v5814, 4294901760
  %5864 = vmatmul.f32.gmra.mxu0 %v5863
  %v5865 = vpop.f32.mrf.mxu0
  %v5866 = vadd.f32 %v5840, %v5865
  %5867 = vdwg.mxu0
  %5868 = vmatpush.msra.mxu0 0.0
  %5869 = vmatpush.msra.mxu0 0.0
  %5870 = vmatpush.msra.mxu0 0.0
  %5871 = vmatpush.msra.mxu0 0.0
  %5872 = vmatpush.msra.mxu0 0.0
  %5873 = vmatpush.msra.mxu0 0.0
  %5874 = vmatpush.msra.mxu0 0.0
  %5875 = vmatpush.msra.mxu0 0.0
  %5876 = vmatpush.msra.mxu0 0.0
  %5877 = vmatpush.msra.mxu0 0.0
  %5878 = vmatpush.msra.mxu0 0.0
  %5879 = vmatpush.msra.mxu0 0.0
  %5880 = vmatpush.msra.mxu0 0.0
  %5881 = vmatpush.msra.mxu0 0.0
  %5882 = vmatpush.msra.mxu0 0.0
  %v5883 = vand.u32 %v5660, 4294901760
  %v5884 = vsub.f32 %v5660, %v5883
  %5885 = vmatpush.msra.mxu0 %v5884
  %v5886 = vand.u32 %v5814, 4294901760
  %v5887 = vsub.f32 %v5814, %v5886
  %5888 = vmatmul.f32.gmra.mxu0 %v5887
  %v5889 = vpop.f32.mrf.mxu0
  %v5890 = vadd.f32 %v5866, %v5889
  %5891 = vdwg.mxu0
  %5892 = vmatpush.msra.mxu0 0.0
  %5893 = vmatpush.msra.mxu0 0.0
  %5894 = vmatpush.msra.mxu0 0.0
  %5895 = vmatpush.msra.mxu0 0.0
  %5896 = vmatpush.msra.mxu0 0.0
  %5897 = vmatpush.msra.mxu0 0.0
  %5898 = vmatpush.msra.mxu0 0.0
  %5899 = vmatpush.msra.mxu0 0.0
  %5900 = vmatpush.msra.mxu0 0.0
  %5901 = vmatpush.msra.mxu0 0.0
  %5902 = vmatpush.msra.mxu0 0.0
  %5903 = vmatpush.msra.mxu0 0.0
  %5904 = vmatpush.msra.mxu0 0.0
  %5905 = vmatpush.msra.mxu0 0.0
  %5906 = vmatpush.msra.mxu0 0.0
  %v5907 = vand.u32 %v5660, 4294901760
  %5908 = vmatpush.msra.mxu0 %v5907
  %v5909 = vand.u32 %v5814, 4294901760
  %v5910 = vsub.f32 %v5814, %v5909
  %v5911 = vand.u32 %v5910, 4294901760
  %5912 = vmatmul.f32.gmra.mxu0 %v5911
  %v5913 = vpop.f32.mrf.mxu0
  %v5914 = vadd.f32 %v5890, %v5913
  %5915 = vdwg.mxu0
  %5916 = vmatpush.msra.mxu0 0.0
  %5917 = vmatpush.msra.mxu0 0.0
  %5918 = vmatpush.msra.mxu0 0.0
  %5919 = vmatpush.msra.mxu0 0.0
  %5920 = vmatpush.msra.mxu0 0.0
  %5921 = vmatpush.msra.mxu0 0.0
  %5922 = vmatpush.msra.mxu0 0.0
  %5923 = vmatpush.msra.mxu0 0.0
  %5924 = vmatpush.msra.mxu0 0.0
  %5925 = vmatpush.msra.mxu0 0.0
  %5926 = vmatpush.msra.mxu0 0.0
  %5927 = vmatpush.msra.mxu0 0.0
  %5928 = vmatpush.msra.mxu0 0.0
  %5929 = vmatpush.msra.mxu0 0.0
  %5930 = vmatpush.msra.mxu0 0.0
  %v5931 = vand.u32 %v5660, 4294901760
  %v5932 = vsub.f32 %v5660, %v5931
  %v5933 = vand.u32 %v5932, 4294901760
  %5934 = vmatpush.msra.mxu0 %v5933
  %v5935 = vand.u32 %v5814, 4294901760
  %5936 = vmatmul.f32.gmra.mxu0 %v5935
  %v5937 = vpop.f32.mrf.mxu0
  %v5938 = vadd.f32 %v5914, %v5937
  %5939 = vdwg.mxu0
  %5940 = vmatpush.msra.mxu0 0.0
  %5941 = vmatpush.msra.mxu0 0.0
  %5942 = vmatpush.msra.mxu0 0.0
  %5943 = vmatpush.msra.mxu0 0.0
  %5944 = vmatpush.msra.mxu0 0.0
  %5945 = vmatpush.msra.mxu0 0.0
  %5946 = vmatpush.msra.mxu0 0.0
  %5947 = vmatpush.msra.mxu0 0.0
  %5948 = vmatpush.msra.mxu0 0.0
  %5949 = vmatpush.msra.mxu0 0.0
  %5950 = vmatpush.msra.mxu0 0.0
  %5951 = vmatpush.msra.mxu0 0.0
  %5952 = vmatpush.msra.mxu0 0.0
  %5953 = vmatpush.msra.mxu0 0.0
  %5954 = vmatpush.msra.mxu0 0.0
  %v5955 = vand.u32 %v5660, 4294901760
  %5956 = vmatpush.msra.mxu0 %v5955
  %v5957 = vand.u32 %v5814, 4294901760
  %5958 = vmatmul.f32.gmra.mxu0 %v5957
  %v5959 = vpop.f32.mrf.mxu0
  %v5960 = vadd.f32 %v5938, %v5959
  %5961 = vdwg.mxu0
  %v5962 = vld [vmem:[%s13] sm:$0xff]
  %v5963 = vld [vmem:[%s13 + $0x8] sm:$0xff]
  %v5964 = vld [vmem:[#allocation2] sm:$0x1]
  %v5966 = vperm.slane %v5964, 0
  %vm5968 = vcmask 130048
  %v5970 = vsel %vm5968, %v5960, 0
  %5972 = vmatpush.msra.mxu0 0.0
  %5973 = vmatpush.msra.mxu0 0.0
  %5974 = vmatpush.msra.mxu0 0.0
  %5975 = vmatpush.msra.mxu0 0.0
  %5976 = vmatpush.msra.mxu0 0.0
  %5977 = vmatpush.msra.mxu0 0.0
  %5978 = vmatpush.msra.mxu0 0.0
  %5979 = vmatpush.msra.mxu0 0.0
  %5980 = vmatpush.msra.mxu0 0.0
  %5981 = vmatpush.msra.mxu0 0.0
  %5982 = vmatpush.msra.mxu0 0.0
  %5983 = vmatpush.msra.mxu0 0.0
  %5984 = vmatpush.msra.mxu0 0.0
  %5985 = vmatpush.msra.mxu0 0.0
  %v5986 = vand.u32 %v5963, 4294901760
  %5987 = vmatpush.msra.mxu0 %v5986
  %v5988 = vand.u32 %v5962, 4294901760
  %5989 = vmatpush.msra.mxu0 %v5988
  %v5990 = vand.u32 %v5970, 4294901760
  %v5991 = vsub.f32 %v5970, %v5990
  %v5992 = vand.u32 %v5991, 4294901760
  %v5993 = vsub.f32 %v5991, %v5992
  %v5994 = vand.u32 %v5993, 4294901760
  %5995 = vmatmul.f32.gmra.mxu0 %v5994
  %v5996 = vpop.f32.mrf.mxu0
  %v5997 = vadd.f32 %v5966, %v5996
  %5998 = vdwg.mxu0
  %5999 = vmatpush.msra.mxu0 0.0
  %6000 = vmatpush.msra.mxu0 0.0
  %6001 = vmatpush.msra.mxu0 0.0
  %6002 = vmatpush.msra.mxu0 0.0
  %6003 = vmatpush.msra.mxu0 0.0
  %6004 = vmatpush.msra.mxu0 0.0
  %6005 = vmatpush.msra.mxu0 0.0
  %6006 = vmatpush.msra.mxu0 0.0
  %6007 = vmatpush.msra.mxu0 0.0
  %6008 = vmatpush.msra.mxu0 0.0
  %6009 = vmatpush.msra.mxu0 0.0
  %6010 = vmatpush.msra.mxu0 0.0
  %6011 = vmatpush.msra.mxu0 0.0
  %6012 = vmatpush.msra.mxu0 0.0
  %v6013 = vand.u32 %v5963, 4294901760
  %v6014 = vsub.f32 %v5963, %v6013
  %v6015 = vand.u32 %v6014, 4294901760
  %v6016 = vsub.f32 %v6014, %v6015
  %v6017 = vand.u32 %v6016, 4294901760
  %6018 = vmatpush.msra.mxu0 %v6017
  %v6019 = vand.u32 %v5962, 4294901760
  %v6020 = vsub.f32 %v5962, %v6019
  %v6021 = vand.u32 %v6020, 4294901760
  %v6022 = vsub.f32 %v6020, %v6021
  %v6023 = vand.u32 %v6022, 4294901760
  %6024 = vmatpush.msra.mxu0 %v6023
  %v6025 = vand.u32 %v5970, 4294901760
  %6026 = vmatmul.f32.gmra.mxu0 %v6025
  %v6027 = vpop.f32.mrf.mxu0
  %v6028 = vadd.f32 %v5997, %v6027
  %6029 = vdwg.mxu0
  %6030 = vmatpush.msra.mxu0 0.0
  %6031 = vmatpush.msra.mxu0 0.0
  %6032 = vmatpush.msra.mxu0 0.0
  %6033 = vmatpush.msra.mxu0 0.0
  %6034 = vmatpush.msra.mxu0 0.0
  %6035 = vmatpush.msra.mxu0 0.0
  %6036 = vmatpush.msra.mxu0 0.0
  %6037 = vmatpush.msra.mxu0 0.0
  %6038 = vmatpush.msra.mxu0 0.0
  %6039 = vmatpush.msra.mxu0 0.0
  %6040 = vmatpush.msra.mxu0 0.0
  %6041 = vmatpush.msra.mxu0 0.0
  %6042 = vmatpush.msra.mxu0 0.0
  %6043 = vmatpush.msra.mxu0 0.0
  %v6044 = vand.u32 %v5963, 4294901760
  %v6045 = vsub.f32 %v5963, %v6044
  %6046 = vmatpush.msra.mxu0 %v6045
  %v6047 = vand.u32 %v5962, 4294901760
  %v6048 = vsub.f32 %v5962, %v6047
  %6049 = vmatpush.msra.mxu0 %v6048
  %v6050 = vand.u32 %v5970, 4294901760
  %v6051 = vsub.f32 %v5970, %v6050
  %6052 = vmatmul.f32.gmra.mxu0 %v6051
  %v6053 = vpop.f32.mrf.mxu0
  %v6054 = vadd.f32 %v6028, %v6053
  %6055 = vdwg.mxu0
  %6056 = vmatpush.msra.mxu0 0.0
  %6057 = vmatpush.msra.mxu0 0.0
  %6058 = vmatpush.msra.mxu0 0.0
  %6059 = vmatpush.msra.mxu0 0.0
  %6060 = vmatpush.msra.mxu0 0.0
  %6061 = vmatpush.msra.mxu0 0.0
  %6062 = vmatpush.msra.mxu0 0.0
  %6063 = vmatpush.msra.mxu0 0.0
  %6064 = vmatpush.msra.mxu0 0.0
  %6065 = vmatpush.msra.mxu0 0.0
  %6066 = vmatpush.msra.mxu0 0.0
  %6067 = vmatpush.msra.mxu0 0.0
  %6068 = vmatpush.msra.mxu0 0.0
  %6069 = vmatpush.msra.mxu0 0.0
  %v6070 = vand.u32 %v5963, 4294901760
  %6071 = vmatpush.msra.mxu0 %v6070
  %v6072 = vand.u32 %v5962, 4294901760
  %6073 = vmatpush.msra.mxu0 %v6072
  %v6074 = vand.u32 %v5970, 4294901760
  %v6075 = vsub.f32 %v5970, %v6074
  %v6076 = vand.u32 %v6075, 4294901760
  %6077 = vmatmul.f32.gmra.mxu0 %v6076
  %v6078 = vpop.f32.mrf.mxu0
  %v6079 = vadd.f32 %v6054, %v6078
  %6080 = vdwg.mxu0
  %6081 = vmatpush.msra.mxu0 0.0
  %6082 = vmatpush.msra.mxu0 0.0
  %6083 = vmatpush.msra.mxu0 0.0
  %6084 = vmatpush.msra.mxu0 0.0
  %6085 = vmatpush.msra.mxu0 0.0
  %6086 = vmatpush.msra.mxu0 0.0
  %6087 = vmatpush.msra.mxu0 0.0
  %6088 = vmatpush.msra.mxu0 0.0
  %6089 = vmatpush.msra.mxu0 0.0
  %6090 = vmatpush.msra.mxu0 0.0
  %6091 = vmatpush.msra.mxu0 0.0
  %6092 = vmatpush.msra.mxu0 0.0
  %6093 = vmatpush.msra.mxu0 0.0
  %6094 = vmatpush.msra.mxu0 0.0
  %v6095 = vand.u32 %v5963, 4294901760
  %v6096 = vsub.f32 %v5963, %v6095
  %v6097 = vand.u32 %v6096, 4294901760
  %6098 = vmatpush.msra.mxu0 %v6097
  %v6099 = vand.u32 %v5962, 4294901760
  %v6100 = vsub.f32 %v5962, %v6099
  %v6101 = vand.u32 %v6100, 4294901760
  %6102 = vmatpush.msra.mxu0 %v6101
  %v6103 = vand.u32 %v5970, 4294901760
  %6104 = vmatmul.f32.gmra.mxu0 %v6103
  %v6105 = vpop.f32.mrf.mxu0
  %v6106 = vadd.f32 %v6079, %v6105
  %6107 = vdwg.mxu0
  %6108 = vmatpush.msra.mxu0 0.0
  %6109 = vmatpush.msra.mxu0 0.0
  %6110 = vmatpush.msra.mxu0 0.0
  %6111 = vmatpush.msra.mxu0 0.0
  %6112 = vmatpush.msra.mxu0 0.0
  %6113 = vmatpush.msra.mxu0 0.0
  %6114 = vmatpush.msra.mxu0 0.0
  %6115 = vmatpush.msra.mxu0 0.0
  %6116 = vmatpush.msra.mxu0 0.0
  %6117 = vmatpush.msra.mxu0 0.0
  %6118 = vmatpush.msra.mxu0 0.0
  %6119 = vmatpush.msra.mxu0 0.0
  %6120 = vmatpush.msra.mxu0 0.0
  %6121 = vmatpush.msra.mxu0 0.0
  %v6122 = vand.u32 %v5963, 4294901760
  %6123 = vmatpush.msra.mxu0 %v6122
  %v6124 = vand.u32 %v5962, 4294901760
  %6125 = vmatpush.msra.mxu0 %v6124
  %v6126 = vand.u32 %v5970, 4294901760
  %6127 = vmatmul.f32.gmra.mxu0 %v6126
  %v6128 = vpop.f32.mrf.mxu0
  %v6129 = vadd.f32 %v6106, %v6128
  %6130 = vdwg.mxu0
  %vm6131 = vcmask 1024
  %6132 = vst.msk [vmem:[%s15] sm:$0x3] %vm6131, %v6129
  // Predicated region
  $region62: #{tpu_custom_call.1} parent=0 // pred_check
    _
  $region63: #{tpu_custom_call.1} parent=0 // pred_check_branch
    %6134 = sbr.rel (0) target = $region65
  $region64: #{tpu_custom_call.1} parent=0 // pred_region
    _
  $region65: #{tpu_custom_call.1} parent=0 // pred_fallthru
    _
  // Predicated region
  $region66: #{tpu_custom_call.1} parent=0 // pred_check
    _
  $region67: #{tpu_custom_call.1} parent=0 // pred_check_branch
    %6136 = sbr.rel (0) target = $region69
  $region68: #{tpu_custom_call.1} parent=0 // pred_region
    _
  $region69: #{tpu_custom_call.1} parent=0 // pred_fallthru
    _

</llo_original>
